<compile_context>
chip_gen: v7x
topology: tpu7x:2x2x1
jax: 0.10.0
libtpu: 0.0.40
codegen_flags: <defaults>
</compile_context>

<pallas_src>
import functools

import jax
import jax.numpy as jnp
from jax.experimental import pallas as pl
from jax.experimental.pallas import tpu as pltpu


def _prenet_fused_kernel(xcol_ref, w1_ref, b1_ref, w2_ref, b2_ref, w3_ref,
                         b3_ref, o_ref, x1p_ref, col_ref, *, H, W):
    """Fused conv1+ReLU -> conv2+ReLU -> conv3 for one batch element.

    xcol_ref: (1, H*W, 32)    conv1 im2col (27 real taps, zero-padded to 32)
    w1_ref  : (32, 64)        conv1 weight slab  [tap*3 + cin, cout]
    w2_ref  : (576, 64)       conv2 weight slab  [tap*64 + cin, cout]
    w3_ref  : (576, 3)        conv3 weight slab
    b*_ref  : (1, C)          biases (f32)
    o_ref   : (1, H, W, 3)    output (NHWC, f32)
    x1p_ref : (H+2, Wp, 64)   zero-halo padded activation scratch (reused for
                              relu(conv1) then relu(conv2))
    col_ref : (H*W, 576)      9-tap im2col slab scratch
    """
    C = 64
    f32 = jnp.float32
    cdtype = x1p_ref.dtype

    # ---- zero ONLY the 1-pixel halo border (interior is overwritten each
    # step before it is read; padding columns beyond W+1 are never read). ----
    Wp = x1p_ref.shape[1]
    zrow = jnp.zeros((1, Wp, C), cdtype)
    x1p_ref[0:1, :, :] = zrow
    x1p_ref[H + 1:H + 2, :, :] = zrow
    zcol = jnp.zeros((H + 2, 1, C), cdtype)
    x1p_ref[:, 0:1, :] = zcol
    x1p_ref[:, W + 1:W + 2, :] = zcol

    # ---- layer 1: 3 -> 64, ReLU.  Single MXU pass, K = 32 (27 real). ----
    a1 = jnp.dot(xcol_ref[0], w1_ref[...], preferred_element_type=f32)
    a1 = jnp.maximum(a1 + b1_ref[...], 0.0)
    x1p_ref[1:H + 1, 1:W + 1, :] = a1.reshape(H, W, C).astype(cdtype)

    # ---- layer 2: 64 -> 64, ReLU.  Build the 9-tap slab once, one matmul. ----
    for dy in range(3):
        for dx in range(3):
            t = dy * 3 + dx
            col_ref[:, t * C:(t + 1) * C] = (
                x1p_ref[dy:dy + H, dx:dx + W, :].reshape(H * W, C))
    a2 = jnp.dot(col_ref[...], w2_ref[...], preferred_element_type=f32)
    a2 = jnp.maximum(a2 + b2_ref[...], 0.0)
    # relu(conv1) is dead now -> alias: reuse x1p for relu(conv2).
    x1p_ref[1:H + 1, 1:W + 1, :] = a2.reshape(H, W, C).astype(cdtype)

    # ---- layer 3: 64 -> 3 (no ReLU).  Same slab layout, one matmul. ----
    for dy in range(3):
        for dx in range(3):
            t = dy * 3 + dx
            col_ref[:, t * C:(t + 1) * C] = (
                x1p_ref[dy:dy + H, dx:dx + W, :].reshape(H * W, C))
    y = jnp.dot(col_ref[...], w3_ref[...], preferred_element_type=f32)
    y = y + b3_ref[...]
    o_ref[0] = y.reshape(H, W, 3).astype(o_ref.dtype)


def prenet_forward(params, x_nchw, *, compute_dtype=jnp.float32):
    """Forward pass matching the PyTorch module.  Input/output are NCHW f32."""
    N, Cin, H, W = x_nchw.shape
    assert Cin == 3, x_nchw.shape
    C = 64
    K1 = 32            # conv1 im2col K: 27 real taps zero-padded to 32
    KH = 9 * C         # conv2/conv3 im2col K: 576

    # Build conv1's im2col in the wrapper (tiny 3-channel tensor; fused by XLA
    # into one pass).  Column order: tap-major (dy*3+dx), channel-minor.
    x_nhwc = jnp.transpose(x_nchw, (0, 2, 3, 1)).astype(jnp.float32)
    xp = jnp.pad(x_nhwc, ((0, 0), (1, 1), (1, 1), (0, 0)))
    taps = [xp[:, dy:dy + H, dx:dx + W, :] for dy in range(3) for dx in range(3)]
    xcol = jnp.concatenate(taps, axis=-1).reshape(N, H * W, 27)
    xcol = jnp.pad(xcol, ((0, 0), (0, 0), (0, K1 - 27))).astype(compute_dtype)

    # Pre-flattened weight slabs (row index = tap*Cin + cin), resident in VMEM
    # via constant index_maps.  Biases stay f32 (f32 epilogue).
    w1 = jnp.pad(params["w1"].astype(jnp.float32).reshape(27, C),
                 ((0, K1 - 27), (0, 0))).astype(compute_dtype)
    w2 = params["w2"].astype(compute_dtype).reshape(KH, C)
    w3 = params["w3"].astype(compute_dtype).reshape(KH, 3)
    b1 = params["b1"].astype(jnp.float32).reshape(1, C)
    b2 = params["b2"].astype(jnp.float32).reshape(1, C)
    b3 = params["b3"].astype(jnp.float32).reshape(1, 3)

    # Pad the padded-activation row pitch to a sublane multiple of 8.
    Wp = ((W + 2 + 7) // 8) * 8

    kernel = functools.partial(_prenet_fused_kernel, H=H, W=W)

    y_nhwc = pl.pallas_call(
        kernel,
        out_shape=jax.ShapeDtypeStruct((N, H, W, 3), jnp.float32),
        grid_spec=pltpu.PrefetchScalarGridSpec(
            num_scalar_prefetch=0,
            grid=(N,),
            in_specs=[
                pl.BlockSpec((1, H * W, K1), lambda n: (n, 0, 0)),
                pl.BlockSpec((K1, C), lambda n: (0, 0)),
                pl.BlockSpec((1, C), lambda n: (0, 0)),
                pl.BlockSpec((KH, C), lambda n: (0, 0)),
                pl.BlockSpec((1, C), lambda n: (0, 0)),
                pl.BlockSpec((KH, 3), lambda n: (0, 0)),
                pl.BlockSpec((1, 3), lambda n: (0, 0)),
            ],
            out_specs=pl.BlockSpec((1, H, W, 3), lambda n: (n, 0, 0, 0)),
            scratch_shapes=[
                pltpu.VMEM((H + 2, Wp, C), compute_dtype),   # padded act (shared)
                pltpu.VMEM((H * W, KH), compute_dtype),       # 9-tap im2col slab
            ],
        ),
        compiler_params=pltpu.CompilerParams(
            dimension_semantics=("parallel",),
            vmem_limit_bytes=48 * 1024 * 1024,
        ),
    )(xcol, w1, b1, w2, b2, w3, b3)

    # NHWC -> NCHW at the boundary (3-channel output only; 64-channel
    # intermediates never leave VMEM).
    return jnp.transpose(y_nhwc, (0, 3, 1, 2))


def init_prenet_params(key):
    """Deterministic synthetic parameters matching PReNet's layer shapes."""
    k1, k2, k3, k4, k5, k6 = jax.random.split(key, 6)
    # Stored as (3, 3, Cin, Cout); PyTorch (Cout, Cin, 3, 3) maps via
    # transpose(2, 3, 1, 0).
    return {
        "w1": 0.1 * jax.random.normal(k1, (3, 3, 3, 64), jnp.float32),
        "b1": 0.1 * jax.random.normal(k2, (64,), jnp.float32),
        "w2": 0.1 * jax.random.normal(k3, (3, 3, 64, 64), jnp.float32),
        "b2": 0.1 * jax.random.normal(k4, (64,), jnp.float32),
        "w3": 0.1 * jax.random.normal(k5, (3, 3, 64, 3), jnp.float32),
        "b3": 0.1 * jax.random.normal(k6, (3,), jnp.float32),
    }


def _reference_forward(params, x_nchw):
    """Pure-JAX reference (lax conv) for the correctness check."""
    def conv(x, w, b):
        x_nhwc = jnp.transpose(x, (0, 2, 3, 1))
        y = jax.lax.conv_general_dilated(
            x_nhwc, w, window_strides=(1, 1), padding="SAME",
            dimension_numbers=("NHWC", "HWIO", "NHWC"))
        y = y + b
        return jnp.transpose(y, (0, 3, 1, 2))
    x = jax.nn.relu(conv(x_nchw, params["w1"], params["b1"]))
    x = jax.nn.relu(conv(x, params["w2"], params["b2"]))
    return conv(x, params["w3"], params["b3"])


if __name__ == "__main__":
    key = jax.random.PRNGKey(0)
    pkey, xkey = jax.random.split(key)
    params = init_prenet_params(pkey)

    # Small deterministic NCHW input consistent with Conv2d(3, ...).
    x = jax.random.normal(xkey, (2, 3, 16, 16), jnp.float32)

    ref = jax.block_until_ready(_reference_forward(params, x))

    # f32 path: tight check against the lax.conv reference.
    out = jax.block_until_ready(prenet_forward(params, x))
    assert out.shape == (2, 3, 16, 16), out.shape
    assert jnp.allclose(out, ref, atol=2e-3, rtol=2e-3), "f32 mismatch vs reference"

    # bf16 path (v6e/v7x scratch/MXU optimization): loose check.
    out_bf16 = jax.block_until_ready(
        prenet_forward(params, x, compute_dtype=jnp.bfloat16))
    assert out_bf16.shape == (2, 3, 16, 16), out_bf16.shape
    assert jnp.allclose(out_bf16, ref, atol=2.5e-1, rtol=1e-1), "bf16 mismatch vs reference"

    print("KERNEL_OK")
</pallas_src>

<mosaic_0001>
module attributes {stable_mosaic.version = 11 : i64} {
  func.func @_prenet_fused_kernel(%arg0: i32, %arg1: memref<1x256x32xf32, #tpu.memory_space<vmem>>, %arg2: memref<32x64xf32, #tpu.memory_space<vmem>>, %arg3: memref<1x64xf32, #tpu.memory_space<vmem>>, %arg4: memref<576x64xf32, #tpu.memory_space<vmem>>, %arg5: memref<1x64xf32, #tpu.memory_space<vmem>>, %arg6: memref<576x3xf32, #tpu.memory_space<vmem>>, %arg7: memref<1x3xf32, #tpu.memory_space<vmem>>, %arg8: memref<1x16x16x3xf32, #tpu.memory_space<vmem>>, %arg9: memref<18x24x64xf32, #tpu.memory_space<vmem>>, %arg10: memref<256x576xf32, #tpu.memory_space<vmem>>) attributes {dimension_semantics = [#tpu.dimension_semantics<parallel>], iteration_bounds = array<i64: 2>, scalar_prefetch = 0 : i64, scratch_operands = 2 : i64, tpu.core_type = #tpu.core_type<tc>, window_params = [{transform_indices = @transform_0, window_bounds = array<i64: 1, 256, 32>}, {pipeline_mode = #tpu.pipeline_mode<synchronous>, transform_indices = @transform_1, window_bounds = array<i64: 32, 64>}, {pipeline_mode = #tpu.pipeline_mode<synchronous>, transform_indices = @transform_2, window_bounds = array<i64: 1, 64>}, {pipeline_mode = #tpu.pipeline_mode<synchronous>, transform_indices = @transform_3, window_bounds = array<i64: 576, 64>}, {pipeline_mode = #tpu.pipeline_mode<synchronous>, transform_indices = @transform_4, window_bounds = array<i64: 1, 64>}, {pipeline_mode = #tpu.pipeline_mode<synchronous>, transform_indices = @transform_5, window_bounds = array<i64: 576, 3>}, {pipeline_mode = #tpu.pipeline_mode<synchronous>, transform_indices = @transform_6, window_bounds = array<i64: 1, 3>}, {transform_indices = @transform_7, window_bounds = array<i64: 1, 16, 16, 3>}]} {
    %cst = arith.constant 0.000000e+00 : f32
    %0 = vector.broadcast %cst : f32 to vector<1x24x64xf32>
    %c0 = arith.constant 0 : index
    %c0_0 = arith.constant 0 : index
    %c0_1 = arith.constant 0 : index
    %1 = vector.load %arg9[%c0, %c0_0, %c0_1] : memref<18x24x64xf32, #tpu.memory_space<vmem>>, vector<1x24x64xf32>
    tpu.vector_store %arg9[%c0, %c0_0, %c0_1], %0 {strides = array<i32>} : memref<18x24x64xf32, #tpu.memory_space<vmem>>, vector<1x24x64xf32>,
    %c17 = arith.constant 17 : index
    %c0_2 = arith.constant 0 : index
    %c0_3 = arith.constant 0 : index
    %2 = vector.load %arg9[%c17, %c0_2, %c0_3] : memref<18x24x64xf32, #tpu.memory_space<vmem>>, vector<1x24x64xf32>
    tpu.vector_store %arg9[%c17, %c0_2, %c0_3], %0 {strides = array<i32>} : memref<18x24x64xf32, #tpu.memory_space<vmem>>, vector<1x24x64xf32>,
    %cst_4 = arith.constant 0.000000e+00 : f32
    %3 = vector.broadcast %cst_4 : f32 to vector<18x1x64xf32>
    %c0_5 = arith.constant 0 : index
    %c0_6 = arith.constant 0 : index
    %c0_7 = arith.constant 0 : index
    %4 = vector.load %arg9[%c0_5, %c0_6, %c0_7] : memref<18x24x64xf32, #tpu.memory_space<vmem>>, vector<18x1x64xf32>
    tpu.vector_store %arg9[%c0_5, %c0_6, %c0_7], %3 {strides = array<i32>} : memref<18x24x64xf32, #tpu.memory_space<vmem>>, vector<18x1x64xf32>,
    %c0_8 = arith.constant 0 : index
    %c17_9 = arith.constant 17 : index
    %c0_10 = arith.constant 0 : index
    %5 = vector.load %arg9[%c0_8, %c17_9, %c0_10] : memref<18x24x64xf32, #tpu.memory_space<vmem>>, vector<18x1x64xf32>
    tpu.vector_store %arg9[%c0_8, %c17_9, %c0_10], %3 {strides = array<i32>} : memref<18x24x64xf32, #tpu.memory_space<vmem>>, vector<18x1x64xf32>,
    %c0_11 = arith.constant 0 : index
    %c0_12 = arith.constant 0 : index
    %c0_13 = arith.constant 0 : index
    %6 = vector.load %arg1[%c0_11, %c0_12, %c0_13] : memref<1x256x32xf32, #tpu.memory_space<vmem>>, vector<1x256x32xf32>
    %7 = vector.shape_cast %6 : vector<1x256x32xf32> to vector<256x32xf32>
    %c0_14 = arith.constant 0 : index
    %c0_15 = arith.constant 0 : index
    %8 = vector.load %arg2[%c0_14, %c0_15] : memref<32x64xf32, #tpu.memory_space<vmem>>, vector<32x64xf32>
    %cst_16 = arith.constant dense<0.000000e+00> : vector<256x64xf32>
    %9 = tpu.matmul %7, %8, %cst_16 {dimension_numbers = #tpu.dot_dimension_numbers<[1], [0], [0], [1], [0, 0, 1, 1], [], []>} : vector<256x32xf32>, vector<32x64xf32>, vector<256x64xf32> -> vector<256x64xf32>
    %c0_17 = arith.constant 0 : index
    %c0_18 = arith.constant 0 : index
    %10 = vector.load %arg3[%c0_17, %c0_18] : memref<1x64xf32, #tpu.memory_space<vmem>>, vector<1x64xf32>
    %11 = vector.broadcast %10 : vector<1x64xf32> to vector<256x64xf32>
    %12 = arith.addf %9, %11 : vector<256x64xf32>
    %cst_19 = arith.constant 0.000000e+00 : f32
    %13 = vector.broadcast %cst_19 : f32 to vector<256x64xf32>
    %14 = arith.maximumf %12, %13 : vector<256x64xf32>
    %15 = vector.shape_cast %14 : vector<256x64xf32> to vector<16x16x64xf32>
    %c1 = arith.constant 1 : index
    %c1_20 = arith.constant 1 : index
    %c0_21 = arith.constant 0 : index
    %16 = vector.load %arg9[%c1, %c1_20, %c0_21] : memref<18x24x64xf32, #tpu.memory_space<vmem>>, vector<16x16x64xf32>
    tpu.vector_store %arg9[%c1, %c1_20, %c0_21], %15 {strides = array<i32>} : memref<18x24x64xf32, #tpu.memory_space<vmem>>, vector<16x16x64xf32>,
    %c0_22 = arith.constant 0 : index
    %c0_23 = arith.constant 0 : index
    %c0_24 = arith.constant 0 : index
    %17 = vector.load %arg9[%c0_22, %c0_23, %c0_24] : memref<18x24x64xf32, #tpu.memory_space<vmem>>, vector<16x16x64xf32>
    %18 = vector.shape_cast %17 : vector<16x16x64xf32> to vector<256x64xf32>
    %c0_25 = arith.constant 0 : index
    %c0_26 = arith.constant 0 : index
    %19 = vector.load %arg10[%c0_25, %c0_26] : memref<256x576xf32, #tpu.memory_space<vmem>>, vector<256x64xf32>
    tpu.vector_store %arg10[%c0_25, %c0_26], %18 {strides = array<i32>} : memref<256x576xf32, #tpu.memory_space<vmem>>, vector<256x64xf32>,
    %c0_27 = arith.constant 0 : index
    %c1_28 = arith.constant 1 : index
    %c0_29 = arith.constant 0 : index
    %20 = vector.load %arg9[%c0_27, %c1_28, %c0_29] : memref<18x24x64xf32, #tpu.memory_space<vmem>>, vector<16x16x64xf32>
    %21 = vector.shape_cast %20 : vector<16x16x64xf32> to vector<256x64xf32>
    %c0_30 = arith.constant 0 : index
    %c64 = arith.constant 64 : index
    %22 = vector.load %arg10[%c0_30, %c64] : memref<256x576xf32, #tpu.memory_space<vmem>>, vector<256x64xf32>
    tpu.vector_store %arg10[%c0_30, %c64], %21 {strides = array<i32>} : memref<256x576xf32, #tpu.memory_space<vmem>>, vector<256x64xf32>,
    %c0_31 = arith.constant 0 : index
    %c2 = arith.constant 2 : index
    %c0_32 = arith.constant 0 : index
    %23 = vector.load %arg9[%c0_31, %c2, %c0_32] : memref<18x24x64xf32, #tpu.memory_space<vmem>>, vector<16x16x64xf32>
    %24 = vector.shape_cast %23 : vector<16x16x64xf32> to vector<256x64xf32>
    %c0_33 = arith.constant 0 : index
    %c128 = arith.constant 128 : index
    %25 = vector.load %arg10[%c0_33, %c128] : memref<256x576xf32, #tpu.memory_space<vmem>>, vector<256x64xf32>
    tpu.vector_store %arg10[%c0_33, %c128], %24 {strides = array<i32>} : memref<256x576xf32, #tpu.memory_space<vmem>>, vector<256x64xf32>,
    %c1_34 = arith.constant 1 : index
    %c0_35 = arith.constant 0 : index
    %c0_36 = arith.constant 0 : index
    %26 = vector.load %arg9[%c1_34, %c0_35, %c0_36] : memref<18x24x64xf32, #tpu.memory_space<vmem>>, vector<16x16x64xf32>
    %27 = vector.shape_cast %26 : vector<16x16x64xf32> to vector<256x64xf32>
    %c0_37 = arith.constant 0 : index
    %c192 = arith.constant 192 : index
    %28 = vector.load %arg10[%c0_37, %c192] : memref<256x576xf32, #tpu.memory_space<vmem>>, vector<256x64xf32>
    tpu.vector_store %arg10[%c0_37, %c192], %27 {strides = array<i32>} : memref<256x576xf32, #tpu.memory_space<vmem>>, vector<256x64xf32>,
    %c1_38 = arith.constant 1 : index
    %c1_39 = arith.constant 1 : index
    %c0_40 = arith.constant 0 : index
    %29 = vector.load %arg9[%c1_38, %c1_39, %c0_40] : memref<18x24x64xf32, #tpu.memory_space<vmem>>, vector<16x16x64xf32>
    %30 = vector.shape_cast %29 : vector<16x16x64xf32> to vector<256x64xf32>
    %c0_41 = arith.constant 0 : index
    %c256 = arith.constant 256 : index
    %31 = vector.load %arg10[%c0_41, %c256] : memref<256x576xf32, #tpu.memory_space<vmem>>, vector<256x64xf32>
    tpu.vector_store %arg10[%c0_41, %c256], %30 {strides = array<i32>} : memref<256x576xf32, #tpu.memory_space<vmem>>, vector<256x64xf32>,
    %c1_42 = arith.constant 1 : index
    %c2_43 = arith.constant 2 : index
    %c0_44 = arith.constant 0 : index
    %32 = vector.load %arg9[%c1_42, %c2_43, %c0_44] : memref<18x24x64xf32, #tpu.memory_space<vmem>>, vector<16x16x64xf32>
    %33 = vector.shape_cast %32 : vector<16x16x64xf32> to vector<256x64xf32>
    %c0_45 = arith.constant 0 : index
    %c320 = arith.constant 320 : index
    %34 = vector.load %arg10[%c0_45, %c320] : memref<256x576xf32, #tpu.memory_space<vmem>>, vector<256x64xf32>
    tpu.vector_store %arg10[%c0_45, %c320], %33 {strides = array<i32>} : memref<256x576xf32, #tpu.memory_space<vmem>>, vector<256x64xf32>,
    %c2_46 = arith.constant 2 : index
    %c0_47 = arith.constant 0 : index
    %c0_48 = arith.constant 0 : index
    %35 = vector.load %arg9[%c2_46, %c0_47, %c0_48] : memref<18x24x64xf32, #tpu.memory_space<vmem>>, vector<16x16x64xf32>
    %36 = vector.shape_cast %35 : vector<16x16x64xf32> to vector<256x64xf32>
    %c0_49 = arith.constant 0 : index
    %c384 = arith.constant 384 : index
    %37 = vector.load %arg10[%c0_49, %c384] : memref<256x576xf32, #tpu.memory_space<vmem>>, vector<256x64xf32>
    tpu.vector_store %arg10[%c0_49, %c384], %36 {strides = array<i32>} : memref<256x576xf32, #tpu.memory_space<vmem>>, vector<256x64xf32>,
    %c2_50 = arith.constant 2 : index
    %c1_51 = arith.constant 1 : index
    %c0_52 = arith.constant 0 : index
    %38 = vector.load %arg9[%c2_50, %c1_51, %c0_52] : memref<18x24x64xf32, #tpu.memory_space<vmem>>, vector<16x16x64xf32>
    %39 = vector.shape_cast %38 : vector<16x16x64xf32> to vector<256x64xf32>
    %c0_53 = arith.constant 0 : index
    %c448 = arith.constant 448 : index
    %40 = vector.load %arg10[%c0_53, %c448] : memref<256x576xf32, #tpu.memory_space<vmem>>, vector<256x64xf32>
    tpu.vector_store %arg10[%c0_53, %c448], %39 {strides = array<i32>} : memref<256x576xf32, #tpu.memory_space<vmem>>, vector<256x64xf32>,
    %c2_54 = arith.constant 2 : index
    %c2_55 = arith.constant 2 : index
    %c0_56 = arith.constant 0 : index
    %41 = vector.load %arg9[%c2_54, %c2_55, %c0_56] : memref<18x24x64xf32, #tpu.memory_space<vmem>>, vector<16x16x64xf32>
    %42 = vector.shape_cast %41 : vector<16x16x64xf32> to vector<256x64xf32>
    %c0_57 = arith.constant 0 : index
    %c512 = arith.constant 512 : index
    %43 = vector.load %arg10[%c0_57, %c512] : memref<256x576xf32, #tpu.memory_space<vmem>>, vector<256x64xf32>
    tpu.vector_store %arg10[%c0_57, %c512], %42 {strides = array<i32>} : memref<256x576xf32, #tpu.memory_space<vmem>>, vector<256x64xf32>,
    %c0_58 = arith.constant 0 : index
    %c0_59 = arith.constant 0 : index
    %44 = vector.load %arg10[%c0_58, %c0_59] : memref<256x576xf32, #tpu.memory_space<vmem>>, vector<256x576xf32>
    %c0_60 = arith.constant 0 : index
    %c0_61 = arith.constant 0 : index
    %45 = vector.load %arg4[%c0_60, %c0_61] : memref<576x64xf32, #tpu.memory_space<vmem>>, vector<576x64xf32>
    %cst_62 = arith.constant dense<0.000000e+00> : vector<256x64xf32>
    %46 = tpu.matmul %44, %45, %cst_62 {dimension_numbers = #tpu.dot_dimension_numbers<[1], [0], [0], [1], [0, 0, 1, 1], [], []>} : vector<256x576xf32>, vector<576x64xf32>, vector<256x64xf32> -> vector<256x64xf32>
    %c0_63 = arith.constant 0 : index
    %c0_64 = arith.constant 0 : index
    %47 = vector.load %arg5[%c0_63, %c0_64] : memref<1x64xf32, #tpu.memory_space<vmem>>, vector<1x64xf32>
    %48 = vector.broadcast %47 : vector<1x64xf32> to vector<256x64xf32>
    %49 = arith.addf %46, %48 : vector<256x64xf32>
    %cst_65 = arith.constant 0.000000e+00 : f32
    %50 = vector.broadcast %cst_65 : f32 to vector<256x64xf32>
    %51 = arith.maximumf %49, %50 : vector<256x64xf32>
    %52 = vector.shape_cast %51 : vector<256x64xf32> to vector<16x16x64xf32>
    %c1_66 = arith.constant 1 : index
    %c1_67 = arith.constant 1 : index
    %c0_68 = arith.constant 0 : index
    %53 = vector.load %arg9[%c1_66, %c1_67, %c0_68] : memref<18x24x64xf32, #tpu.memory_space<vmem>>, vector<16x16x64xf32>
    tpu.vector_store %arg9[%c1_66, %c1_67, %c0_68], %52 {strides = array<i32>} : memref<18x24x64xf32, #tpu.memory_space<vmem>>, vector<16x16x64xf32>,
    %c0_69 = arith.constant 0 : index
    %c0_70 = arith.constant 0 : index
    %c0_71 = arith.constant 0 : index
    %54 = vector.load %arg9[%c0_69, %c0_70, %c0_71] : memref<18x24x64xf32, #tpu.memory_space<vmem>>, vector<16x16x64xf32>
    %55 = vector.shape_cast %54 : vector<16x16x64xf32> to vector<256x64xf32>
    %c0_72 = arith.constant 0 : index
    %c0_73 = arith.constant 0 : index
    %56 = vector.load %arg10[%c0_72, %c0_73] : memref<256x576xf32, #tpu.memory_space<vmem>>, vector<256x64xf32>
    tpu.vector_store %arg10[%c0_72, %c0_73], %55 {strides = array<i32>} : memref<256x576xf32, #tpu.memory_space<vmem>>, vector<256x64xf32>,
    %c0_74 = arith.constant 0 : index
    %c1_75 = arith.constant 1 : index
    %c0_76 = arith.constant 0 : index
    %57 = vector.load %arg9[%c0_74, %c1_75, %c0_76] : memref<18x24x64xf32, #tpu.memory_space<vmem>>, vector<16x16x64xf32>
    %58 = vector.shape_cast %57 : vector<16x16x64xf32> to vector<256x64xf32>
    %c0_77 = arith.constant 0 : index
    %c64_78 = arith.constant 64 : index
    %59 = vector.load %arg10[%c0_77, %c64_78] : memref<256x576xf32, #tpu.memory_space<vmem>>, vector<256x64xf32>
    tpu.vector_store %arg10[%c0_77, %c64_78], %58 {strides = array<i32>} : memref<256x576xf32, #tpu.memory_space<vmem>>, vector<256x64xf32>,
    %c0_79 = arith.constant 0 : index
    %c2_80 = arith.constant 2 : index
    %c0_81 = arith.constant 0 : index
    %60 = vector.load %arg9[%c0_79, %c2_80, %c0_81] : memref<18x24x64xf32, #tpu.memory_space<vmem>>, vector<16x16x64xf32>
    %61 = vector.shape_cast %60 : vector<16x16x64xf32> to vector<256x64xf32>
    %c0_82 = arith.constant 0 : index
    %c128_83 = arith.constant 128 : index
    %62 = vector.load %arg10[%c0_82, %c128_83] : memref<256x576xf32, #tpu.memory_space<vmem>>, vector<256x64xf32>
    tpu.vector_store %arg10[%c0_82, %c128_83], %61 {strides = array<i32>} : memref<256x576xf32, #tpu.memory_space<vmem>>, vector<256x64xf32>,
    %c1_84 = arith.constant 1 : index
    %c0_85 = arith.constant 0 : index
    %c0_86 = arith.constant 0 : index
    %63 = vector.load %arg9[%c1_84, %c0_85, %c0_86] : memref<18x24x64xf32, #tpu.memory_space<vmem>>, vector<16x16x64xf32>
    %64 = vector.shape_cast %63 : vector<16x16x64xf32> to vector<256x64xf32>
    %c0_87 = arith.constant 0 : index
    %c192_88 = arith.constant 192 : index
    %65 = vector.load %arg10[%c0_87, %c192_88] : memref<256x576xf32, #tpu.memory_space<vmem>>, vector<256x64xf32>
    tpu.vector_store %arg10[%c0_87, %c192_88], %64 {strides = array<i32>} : memref<256x576xf32, #tpu.memory_space<vmem>>, vector<256x64xf32>,
    %c1_89 = arith.constant 1 : index
    %c1_90 = arith.constant 1 : index
    %c0_91 = arith.constant 0 : index
    %66 = vector.load %arg9[%c1_89, %c1_90, %c0_91] : memref<18x24x64xf32, #tpu.memory_space<vmem>>, vector<16x16x64xf32>
    %67 = vector.shape_cast %66 : vector<16x16x64xf32> to vector<256x64xf32>
    %c0_92 = arith.constant 0 : index
    %c256_93 = arith.constant 256 : index
    %68 = vector.load %arg10[%c0_92, %c256_93] : memref<256x576xf32, #tpu.memory_space<vmem>>, vector<256x64xf32>
    tpu.vector_store %arg10[%c0_92, %c256_93], %67 {strides = array<i32>} : memref<256x576xf32, #tpu.memory_space<vmem>>, vector<256x64xf32>,
    %c1_94 = arith.constant 1 : index
    %c2_95 = arith.constant 2 : index
    %c0_96 = arith.constant 0 : index
    %69 = vector.load %arg9[%c1_94, %c2_95, %c0_96] : memref<18x24x64xf32, #tpu.memory_space<vmem>>, vector<16x16x64xf32>
    %70 = vector.shape_cast %69 : vector<16x16x64xf32> to vector<256x64xf32>
    %c0_97 = arith.constant 0 : index
    %c320_98 = arith.constant 320 : index
    %71 = vector.load %arg10[%c0_97, %c320_98] : memref<256x576xf32, #tpu.memory_space<vmem>>, vector<256x64xf32>
    tpu.vector_store %arg10[%c0_97, %c320_98], %70 {strides = array<i32>} : memref<256x576xf32, #tpu.memory_space<vmem>>, vector<256x64xf32>,
    %c2_99 = arith.constant 2 : index
    %c0_100 = arith.constant 0 : index
    %c0_101 = arith.constant 0 : index
    %72 = vector.load %arg9[%c2_99, %c0_100, %c0_101] : memref<18x24x64xf32, #tpu.memory_space<vmem>>, vector<16x16x64xf32>
    %73 = vector.shape_cast %72 : vector<16x16x64xf32> to vector<256x64xf32>
    %c0_102 = arith.constant 0 : index
    %c384_103 = arith.constant 384 : index
    %74 = vector.load %arg10[%c0_102, %c384_103] : memref<256x576xf32, #tpu.memory_space<vmem>>, vector<256x64xf32>
    tpu.vector_store %arg10[%c0_102, %c384_103], %73 {strides = array<i32>} : memref<256x576xf32, #tpu.memory_space<vmem>>, vector<256x64xf32>,
    %c2_104 = arith.constant 2 : index
    %c1_105 = arith.constant 1 : index
    %c0_106 = arith.constant 0 : index
    %75 = vector.load %arg9[%c2_104, %c1_105, %c0_106] : memref<18x24x64xf32, #tpu.memory_space<vmem>>, vector<16x16x64xf32>
    %76 = vector.shape_cast %75 : vector<16x16x64xf32> to vector<256x64xf32>
    %c0_107 = arith.constant 0 : index
    %c448_108 = arith.constant 448 : index
    %77 = vector.load %arg10[%c0_107, %c448_108] : memref<256x576xf32, #tpu.memory_space<vmem>>, vector<256x64xf32>
    tpu.vector_store %arg10[%c0_107, %c448_108], %76 {strides = array<i32>} : memref<256x576xf32, #tpu.memory_space<vmem>>, vector<256x64xf32>,
    %c2_109 = arith.constant 2 : index
    %c2_110 = arith.constant 2 : index
    %c0_111 = arith.constant 0 : index
    %78 = vector.load %arg9[%c2_109, %c2_110, %c0_111] : memref<18x24x64xf32, #tpu.memory_space<vmem>>, vector<16x16x64xf32>
    %79 = vector.shape_cast %78 : vector<16x16x64xf32> to vector<256x64xf32>
    %c0_112 = arith.constant 0 : index
    %c512_113 = arith.constant 512 : index
    %80 = vector.load %arg10[%c0_112, %c512_113] : memref<256x576xf32, #tpu.memory_space<vmem>>, vector<256x64xf32>
    tpu.vector_store %arg10[%c0_112, %c512_113], %79 {strides = array<i32>} : memref<256x576xf32, #tpu.memory_space<vmem>>, vector<256x64xf32>,
    %c0_114 = arith.constant 0 : index
    %c0_115 = arith.constant 0 : index
    %81 = vector.load %arg10[%c0_114, %c0_115] : memref<256x576xf32, #tpu.memory_space<vmem>>, vector<256x576xf32>
    %c0_116 = arith.constant 0 : index
    %c0_117 = arith.constant 0 : index
    %82 = vector.load %arg6[%c0_116, %c0_117] : memref<576x3xf32, #tpu.memory_space<vmem>>, vector<576x3xf32>
    %cst_118 = arith.constant dense<0.000000e+00> : vector<256x3xf32>
    %83 = tpu.matmul %81, %82, %cst_118 {dimension_numbers = #tpu.dot_dimension_numbers<[1], [0], [0], [1], [0, 0, 1, 1], [], []>} : vector<256x576xf32>, vector<576x3xf32>, vector<256x3xf32> -> vector<256x3xf32>
    %c0_119 = arith.constant 0 : index
    %c0_120 = arith.constant 0 : index
    %84 = vector.load %arg7[%c0_119, %c0_120] : memref<1x3xf32, #tpu.memory_space<vmem>>, vector<1x3xf32>
    %85 = vector.broadcast %84 : vector<1x3xf32> to vector<256x3xf32>
    %86 = arith.addf %83, %85 : vector<256x3xf32>
    %87 = vector.shape_cast %86 : vector<256x3xf32> to vector<16x16x3xf32>
    %c0_121 = arith.constant 0 : index
    %c0_122 = arith.constant 0 : index
    %c0_123 = arith.constant 0 : index
    %c0_124 = arith.constant 0 : index
    %88 = vector.load %arg8[%c0_121, %c0_122, %c0_123, %c0_124] : memref<1x16x16x3xf32, #tpu.memory_space<vmem>>, vector<1x16x16x3xf32>
    %89 = vector.shape_cast %88 : vector<1x16x16x3xf32> to vector<16x16x3xf32>
    %90 = vector.shape_cast %87 : vector<16x16x3xf32> to vector<1x16x16x3xf32>
    tpu.vector_store %arg8[%c0_121, %c0_122, %c0_123, %c0_124], %90 {strides = array<i32>} : memref<1x16x16x3xf32, #tpu.memory_space<vmem>>, vector<1x16x16x3xf32>,
    return
  }
  func.func @transform_0(%arg0: i32) -> (i32, i32, i32) {
    %c0_i32 = arith.constant 0 : i32
    %c0_i32_0 = arith.constant 0 : i32
    %c0_i32_1 = arith.constant 0 : i32
    return %arg0, %c0_i32, %c0_i32_0 : i32, i32, i32
  }
  func.func @transform_1(%arg0: i32) -> (i32, i32) {
    %c0_i32 = arith.constant 0 : i32
    %c0_i32_0 = arith.constant 0 : i32
    %c0_i32_1 = arith.constant 0 : i32
    return %c0_i32, %c0_i32_0 : i32, i32
  }
  func.func @transform_2(%arg0: i32) -> (i32, i32) {
    %c0_i32 = arith.constant 0 : i32
    %c0_i32_0 = arith.constant 0 : i32
    %c0_i32_1 = arith.constant 0 : i32
    return %c0_i32, %c0_i32_0 : i32, i32
  }
  func.func @transform_3(%arg0: i32) -> (i32, i32) {
    %c0_i32 = arith.constant 0 : i32
    %c0_i32_0 = arith.constant 0 : i32
    %c0_i32_1 = arith.constant 0 : i32
    return %c0_i32, %c0_i32_0 : i32, i32
  }
  func.func @transform_4(%arg0: i32) -> (i32, i32) {
    %c0_i32 = arith.constant 0 : i32
    %c0_i32_0 = arith.constant 0 : i32
    %c0_i32_1 = arith.constant 0 : i32
    return %c0_i32, %c0_i32_0 : i32, i32
  }
  func.func @transform_5(%arg0: i32) -> (i32, i32) {
    %c0_i32 = arith.constant 0 : i32
    %c0_i32_0 = arith.constant 0 : i32
    %c0_i32_1 = arith.constant 0 : i32
    return %c0_i32, %c0_i32_0 : i32, i32
  }
  func.func @transform_6(%arg0: i32) -> (i32, i32) {
    %c0_i32 = arith.constant 0 : i32
    %c0_i32_0 = arith.constant 0 : i32
    %c0_i32_1 = arith.constant 0 : i32
    return %c0_i32, %c0_i32_0 : i32, i32
  }
  func.func @transform_7(%arg0: i32) -> (i32, i32, i32, i32) {
    %c0_i32 = arith.constant 0 : i32
    %c0_i32_0 = arith.constant 0 : i32
    %c0_i32_1 = arith.constant 0 : i32
    %c0_i32_2 = arith.constant 0 : i32
    return %arg0, %c0_i32, %c0_i32_0, %c0_i32_1 : i32, i32, i32, i32
  }
}

</mosaic_0001>

<llo_original>
// kernel: tpu_custom_call.1
$region0: #{tpu_custom_call.1}
  #allocation0 [shape = 'u32[]', space=smem, size = 0x4, offset = 0x4, fixed_abs, tag = 'smem constant byte address 0x4 - core index']
  #allocation1 [shape = 'u32[144,128]{1,0:T(1,128)}', space=vmem, size = 0x12000, scoped, tag = 'internal scratch']
  #allocation2 [shape = 'f32[18,24,64]{2,1,0:T(8,128)}', space=vmem, size = 0x36000, scoped, tag = 'scratch operand']
  #allocation3 [shape = 'f32[256,576]{1,0:T(8,128)}', space=vmem, size = 0xa0000, scoped, tag = 'scratch operand']
  %s0 = inlined_call_operand.vmem [shape: f32[2,256,32], index: 0, kind: input, shape index: {}]
  %s1 = inlined_call_operand.vmem [shape: f32[32,64], index: 1, kind: input, shape index: {}]
  %s2 = inlined_call_operand.vmem [shape: f32[1,64], index: 2, kind: input, shape index: {}]
  %s3 = inlined_call_operand.vmem [shape: f32[576,64], index: 3, kind: input, shape index: {}]
  %s4 = inlined_call_operand.vmem [shape: f32[1,64], index: 4, kind: input, shape index: {}]
  %s5 = inlined_call_operand.vmem [shape: f32[576,3], index: 5, kind: input, shape index: {}]
  %s6 = inlined_call_operand.vmem [shape: f32[1,3], index: 6, kind: input, shape index: {}]
  %s7 = inlined_call_operand.vmem [shape: f32[2,16,16,3], index: 7, kind: output, shape index: {}]
  %s8 = sld [smem:[#allocation0]]
  $region61: #{tpu_custom_call.1} parent=0
    _
  %s10 = ssub.s32 1, %s8
  %s11 = scalar_select 0, %s10, %s8
  loop: start=0, step=1, limit=4
  $region2: #{tpu_custom_call.1} parent=0 // loop_pre_header
    _
  $region3: #{tpu_custom_call.1} parent=0 // loop_header
    %s13 = sphi 0, %s17
    %p14 = scmp.ge.s32.totalorder %s13, 4
    %s23 = sphi 0, %s25
    %s26 = sphi 0, %s23
    %s27 = sphi 0, %s26
    %s43 = sphi 0, %s27
    %s47 = sphi 0, %s47
    %s49 = sphi 0, %s47
    %s50 = sphi 0, %s49
    %s64 = sphi 0, %s50
    %s68 = sphi 0, %s68
    %s70 = sphi 0, %s68
    %s71 = sphi 0, %s70
    %s85 = sphi 0, %s71
    %s89 = sphi 0, %s89
    %s91 = sphi 0, %s89
    %s92 = sphi 0, %s91
    %s106 = sphi 0, %s92
    %s110 = sphi 0, %s110
    %s112 = sphi 0, %s110
    %s113 = sphi 0, %s112
    %s127 = sphi 0, %s113
    %s131 = sphi 0, %s131
    %s133 = sphi 0, %s131
    %s134 = sphi 0, %s133
    %s148 = sphi 0, %s134
    %s152 = sphi 0, %s152
    %s154 = sphi 0, %s152
    %s155 = sphi 0, %s154
    %s169 = sphi 0, %s155
    %s175 = sphi 0, %s177
    %s178 = sphi 0, %s175
    %s179 = sphi 0, %s178
    %s195 = sphi 0, %s179
  $region4: #{tpu_custom_call.1} parent=0 // loop_header_branch
    %16 = sbr.rel (%p14) target = $region8
  $region5: #{tpu_custom_call.1} parent=0 // loop_body
    %s18 = ssub.s32 %s13, 1
    %s19 = ssub.s32 %s13, 2
    %s20 = sadd.s32 %s13, 1
    %s21 = ssub.s32 %s13, %s20
    %p22 = scmp.eq.s32.totalorder %s21, 0
    %s24 = sadd.s32 %s23, 1
    %s25 = scalar_select %p22, %s23, %s24
    %p28 = pneg %p22
    %p29 = scmp.eq.s32.totalorder %s13, 1
    %p30 = por %p28, %p29
    %p31 = scmp.ne.s32.totalorder %s23, %s26
    %p32 = scmp.eq.s32.totalorder %s13, 0
    %p33 = por %p31, %p32
    %p34 = scmp.ne.s32.totalorder %s23, %s26
    %p35 = scmp.eq.s32.totalorder %s18, 1
    %p36 = por %p34, %p35
    %p37 = scmp.ne.s32.totalorder %s26, %s27
    %p38 = scmp.eq.s32.totalorder %s18, 0
    %p39 = por %p37, %p38
    %p40 = scmp.ne.s32.totalorder %s26, %s27
    %p41 = scmp.eq.s32.totalorder %s19, 1
    %p42 = por %p40, %p41
    %p44 = scmp.ne.s32.totalorder %s27, %s43
    %p45 = scmp.eq.s32.totalorder %s19, 0
    %p46 = por %p44, %p45
    %s48 = sadd.s32 %s47, 1
    %p51 = scmp.eq.s32.totalorder %s13, 1
    %p52 = scmp.ne.s32.totalorder %s47, %s49
    %p53 = scmp.eq.s32.totalorder %s13, 0
    %p54 = por %p52, %p53
    %p55 = scmp.ne.s32.totalorder %s47, %s49
    %p56 = scmp.eq.s32.totalorder %s18, 1
    %p57 = por %p55, %p56
    %p58 = scmp.ne.s32.totalorder %s49, %s50
    %p59 = scmp.eq.s32.totalorder %s18, 0
    %p60 = por %p58, %p59
    %p61 = scmp.ne.s32.totalorder %s49, %s50
    %p62 = scmp.eq.s32.totalorder %s19, 1
    %p63 = por %p61, %p62
    %p65 = scmp.ne.s32.totalorder %s50, %s64
    %p66 = scmp.eq.s32.totalorder %s19, 0
    %p67 = por %p65, %p66
    %s69 = sadd.s32 %s68, 1
    %p72 = scmp.eq.s32.totalorder %s13, 1
    %p73 = scmp.ne.s32.totalorder %s68, %s70
    %p74 = scmp.eq.s32.totalorder %s13, 0
    %p75 = por %p73, %p74
    %p76 = scmp.ne.s32.totalorder %s68, %s70
    %p77 = scmp.eq.s32.totalorder %s18, 1
    %p78 = por %p76, %p77
    %p79 = scmp.ne.s32.totalorder %s70, %s71
    %p80 = scmp.eq.s32.totalorder %s18, 0
    %p81 = por %p79, %p80
    %p82 = scmp.ne.s32.totalorder %s70, %s71
    %p83 = scmp.eq.s32.totalorder %s19, 1
    %p84 = por %p82, %p83
    %p86 = scmp.ne.s32.totalorder %s71, %s85
    %p87 = scmp.eq.s32.totalorder %s19, 0
    %p88 = por %p86, %p87
    %s90 = sadd.s32 %s89, 1
    %p93 = scmp.eq.s32.totalorder %s13, 1
    %p94 = scmp.ne.s32.totalorder %s89, %s91
    %p95 = scmp.eq.s32.totalorder %s13, 0
    %p96 = por %p94, %p95
    %p97 = scmp.ne.s32.totalorder %s89, %s91
    %p98 = scmp.eq.s32.totalorder %s18, 1
    %p99 = por %p97, %p98
    %p100 = scmp.ne.s32.totalorder %s91, %s92
    %p101 = scmp.eq.s32.totalorder %s18, 0
    %p102 = por %p100, %p101
    %p103 = scmp.ne.s32.totalorder %s91, %s92
    %p104 = scmp.eq.s32.totalorder %s19, 1
    %p105 = por %p103, %p104
    %p107 = scmp.ne.s32.totalorder %s92, %s106
    %p108 = scmp.eq.s32.totalorder %s19, 0
    %p109 = por %p107, %p108
    %s111 = sadd.s32 %s110, 1
    %p114 = scmp.eq.s32.totalorder %s13, 1
    %p115 = scmp.ne.s32.totalorder %s110, %s112
    %p116 = scmp.eq.s32.totalorder %s13, 0
    %p117 = por %p115, %p116
    %p118 = scmp.ne.s32.totalorder %s110, %s112
    %p119 = scmp.eq.s32.totalorder %s18, 1
    %p120 = por %p118, %p119
    %p121 = scmp.ne.s32.totalorder %s112, %s113
    %p122 = scmp.eq.s32.totalorder %s18, 0
    %p123 = por %p121, %p122
    %p124 = scmp.ne.s32.totalorder %s112, %s113
    %p125 = scmp.eq.s32.totalorder %s19, 1
    %p126 = por %p124, %p125
    %p128 = scmp.ne.s32.totalorder %s113, %s127
    %p129 = scmp.eq.s32.totalorder %s19, 0
    %p130 = por %p128, %p129
    %s132 = sadd.s32 %s131, 1
    %p135 = scmp.eq.s32.totalorder %s13, 1
    %p136 = scmp.ne.s32.totalorder %s131, %s133
    %p137 = scmp.eq.s32.totalorder %s13, 0
    %p138 = por %p136, %p137
    %p139 = scmp.ne.s32.totalorder %s131, %s133
    %p140 = scmp.eq.s32.totalorder %s18, 1
    %p141 = por %p139, %p140
    %p142 = scmp.ne.s32.totalorder %s133, %s134
    %p143 = scmp.eq.s32.totalorder %s18, 0
    %p144 = por %p142, %p143
    %p145 = scmp.ne.s32.totalorder %s133, %s134
    %p146 = scmp.eq.s32.totalorder %s19, 1
    %p147 = por %p145, %p146
    %p149 = scmp.ne.s32.totalorder %s134, %s148
    %p150 = scmp.eq.s32.totalorder %s19, 0
    %p151 = por %p149, %p150
    %s153 = sadd.s32 %s152, 1
    %p156 = scmp.eq.s32.totalorder %s13, 1
    %p157 = scmp.ne.s32.totalorder %s152, %s154
    %p158 = scmp.eq.s32.totalorder %s13, 0
    %p159 = por %p157, %p158
    %p160 = scmp.ne.s32.totalorder %s152, %s154
    %p161 = scmp.eq.s32.totalorder %s18, 1
    %p162 = por %p160, %p161
    %p163 = scmp.ne.s32.totalorder %s154, %s155
    %p164 = scmp.eq.s32.totalorder %s18, 0
    %p165 = por %p163, %p164
    %p166 = scmp.ne.s32.totalorder %s154, %s155
    %p167 = scmp.eq.s32.totalorder %s19, 1
    %p168 = por %p166, %p167
    %p170 = scmp.ne.s32.totalorder %s155, %s169
    %p171 = scmp.eq.s32.totalorder %s19, 0
    %p172 = por %p170, %p171
    %s173 = ssub.s32 %s13, %s20
    %p174 = scmp.eq.s32.totalorder %s173, 0
    %s176 = sadd.s32 %s175, 1
    %s177 = scalar_select %p174, %s175, %s176
    %p180 = pneg %p174
    %p181 = scmp.eq.s32.totalorder %s13, 1
    %p182 = por %p180, %p181
    %p183 = scmp.ne.s32.totalorder %s175, %s178
    %p184 = scmp.eq.s32.totalorder %s13, 0
    %p185 = por %p183, %p184
    %p186 = scmp.ne.s32.totalorder %s175, %s178
    %p187 = scmp.eq.s32.totalorder %s18, 1
    %p188 = por %p186, %p187
    %p189 = scmp.ne.s32.totalorder %s178, %s179
    %p190 = scmp.eq.s32.totalorder %s18, 0
    %p191 = por %p189, %p190
    %p192 = scmp.ne.s32.totalorder %s178, %s179
    %p193 = scmp.eq.s32.totalorder %s19, 1
    %p194 = por %p192, %p193
    %p196 = scmp.ne.s32.totalorder %s179, %s195
    %p197 = scmp.eq.s32.totalorder %s19, 0
    %p198 = por %p196, %p197
    %p199 = scmp.le.s32.totalorder 1, %s13
    %p200 = scmp.lt.s32.totalorder %s13, 3
    %p201 = pnand %p199, %p200
    %p202 = pneg %p201
    // Predicated region
    $region9: #{tpu_custom_call.1} parent=5 // pred_check
      _
    $region10: #{tpu_custom_call.1} parent=5 // pred_check_branch
      %204 = sbr.rel (%p201) target = $region12
    $region11: #{tpu_custom_call.1} parent=5 // pred_region
      %s205 = ssub.s32 %s13, 1
      // Predicated region
      $region13: #{tpu_custom_call.1} parent=11 // pred_check
        %p206 = pneg %p60
      $region14: #{tpu_custom_call.1} parent=11 // pred_check_branch
        %208 = sbr.rel (%p206) target = $region16
      $region15: #{tpu_custom_call.1} parent=11 // pred_region
        _
      $region16: #{tpu_custom_call.1} parent=11 // pred_fallthru
        _
      // Predicated region
      $region17: #{tpu_custom_call.1} parent=11 // pred_check
        %p209 = pneg %p81
      $region18: #{tpu_custom_call.1} parent=11 // pred_check_branch
        %211 = sbr.rel (%p209) target = $region20
      $region19: #{tpu_custom_call.1} parent=11 // pred_region
        _
      $region20: #{tpu_custom_call.1} parent=11 // pred_fallthru
        _
      // Predicated region
      $region21: #{tpu_custom_call.1} parent=11 // pred_check
        %p212 = pneg %p102
      $region22: #{tpu_custom_call.1} parent=11 // pred_check_branch
        %214 = sbr.rel (%p212) target = $region24
      $region23: #{tpu_custom_call.1} parent=11 // pred_region
        _
      $region24: #{tpu_custom_call.1} parent=11 // pred_fallthru
        _
      // Predicated region
      $region25: #{tpu_custom_call.1} parent=11 // pred_check
        %p215 = pneg %p123
      $region26: #{tpu_custom_call.1} parent=11 // pred_check_branch
        %217 = sbr.rel (%p215) target = $region28
      $region27: #{tpu_custom_call.1} parent=11 // pred_region
        _
      $region28: #{tpu_custom_call.1} parent=11 // pred_fallthru
        _
      // Predicated region
      $region29: #{tpu_custom_call.1} parent=11 // pred_check
        %p218 = pneg %p144
      $region30: #{tpu_custom_call.1} parent=11 // pred_check_branch
        %220 = sbr.rel (%p218) target = $region32
      $region31: #{tpu_custom_call.1} parent=11 // pred_region
        _
      $region32: #{tpu_custom_call.1} parent=11 // pred_fallthru
        _
      // Predicated region
      $region33: #{tpu_custom_call.1} parent=11 // pred_check
        %p221 = pneg %p165
      $region34: #{tpu_custom_call.1} parent=11 // pred_check_branch
        %223 = sbr.rel (%p221) target = $region36
      $region35: #{tpu_custom_call.1} parent=11 // pred_region
        _
      $region36: #{tpu_custom_call.1} parent=11 // pred_fallthru
        _
    $region12: #{tpu_custom_call.1} parent=5 // pred_fallthru
      _
    %p224 = scmp.lt.s32.totalorder %s13, 2
    // Predicated region
    $region37: #{tpu_custom_call.1} parent=5 // pred_check
      %p225 = pneg %p224
    $region38: #{tpu_custom_call.1} parent=5 // pred_check_branch
      %227 = sbr.rel (%p225) target = $region40
    $region39: #{tpu_custom_call.1} parent=5 // pred_region
      // Predicated region
      $region41: #{tpu_custom_call.1} parent=39 // pred_check
        %p228 = pneg %p33
      $region42: #{tpu_custom_call.1} parent=39 // pred_check_branch
        %230 = sbr.rel (%p228) target = $region44
      $region43: #{tpu_custom_call.1} parent=39 // pred_region
        %p231 = scmp.lt.s32.totalorder %s13, 1
        %s232 = scalar_select %p231, %s13, 1
        %s233 = smul.addr %s232, 32
        %s234 = smul.addr %s233, 8
        %s235 = scalar_lea.vmem %s0, %s234
      $region44: #{tpu_custom_call.1} parent=39 // pred_fallthru
        _
    $region40: #{tpu_custom_call.1} parent=5 // pred_fallthru
      _
    %p236 = scmp.le.s32.totalorder 1, %s13
    %p237 = scmp.lt.s32.totalorder %s13, 3
    %p238 = pnand %p236, %p237
    %p239 = pneg %p238
    // Predicated region
    $region45: #{tpu_custom_call.1} parent=5 // pred_check
      _
    $region46: #{tpu_custom_call.1} parent=5 // pred_check_branch
      %241 = sbr.rel (%p238) target = $region48
    $region47: #{tpu_custom_call.1} parent=5 // pred_region
      %s242 = ssub.s32 %s13, 1
      %p243 = scmp.lt.s32.totalorder %s18, 1
      %s244 = scalar_select %p243, %s18, 1
      %s245 = smul.addr %s244, 32
      %s246 = smul.addr %s245, 8
      %s247 = scalar_lea.vmem %s0, %s246
      %p248 = pneg %p39
      %p249 = pneg %p36
      %p250 = pneg %p60
      %p251 = pneg %p57
      %p252 = pneg %p81
      %p253 = pneg %p78
      %p254 = pneg %p102
      %p255 = pneg %p99
      %p256 = pneg %p123
      %p257 = pneg %p120
      %p258 = pneg %p144
      %p259 = pneg %p141
      %p260 = pneg %p165
      %p261 = pneg %p162
      %p262 = pneg %p191
      %p263 = pneg %p188
      %p264 = scmp.lt.s32.totalorder %s18, 1
      %s265 = scalar_select %p264, %s18, 1
      %s266 = smul.addr %s265, 32
      %s267 = smul.addr %s266, 8
      %s268 = scalar_lea.vmem %s7, %s267
      %p269 = scmp.lt.s32.totalorder %s18, 1
      %s270 = scalar_select %p269, %s18, 1
      %s271 = smul.addr %s270, 32
      %s272 = smul.addr %s271, 8
      %s273 = scalar_lea.vmem %s0, %s272
      %p274 = scmp.lt.s32.totalorder %s18, 1
      %s275 = scalar_select %p274, %s18, 1
      %s276 = smul.addr %s275, 32
      %s277 = smul.addr %s276, 8
      %s278 = scalar_lea.vmem %s7, %s277
      %vm279 = vcmask 523264
      %280 = vst.msk [vmem:[#allocation2] sm:$0xff] %vm279, 0.0
      %281 = vst.msk [vmem:[#allocation2 + $0x8] sm:$0xff] %vm279, 0.0
      %282 = vst.msk [vmem:[#allocation2 + $0x10] sm:$0xff] %vm279, 0.0
      %s283 = scalar_lea.vmem [#allocation2], 408
      %284 = vst.msk [vmem:[%s283] sm:$0xff] %vm279, 0.0
      %285 = vst.msk [vmem:[%s283 + $0x8] sm:$0xff] %vm279, 0.0
      %286 = vst.msk [vmem:[%s283 + $0x10] sm:$0xff] %vm279, 0.0
      %vm287 = vcmask 516096
      %288 = vst.msk [vmem:[#allocation2] sm:$0x1] %vm287, 0.0
      %289 = vst.msk [vmem:[#allocation2 + $0x18] sm:$0x1] %vm287, 0.0
      %290 = vst.msk [vmem:[#allocation2 + $0x30] sm:$0x1] %vm287, 0.0
      %291 = vst.msk [vmem:[#allocation2 + $0x48] sm:$0x1] %vm287, 0.0
      %292 = vst.msk [vmem:[#allocation2 + $0x60] sm:$0x1] %vm287, 0.0
      %293 = vst.msk [vmem:[#allocation2 + $0x78] sm:$0x1] %vm287, 0.0
      %294 = vst.msk [vmem:[#allocation2 + $0x90] sm:$0x1] %vm287, 0.0
      %295 = vst.msk [vmem:[#allocation2 + $0xa8] sm:$0x1] %vm287, 0.0
      %296 = vst.msk [vmem:[#allocation2 + $0xc0] sm:$0x1] %vm287, 0.0
      %297 = vst.msk [vmem:[#allocation2 + $0xd8] sm:$0x1] %vm287, 0.0
      %298 = vst.msk [vmem:[#allocation2 + $0xf0] sm:$0x1] %vm287, 0.0
      %299 = vst.msk [vmem:[#allocation2 + $0x108] sm:$0x1] %vm287, 0.0
      %300 = vst.msk [vmem:[#allocation2 + $0x120] sm:$0x1] %vm287, 0.0
      %301 = vst.msk [vmem:[#allocation2 + $0x138] sm:$0x1] %vm287, 0.0
      %302 = vst.msk [vmem:[#allocation2 + $0x150] sm:$0x1] %vm287, 0.0
      %303 = vst.msk [vmem:[#allocation2 + $0x168] sm:$0x1] %vm287, 0.0
      %304 = vst.msk [vmem:[#allocation2 + $0x180] sm:$0x1] %vm287, 0.0
      %305 = vst.msk [vmem:[#allocation2 + $0x198] sm:$0x1] %vm287, 0.0
      %306 = vst.msk [vmem:[#allocation2 + $0x11] sm:$0x1] %vm287, 0.0
      %307 = vst.msk [vmem:[#allocation2 + $0x29] sm:$0x1] %vm287, 0.0
      %308 = vst.msk [vmem:[#allocation2 + $0x41] sm:$0x1] %vm287, 0.0
      %309 = vst.msk [vmem:[#allocation2 + $0x59] sm:$0x1] %vm287, 0.0
      %310 = vst.msk [vmem:[#allocation2 + $0x71] sm:$0x1] %vm287, 0.0
      %311 = vst.msk [vmem:[#allocation2 + $0x89] sm:$0x1] %vm287, 0.0
      %312 = vst.msk [vmem:[#allocation2 + $0xa1] sm:$0x1] %vm287, 0.0
      %313 = vst.msk [vmem:[#allocation2 + $0xb9] sm:$0x1] %vm287, 0.0
      %314 = vst.msk [vmem:[#allocation2 + $0xd1] sm:$0x1] %vm287, 0.0
      %315 = vst.msk [vmem:[#allocation2 + $0xe9] sm:$0x1] %vm287, 0.0
      %316 = vst.msk [vmem:[#allocation2 + $0x101] sm:$0x1] %vm287, 0.0
      %317 = vst.msk [vmem:[#allocation2 + $0x119] sm:$0x1] %vm287, 0.0
      %318 = vst.msk [vmem:[#allocation2 + $0x131] sm:$0x1] %vm287, 0.0
      %319 = vst.msk [vmem:[#allocation2 + $0x149] sm:$0x1] %vm287, 0.0
      %320 = vst.msk [vmem:[#allocation2 + $0x161] sm:$0x1] %vm287, 0.0
      %321 = vst.msk [vmem:[#allocation2 + $0x179] sm:$0x1] %vm287, 0.0
      %322 = vst.msk [vmem:[#allocation2 + $0x191] sm:$0x1] %vm287, 0.0
      %323 = vst.msk [vmem:[#allocation2 + $0x1a9] sm:$0x1] %vm287, 0.0
      %v324 = vld [vmem:[%s273] sm:$0xff]
      %v325 = vld [vmem:[%s273 + $0x8] sm:$0xff]
      %v326 = vld [vmem:[%s273 + $0x10] sm:$0xff]
      %v327 = vld [vmem:[%s273 + $0x18] sm:$0xff]
      %v328 = vld [vmem:[%s273 + $0x20] sm:$0xff]
      %v329 = vld [vmem:[%s273 + $0x28] sm:$0xff]
      %v330 = vld [vmem:[%s273 + $0x30] sm:$0xff]
      %v331 = vld [vmem:[%s273 + $0x38] sm:$0xff]
      %v332 = vld [vmem:[%s273 + $0x40] sm:$0xff]
      %v333 = vld [vmem:[%s273 + $0x48] sm:$0xff]
      %v334 = vld [vmem:[%s273 + $0x50] sm:$0xff]
      %v335 = vld [vmem:[%s273 + $0x58] sm:$0xff]
      %v336 = vld [vmem:[%s273 + $0x60] sm:$0xff]
      %v337 = vld [vmem:[%s273 + $0x68] sm:$0xff]
      %v338 = vld [vmem:[%s273 + $0x70] sm:$0xff]
      %v339 = vld [vmem:[%s273 + $0x78] sm:$0xff]
      %v340 = vld [vmem:[%s273 + $0x80] sm:$0xff]
      %v341 = vld [vmem:[%s273 + $0x88] sm:$0xff]
      %v342 = vld [vmem:[%s273 + $0x90] sm:$0xff]
      %v343 = vld [vmem:[%s273 + $0x98] sm:$0xff]
      %v344 = vld [vmem:[%s273 + $0xa0] sm:$0xff]
      %v345 = vld [vmem:[%s273 + $0xa8] sm:$0xff]
      %v346 = vld [vmem:[%s273 + $0xb0] sm:$0xff]
      %v347 = vld [vmem:[%s273 + $0xb8] sm:$0xff]
      %v348 = vld [vmem:[%s273 + $0xc0] sm:$0xff]
      %v349 = vld [vmem:[%s273 + $0xc8] sm:$0xff]
      %v350 = vld [vmem:[%s273 + $0xd0] sm:$0xff]
      %v351 = vld [vmem:[%s273 + $0xd8] sm:$0xff]
      %v352 = vld [vmem:[%s273 + $0xe0] sm:$0xff]
      %v353 = vld [vmem:[%s273 + $0xe8] sm:$0xff]
      %v354 = vld [vmem:[%s273 + $0xf0] sm:$0xff]
      %v355 = vld [vmem:[%s273 + $0xf8] sm:$0xff]
      %v356 = vld [vmem:[%s1] sm:$0xff]
      %v357 = vld [vmem:[%s1 + $0x8] sm:$0xff]
      %v358 = vld [vmem:[%s1 + $0x10] sm:$0xff]
      %v359 = vld [vmem:[%s1 + $0x18] sm:$0xff]
      %v360 = vld [vmem:[%s2] sm:$0x1]
      %v362 = vlaneseq
      %v363 = vshrl.u32 %v362, 7
      %v364 = vsub.s32 0, %v363
      %v365 = vrot.slane %v360, %v364
      %vm367 = vcmask 261120
      %v369 = vsel %vm367, %v324, 0
      %v372 = vsel %vm367, %v325, 0
      %v375 = vsel %vm367, %v326, 0
      %v378 = vsel %vm367, %v327, 0
      %v381 = vsel %vm367, %v328, 0
      %v384 = vsel %vm367, %v329, 0
      %v387 = vsel %vm367, %v330, 0
      %v390 = vsel %vm367, %v331, 0
      %v393 = vsel %vm367, %v332, 0
      %v396 = vsel %vm367, %v333, 0
      %v399 = vsel %vm367, %v334, 0
      %v402 = vsel %vm367, %v335, 0
      %v405 = vsel %vm367, %v336, 0
      %v408 = vsel %vm367, %v337, 0
      %v411 = vsel %vm367, %v338, 0
      %v414 = vsel %vm367, %v339, 0
      %v417 = vsel %vm367, %v340, 0
      %v420 = vsel %vm367, %v341, 0
      %v423 = vsel %vm367, %v342, 0
      %v426 = vsel %vm367, %v343, 0
      %v429 = vsel %vm367, %v344, 0
      %v432 = vsel %vm367, %v345, 0
      %v435 = vsel %vm367, %v346, 0
      %v438 = vsel %vm367, %v347, 0
      %v441 = vsel %vm367, %v348, 0
      %v444 = vsel %vm367, %v349, 0
      %v447 = vsel %vm367, %v350, 0
      %v450 = vsel %vm367, %v351, 0
      %v453 = vsel %vm367, %v352, 0
      %v456 = vsel %vm367, %v353, 0
      %v459 = vsel %vm367, %v354, 0
      %v462 = vsel %vm367, %v355, 0
      %464 = vmatprep.subr.mxu0 0.0
      %465 = vmatpush1.msra.mxu0 %v356
      %466 = vmatprep.subr.mxu0 0.0
      %467 = vmatpush1.msra.mxu0 %v357
      %468 = vmatprep.subr.mxu0 0.0
      %469 = vmatpush1.msra.mxu0 %v358
      %470 = vmatprep.subr.mxu0 0.0
      %471 = vmatpush1.msra.mxu0 %v359
      %472 = vmatprep.subr.mxu0 0.0
      %473 = vmatpush1.msra.mxu0 0.0
      %474 = vmatprep.subr.mxu0 0.0
      %475 = vmatpush1.msra.mxu0 0.0
      %476 = vmatprep.subr.mxu0 0.0
      %477 = vmatpush1.msra.mxu0 0.0
      %478 = vmatprep.subr.mxu0 0.0
      %479 = vmatpush1.msra.mxu0 0.0
      %480 = vmatprep.subr.mxu0 0.0
      %481 = vmatpush1.msra.mxu0 0.0
      %482 = vmatprep.subr.mxu0 0.0
      %483 = vmatpush1.msra.mxu0 0.0
      %484 = vmatprep.subr.mxu0 0.0
      %485 = vmatpush1.msra.mxu0 0.0
      %486 = vmatprep.subr.mxu0 0.0
      %487 = vmatpush1.msra.mxu0 0.0
      %488 = vmatprep.subr.mxu0 0.0
      %489 = vmatpush1.msra.mxu0 0.0
      %490 = vmatprep.subr.mxu0 0.0
      %491 = vmatpush1.msra.mxu0 0.0
      %492 = vmatprep.subr.mxu0 0.0
      %493 = vmatpush1.msra.mxu0 0.0
      %494 = vmatprep.subr.mxu0 0.0
      %495 = vmatpush1.msra.mxu0 0.0
      %496 = vmatprep.subr.mxu0 0.0
      %497 = vmatpush1.msra.mxu0 0.0
      %498 = vmatprep.subr.mxu0 0.0
      %499 = vmatpush1.msra.mxu0 0.0
      %500 = vmatprep.subr.mxu0 0.0
      %501 = vmatpush1.msra.mxu0 0.0
      %502 = vmatprep.subr.mxu0 0.0
      %503 = vmatpush1.msra.mxu0 0.0
      %504 = vmatprep.subr.mxu0 0.0
      %505 = vmatpush1.msra.mxu0 0.0
      %506 = vmatprep.subr.mxu0 0.0
      %507 = vmatpush1.msra.mxu0 0.0
      %508 = vmatprep.subr.mxu0 0.0
      %509 = vmatpush1.msra.mxu0 0.0
      %510 = vmatprep.subr.mxu0 0.0
      %511 = vmatpush1.msra.mxu0 0.0
      %512 = vmatprep.subr.mxu0 0.0
      %513 = vmatpush1.msra.mxu0 0.0
      %514 = vmatprep.subr.mxu0 0.0
      %515 = vmatpush1.msra.mxu0 0.0
      %516 = vmatprep.subr.mxu0 0.0
      %517 = vmatpush1.msra.mxu0 0.0
      %518 = vmatprep.subr.mxu0 0.0
      %519 = vmatpush1.msra.mxu0 0.0
      %520 = vmatprep.subr.mxu0 0.0
      %521 = vmatpush1.msra.mxu0 0.0
      %522 = vmatprep.subr.mxu0 0.0
      %523 = vmatpush1.msra.mxu0 0.0
      %524 = vmatprep.subr.mxu0 0.0
      %525 = vmatpush1.msra.mxu0 0.0
      %526 = vmatprep.subr.mxu0 0.0
      %527 = vmatpush1.msra.mxu0 0.0
      %528 = vmatprep.mubr.f32.mxu0 0.0
      %529 = vmatmul.mubr.f32.gmra.mrb[0].mxu0 %v369
      %v530 = vpop.f32.mrb[0].mxu0
      %v531 = vadd.f32 %v365, %v530
      %v532 = vpop.f32.mrb[0].mxu0
      %533 = vmatprep.mubr.f32.mxu0 0.0
      %534 = vmatmul.mubr.f32.gmra.mrb[0].mxu0 %v372
      %v535 = vpop.f32.mrb[0].mxu0
      %v536 = vadd.f32 %v365, %v535
      %v537 = vpop.f32.mrb[0].mxu0
      %538 = vmatprep.mubr.f32.mxu0 0.0
      %539 = vmatmul.mubr.f32.gmra.mrb[0].mxu0 %v375
      %v540 = vpop.f32.mrb[0].mxu0
      %v541 = vadd.f32 %v365, %v540
      %v542 = vpop.f32.mrb[0].mxu0
      %543 = vmatprep.mubr.f32.mxu0 0.0
      %544 = vmatmul.mubr.f32.gmra.mrb[0].mxu0 %v378
      %v545 = vpop.f32.mrb[0].mxu0
      %v546 = vadd.f32 %v365, %v545
      %v547 = vpop.f32.mrb[0].mxu0
      %548 = vmatprep.mubr.f32.mxu0 0.0
      %549 = vmatmul.mubr.f32.gmra.mrb[0].mxu0 %v381
      %v550 = vpop.f32.mrb[0].mxu0
      %v551 = vadd.f32 %v365, %v550
      %v552 = vpop.f32.mrb[0].mxu0
      %553 = vmatprep.mubr.f32.mxu0 0.0
      %554 = vmatmul.mubr.f32.gmra.mrb[0].mxu0 %v384
      %v555 = vpop.f32.mrb[0].mxu0
      %v556 = vadd.f32 %v365, %v555
      %v557 = vpop.f32.mrb[0].mxu0
      %558 = vmatprep.mubr.f32.mxu0 0.0
      %559 = vmatmul.mubr.f32.gmra.mrb[0].mxu0 %v387
      %v560 = vpop.f32.mrb[0].mxu0
      %v561 = vadd.f32 %v365, %v560
      %v562 = vpop.f32.mrb[0].mxu0
      %563 = vmatprep.mubr.f32.mxu0 0.0
      %564 = vmatmul.mubr.f32.gmra.mrb[0].mxu0 %v390
      %v565 = vpop.f32.mrb[0].mxu0
      %v566 = vadd.f32 %v365, %v565
      %v567 = vpop.f32.mrb[0].mxu0
      %568 = vmatprep.mubr.f32.mxu0 0.0
      %569 = vmatmul.mubr.f32.gmra.mrb[0].mxu0 %v393
      %v570 = vpop.f32.mrb[0].mxu0
      %v571 = vadd.f32 %v365, %v570
      %v572 = vpop.f32.mrb[0].mxu0
      %573 = vmatprep.mubr.f32.mxu0 0.0
      %574 = vmatmul.mubr.f32.gmra.mrb[0].mxu0 %v396
      %v575 = vpop.f32.mrb[0].mxu0
      %v576 = vadd.f32 %v365, %v575
      %v577 = vpop.f32.mrb[0].mxu0
      %578 = vmatprep.mubr.f32.mxu0 0.0
      %579 = vmatmul.mubr.f32.gmra.mrb[0].mxu0 %v399
      %v580 = vpop.f32.mrb[0].mxu0
      %v581 = vadd.f32 %v365, %v580
      %v582 = vpop.f32.mrb[0].mxu0
      %583 = vmatprep.mubr.f32.mxu0 0.0
      %584 = vmatmul.mubr.f32.gmra.mrb[0].mxu0 %v402
      %v585 = vpop.f32.mrb[0].mxu0
      %v586 = vadd.f32 %v365, %v585
      %v587 = vpop.f32.mrb[0].mxu0
      %588 = vmatprep.mubr.f32.mxu0 0.0
      %589 = vmatmul.mubr.f32.gmra.mrb[0].mxu0 %v405
      %v590 = vpop.f32.mrb[0].mxu0
      %v591 = vadd.f32 %v365, %v590
      %v592 = vpop.f32.mrb[0].mxu0
      %593 = vmatprep.mubr.f32.mxu0 0.0
      %594 = vmatmul.mubr.f32.gmra.mrb[0].mxu0 %v408
      %v595 = vpop.f32.mrb[0].mxu0
      %v596 = vadd.f32 %v365, %v595
      %v597 = vpop.f32.mrb[0].mxu0
      %598 = vmatprep.mubr.f32.mxu0 0.0
      %599 = vmatmul.mubr.f32.gmra.mrb[0].mxu0 %v411
      %v600 = vpop.f32.mrb[0].mxu0
      %v601 = vadd.f32 %v365, %v600
      %v602 = vpop.f32.mrb[0].mxu0
      %603 = vmatprep.mubr.f32.mxu0 0.0
      %604 = vmatmul.mubr.f32.gmra.mrb[0].mxu0 %v414
      %v605 = vpop.f32.mrb[0].mxu0
      %v606 = vadd.f32 %v365, %v605
      %v607 = vpop.f32.mrb[0].mxu0
      %608 = vmatprep.mubr.f32.mxu0 0.0
      %609 = vmatmul.mubr.f32.gmra.mrb[0].mxu0 %v417
      %v610 = vpop.f32.mrb[0].mxu0
      %v611 = vadd.f32 %v365, %v610
      %v612 = vpop.f32.mrb[0].mxu0
      %613 = vmatprep.mubr.f32.mxu0 0.0
      %614 = vmatmul.mubr.f32.gmra.mrb[0].mxu0 %v420
      %v615 = vpop.f32.mrb[0].mxu0
      %v616 = vadd.f32 %v365, %v615
      %v617 = vpop.f32.mrb[0].mxu0
      %618 = vmatprep.mubr.f32.mxu0 0.0
      %619 = vmatmul.mubr.f32.gmra.mrb[0].mxu0 %v423
      %v620 = vpop.f32.mrb[0].mxu0
      %v621 = vadd.f32 %v365, %v620
      %v622 = vpop.f32.mrb[0].mxu0
      %623 = vmatprep.mubr.f32.mxu0 0.0
      %624 = vmatmul.mubr.f32.gmra.mrb[0].mxu0 %v426
      %v625 = vpop.f32.mrb[0].mxu0
      %v626 = vadd.f32 %v365, %v625
      %v627 = vpop.f32.mrb[0].mxu0
      %628 = vmatprep.mubr.f32.mxu0 0.0
      %629 = vmatmul.mubr.f32.gmra.mrb[0].mxu0 %v429
      %v630 = vpop.f32.mrb[0].mxu0
      %v631 = vadd.f32 %v365, %v630
      %v632 = vpop.f32.mrb[0].mxu0
      %633 = vmatprep.mubr.f32.mxu0 0.0
      %634 = vmatmul.mubr.f32.gmra.mrb[0].mxu0 %v432
      %v635 = vpop.f32.mrb[0].mxu0
      %v636 = vadd.f32 %v365, %v635
      %v637 = vpop.f32.mrb[0].mxu0
      %638 = vmatprep.mubr.f32.mxu0 0.0
      %639 = vmatmul.mubr.f32.gmra.mrb[0].mxu0 %v435
      %v640 = vpop.f32.mrb[0].mxu0
      %v641 = vadd.f32 %v365, %v640
      %v642 = vpop.f32.mrb[0].mxu0
      %643 = vmatprep.mubr.f32.mxu0 0.0
      %644 = vmatmul.mubr.f32.gmra.mrb[0].mxu0 %v438
      %v645 = vpop.f32.mrb[0].mxu0
      %v646 = vadd.f32 %v365, %v645
      %v647 = vpop.f32.mrb[0].mxu0
      %648 = vmatprep.mubr.f32.mxu0 0.0
      %649 = vmatmul.mubr.f32.gmra.mrb[0].mxu0 %v441
      %v650 = vpop.f32.mrb[0].mxu0
      %v651 = vadd.f32 %v365, %v650
      %v652 = vpop.f32.mrb[0].mxu0
      %653 = vmatprep.mubr.f32.mxu0 0.0
      %654 = vmatmul.mubr.f32.gmra.mrb[0].mxu0 %v444
      %v655 = vpop.f32.mrb[0].mxu0
      %v656 = vadd.f32 %v365, %v655
      %v657 = vpop.f32.mrb[0].mxu0
      %658 = vmatprep.mubr.f32.mxu0 0.0
      %659 = vmatmul.mubr.f32.gmra.mrb[0].mxu0 %v447
      %v660 = vpop.f32.mrb[0].mxu0
      %v661 = vadd.f32 %v365, %v660
      %v662 = vpop.f32.mrb[0].mxu0
      %663 = vmatprep.mubr.f32.mxu0 0.0
      %664 = vmatmul.mubr.f32.gmra.mrb[0].mxu0 %v450
      %v665 = vpop.f32.mrb[0].mxu0
      %v666 = vadd.f32 %v365, %v665
      %v667 = vpop.f32.mrb[0].mxu0
      %668 = vmatprep.mubr.f32.mxu0 0.0
      %669 = vmatmul.mubr.f32.gmra.mrb[0].mxu0 %v453
      %v670 = vpop.f32.mrb[0].mxu0
      %v671 = vadd.f32 %v365, %v670
      %v672 = vpop.f32.mrb[0].mxu0
      %673 = vmatprep.mubr.f32.mxu0 0.0
      %674 = vmatmul.mubr.f32.gmra.mrb[0].mxu0 %v456
      %v675 = vpop.f32.mrb[0].mxu0
      %v676 = vadd.f32 %v365, %v675
      %v677 = vpop.f32.mrb[0].mxu0
      %678 = vmatprep.mubr.f32.mxu0 0.0
      %679 = vmatmul.mubr.f32.gmra.mrb[0].mxu0 %v459
      %v680 = vpop.f32.mrb[0].mxu0
      %v681 = vadd.f32 %v365, %v680
      %v682 = vpop.f32.mrb[0].mxu0
      %683 = vmatprep.mubr.f32.mxu0 0.0
      %684 = vmatmul.mubr.f32.gmra.mrb[0].mxu0 %v462
      %v685 = vpop.f32.mrb[0].mxu0
      %v686 = vadd.f32 %v365, %v685
      %v687 = vpop.f32.mrb[0].mxu0
      %688 = vdwg.mxu0
      %v689 = vmax.f32 %v531, 0.0
      %v690 = vmax.f32 %v536, 0.0
      %v691 = vmax.f32 %v541, 0.0
      %v692 = vmax.f32 %v546, 0.0
      %v693 = vmax.f32 %v551, 0.0
      %v694 = vmax.f32 %v556, 0.0
      %v695 = vmax.f32 %v561, 0.0
      %v696 = vmax.f32 %v566, 0.0
      %v697 = vmax.f32 %v571, 0.0
      %v698 = vmax.f32 %v576, 0.0
      %v699 = vmax.f32 %v581, 0.0
      %v700 = vmax.f32 %v586, 0.0
      %v701 = vmax.f32 %v591, 0.0
      %v702 = vmax.f32 %v596, 0.0
      %v703 = vmax.f32 %v601, 0.0
      %v704 = vmax.f32 %v606, 0.0
      %v705 = vmax.f32 %v611, 0.0
      %v706 = vmax.f32 %v616, 0.0
      %v707 = vmax.f32 %v621, 0.0
      %v708 = vmax.f32 %v626, 0.0
      %v709 = vmax.f32 %v631, 0.0
      %v710 = vmax.f32 %v636, 0.0
      %v711 = vmax.f32 %v641, 0.0
      %v712 = vmax.f32 %v646, 0.0
      %v713 = vmax.f32 %v651, 0.0
      %v714 = vmax.f32 %v656, 0.0
      %v715 = vmax.f32 %v661, 0.0
      %v716 = vmax.f32 %v666, 0.0
      %v717 = vmax.f32 %v671, 0.0
      %v718 = vmax.f32 %v676, 0.0
      %v719 = vmax.f32 %v681, 0.0
      %v720 = vmax.f32 %v686, 0.0
      %s721 = scalar_lea.vmem [#allocation2], 24
      %722 = vst.msk [vmem:[%s721 + $0x1] sm:$0xff] %vm279, %v689
      %723 = vst.msk [vmem:[%s721 + $0x9] sm:$0xff] %vm279, %v690
      %724 = vst.msk [vmem:[%s721 + $0x19] sm:$0xff] %vm279, %v691
      %725 = vst.msk [vmem:[%s721 + $0x21] sm:$0xff] %vm279, %v692
      %726 = vst.msk [vmem:[%s721 + $0x31] sm:$0xff] %vm279, %v693
      %727 = vst.msk [vmem:[%s721 + $0x39] sm:$0xff] %vm279, %v694
      %728 = vst.msk [vmem:[%s721 + $0x49] sm:$0xff] %vm279, %v695
      %729 = vst.msk [vmem:[%s721 + $0x51] sm:$0xff] %vm279, %v696
      %730 = vst.msk [vmem:[%s721 + $0x61] sm:$0xff] %vm279, %v697
      %731 = vst.msk [vmem:[%s721 + $0x69] sm:$0xff] %vm279, %v698
      %732 = vst.msk [vmem:[%s721 + $0x79] sm:$0xff] %vm279, %v699
      %733 = vst.msk [vmem:[%s721 + $0x81] sm:$0xff] %vm279, %v700
      %734 = vst.msk [vmem:[%s721 + $0x91] sm:$0xff] %vm279, %v701
      %735 = vst.msk [vmem:[%s721 + $0x99] sm:$0xff] %vm279, %v702
      %736 = vst.msk [vmem:[%s721 + $0xa9] sm:$0xff] %vm279, %v703
      %737 = vst.msk [vmem:[%s721 + $0xb1] sm:$0xff] %vm279, %v704
      %738 = vst.msk [vmem:[%s721 + $0xc1] sm:$0xff] %vm279, %v705
      %739 = vst.msk [vmem:[%s721 + $0xc9] sm:$0xff] %vm279, %v706
      %740 = vst.msk [vmem:[%s721 + $0xd9] sm:$0xff] %vm279, %v707
      %741 = vst.msk [vmem:[%s721 + $0xe1] sm:$0xff] %vm279, %v708
      %742 = vst.msk [vmem:[%s721 + $0xf1] sm:$0xff] %vm279, %v709
      %743 = vst.msk [vmem:[%s721 + $0xf9] sm:$0xff] %vm279, %v710
      %744 = vst.msk [vmem:[%s721 + $0x109] sm:$0xff] %vm279, %v711
      %745 = vst.msk [vmem:[%s721 + $0x111] sm:$0xff] %vm279, %v712
      %746 = vst.msk [vmem:[%s721 + $0x121] sm:$0xff] %vm279, %v713
      %747 = vst.msk [vmem:[%s721 + $0x129] sm:$0xff] %vm279, %v714
      %748 = vst.msk [vmem:[%s721 + $0x139] sm:$0xff] %vm279, %v715
      %749 = vst.msk [vmem:[%s721 + $0x141] sm:$0xff] %vm279, %v716
      %750 = vst.msk [vmem:[%s721 + $0x151] sm:$0xff] %vm279, %v717
      %751 = vst.msk [vmem:[%s721 + $0x159] sm:$0xff] %vm279, %v718
      %752 = vst.msk [vmem:[%s721 + $0x169] sm:$0xff] %vm279, %v719
      %753 = vst.msk [vmem:[%s721 + $0x171] sm:$0xff] %vm279, %v720
      %v754 = vld [vmem:[#allocation2] sm:$0xff]
      %v755 = vld [vmem:[#allocation2 + $0x8] sm:$0xff]
      %v756 = vld [vmem:[#allocation2 + $0x18] sm:$0xff]
      %v757 = vld [vmem:[#allocation2 + $0x20] sm:$0xff]
      %v758 = vld [vmem:[#allocation2 + $0x30] sm:$0xff]
      %v759 = vld [vmem:[#allocation2 + $0x38] sm:$0xff]
      %v760 = vld [vmem:[#allocation2 + $0x48] sm:$0xff]
      %v761 = vld [vmem:[#allocation2 + $0x50] sm:$0xff]
      %v762 = vld [vmem:[#allocation2 + $0x60] sm:$0xff]
      %v763 = vld [vmem:[#allocation2 + $0x68] sm:$0xff]
      %v764 = vld [vmem:[#allocation2 + $0x78] sm:$0xff]
      %v765 = vld [vmem:[#allocation2 + $0x80] sm:$0xff]
      %v766 = vld [vmem:[#allocation2 + $0x90] sm:$0xff]
      %v767 = vld [vmem:[#allocation2 + $0x98] sm:$0xff]
      %v768 = vld [vmem:[#allocation2 + $0xa8] sm:$0xff]
      %v769 = vld [vmem:[#allocation2 + $0xb0] sm:$0xff]
      %v770 = vld [vmem:[#allocation2 + $0xc0] sm:$0xff]
      %v771 = vld [vmem:[#allocation2 + $0xc8] sm:$0xff]
      %v772 = vld [vmem:[#allocation2 + $0xd8] sm:$0xff]
      %v773 = vld [vmem:[#allocation2 + $0xe0] sm:$0xff]
      %v774 = vld [vmem:[#allocation2 + $0xf0] sm:$0xff]
      %v775 = vld [vmem:[#allocation2 + $0xf8] sm:$0xff]
      %v776 = vld [vmem:[#allocation2 + $0x108] sm:$0xff]
      %v777 = vld [vmem:[#allocation2 + $0x110] sm:$0xff]
      %v778 = vld [vmem:[#allocation2 + $0x120] sm:$0xff]
      %v779 = vld [vmem:[#allocation2 + $0x128] sm:$0xff]
      %v780 = vld [vmem:[#allocation2 + $0x138] sm:$0xff]
      %v781 = vld [vmem:[#allocation2 + $0x140] sm:$0xff]
      %v782 = vld [vmem:[#allocation2 + $0x150] sm:$0xff]
      %v783 = vld [vmem:[#allocation2 + $0x158] sm:$0xff]
      %v784 = vld [vmem:[#allocation2 + $0x168] sm:$0xff]
      %v785 = vld [vmem:[#allocation2 + $0x170] sm:$0xff]
      %786 = vst.msk [vmem:[#allocation3] sm:$0xff] %vm279, %v754
      %787 = vst.msk [vmem:[#allocation3 + $0x28] sm:$0xff] %vm279, %v755
      %788 = vst.msk [vmem:[#allocation3 + $0x50] sm:$0xff] %vm279, %v756
      %789 = vst.msk [vmem:[#allocation3 + $0x78] sm:$0xff] %vm279, %v757
      %790 = vst.msk [vmem:[#allocation3 + $0xa0] sm:$0xff] %vm279, %v758
      %791 = vst.msk [vmem:[#allocation3 + $0xc8] sm:$0xff] %vm279, %v759
      %792 = vst.msk [vmem:[#allocation3 + $0xf0] sm:$0xff] %vm279, %v760
      %793 = vst.msk [vmem:[#allocation3 + $0x118] sm:$0xff] %vm279, %v761
      %794 = vst.msk [vmem:[#allocation3 + $0x140] sm:$0xff] %vm279, %v762
      %795 = vst.msk [vmem:[#allocation3 + $0x168] sm:$0xff] %vm279, %v763
      %796 = vst.msk [vmem:[#allocation3 + $0x190] sm:$0xff] %vm279, %v764
      %797 = vst.msk [vmem:[#allocation3 + $0x1b8] sm:$0xff] %vm279, %v765
      %798 = vst.msk [vmem:[#allocation3 + $0x1e0] sm:$0xff] %vm279, %v766
      %799 = vst.msk [vmem:[#allocation3 + $0x208] sm:$0xff] %vm279, %v767
      %800 = vst.msk [vmem:[#allocation3 + $0x230] sm:$0xff] %vm279, %v768
      %801 = vst.msk [vmem:[#allocation3 + $0x258] sm:$0xff] %vm279, %v769
      %802 = vst.msk [vmem:[#allocation3 + $0x280] sm:$0xff] %vm279, %v770
      %803 = vst.msk [vmem:[#allocation3 + $0x2a8] sm:$0xff] %vm279, %v771
      %804 = vst.msk [vmem:[#allocation3 + $0x2d0] sm:$0xff] %vm279, %v772
      %805 = vst.msk [vmem:[#allocation3 + $0x2f8] sm:$0xff] %vm279, %v773
      %806 = vst.msk [vmem:[#allocation3 + $0x320] sm:$0xff] %vm279, %v774
      %807 = vst.msk [vmem:[#allocation3 + $0x348] sm:$0xff] %vm279, %v775
      %808 = vst.msk [vmem:[#allocation3 + $0x370] sm:$0xff] %vm279, %v776
      %809 = vst.msk [vmem:[#allocation3 + $0x398] sm:$0xff] %vm279, %v777
      %810 = vst.msk [vmem:[#allocation3 + $0x3c0] sm:$0xff] %vm279, %v778
      %811 = vst.msk [vmem:[#allocation3 + $0x3e8] sm:$0xff] %vm279, %v779
      %812 = vst.msk [vmem:[#allocation3 + $0x410] sm:$0xff] %vm279, %v780
      %813 = vst.msk [vmem:[#allocation3 + $0x438] sm:$0xff] %vm279, %v781
      %814 = vst.msk [vmem:[#allocation3 + $0x460] sm:$0xff] %vm279, %v782
      %815 = vst.msk [vmem:[#allocation3 + $0x488] sm:$0xff] %vm279, %v783
      %816 = vst.msk [vmem:[#allocation3 + $0x4b0] sm:$0xff] %vm279, %v784
      %817 = vst.msk [vmem:[#allocation3 + $0x4d8] sm:$0xff] %vm279, %v785
      %v818 = vld [vmem:[#allocation2 + $0x1] sm:$0xff]
      %v819 = vld [vmem:[#allocation2 + $0x9] sm:$0xff]
      %v820 = vld [vmem:[#allocation2 + $0x19] sm:$0xff]
      %v821 = vld [vmem:[#allocation2 + $0x21] sm:$0xff]
      %v822 = vld [vmem:[#allocation2 + $0x31] sm:$0xff]
      %v823 = vld [vmem:[#allocation2 + $0x39] sm:$0xff]
      %v824 = vld [vmem:[#allocation2 + $0x49] sm:$0xff]
      %v825 = vld [vmem:[#allocation2 + $0x51] sm:$0xff]
      %v826 = vld [vmem:[#allocation2 + $0x61] sm:$0xff]
      %v827 = vld [vmem:[#allocation2 + $0x69] sm:$0xff]
      %v828 = vld [vmem:[#allocation2 + $0x79] sm:$0xff]
      %v829 = vld [vmem:[#allocation2 + $0x81] sm:$0xff]
      %v830 = vld [vmem:[#allocation2 + $0x91] sm:$0xff]
      %v831 = vld [vmem:[#allocation2 + $0x99] sm:$0xff]
      %v832 = vld [vmem:[#allocation2 + $0xa9] sm:$0xff]
      %v833 = vld [vmem:[#allocation2 + $0xb1] sm:$0xff]
      %v834 = vld [vmem:[#allocation2 + $0xc1] sm:$0xff]
      %v835 = vld [vmem:[#allocation2 + $0xc9] sm:$0xff]
      %v836 = vld [vmem:[#allocation2 + $0xd9] sm:$0xff]
      %v837 = vld [vmem:[#allocation2 + $0xe1] sm:$0xff]
      %v838 = vld [vmem:[#allocation2 + $0xf1] sm:$0xff]
      %v839 = vld [vmem:[#allocation2 + $0xf9] sm:$0xff]
      %v840 = vld [vmem:[#allocation2 + $0x109] sm:$0xff]
      %v841 = vld [vmem:[#allocation2 + $0x111] sm:$0xff]
      %v842 = vld [vmem:[#allocation2 + $0x121] sm:$0xff]
      %v843 = vld [vmem:[#allocation2 + $0x129] sm:$0xff]
      %v844 = vld [vmem:[#allocation2 + $0x139] sm:$0xff]
      %v845 = vld [vmem:[#allocation2 + $0x141] sm:$0xff]
      %v846 = vld [vmem:[#allocation2 + $0x151] sm:$0xff]
      %v847 = vld [vmem:[#allocation2 + $0x159] sm:$0xff]
      %v848 = vld [vmem:[#allocation2 + $0x169] sm:$0xff]
      %v849 = vld [vmem:[#allocation2 + $0x171] sm:$0xff]
      %882 = vrot.lane.b32.xlu0 %v818, 64
      %v883 = vpop.permute.xlu0 %882
      %884 = vrot.lane.b32.xlu0 %v819, 64
      %v885 = vpop.permute.xlu0 %884
      %886 = vrot.lane.b32.xlu0 %v820, 64
      %v887 = vpop.permute.xlu0 %886
      %888 = vrot.lane.b32.xlu0 %v821, 64
      %v889 = vpop.permute.xlu0 %888
      %890 = vrot.lane.b32.xlu0 %v822, 64
      %v891 = vpop.permute.xlu0 %890
      %892 = vrot.lane.b32.xlu0 %v823, 64
      %v893 = vpop.permute.xlu0 %892
      %894 = vrot.lane.b32.xlu0 %v824, 64
      %v895 = vpop.permute.xlu0 %894
      %896 = vrot.lane.b32.xlu0 %v825, 64
      %v897 = vpop.permute.xlu0 %896
      %898 = vrot.lane.b32.xlu0 %v826, 64
      %v899 = vpop.permute.xlu0 %898
      %900 = vrot.lane.b32.xlu0 %v827, 64
      %v901 = vpop.permute.xlu0 %900
      %902 = vrot.lane.b32.xlu0 %v828, 64
      %v903 = vpop.permute.xlu0 %902
      %904 = vrot.lane.b32.xlu0 %v829, 64
      %v905 = vpop.permute.xlu0 %904
      %906 = vrot.lane.b32.xlu0 %v830, 64
      %v907 = vpop.permute.xlu0 %906
      %908 = vrot.lane.b32.xlu0 %v831, 64
      %v909 = vpop.permute.xlu0 %908
      %910 = vrot.lane.b32.xlu0 %v832, 64
      %v911 = vpop.permute.xlu0 %910
      %912 = vrot.lane.b32.xlu0 %v833, 64
      %v913 = vpop.permute.xlu0 %912
      %914 = vrot.lane.b32.xlu0 %v834, 64
      %v915 = vpop.permute.xlu0 %914
      %916 = vrot.lane.b32.xlu0 %v835, 64
      %v917 = vpop.permute.xlu0 %916
      %918 = vrot.lane.b32.xlu0 %v836, 64
      %v919 = vpop.permute.xlu0 %918
      %920 = vrot.lane.b32.xlu0 %v837, 64
      %v921 = vpop.permute.xlu0 %920
      %922 = vrot.lane.b32.xlu0 %v838, 64
      %v923 = vpop.permute.xlu0 %922
      %924 = vrot.lane.b32.xlu0 %v839, 64
      %v925 = vpop.permute.xlu0 %924
      %926 = vrot.lane.b32.xlu0 %v840, 64
      %v927 = vpop.permute.xlu0 %926
      %928 = vrot.lane.b32.xlu0 %v841, 64
      %v929 = vpop.permute.xlu0 %928
      %930 = vrot.lane.b32.xlu0 %v842, 64
      %v931 = vpop.permute.xlu0 %930
      %932 = vrot.lane.b32.xlu0 %v843, 64
      %v933 = vpop.permute.xlu0 %932
      %934 = vrot.lane.b32.xlu0 %v844, 64
      %v935 = vpop.permute.xlu0 %934
      %936 = vrot.lane.b32.xlu0 %v845, 64
      %v937 = vpop.permute.xlu0 %936
      %938 = vrot.lane.b32.xlu0 %v846, 64
      %v939 = vpop.permute.xlu0 %938
      %940 = vrot.lane.b32.xlu0 %v847, 64
      %v941 = vpop.permute.xlu0 %940
      %942 = vrot.lane.b32.xlu0 %v848, 64
      %v943 = vpop.permute.xlu0 %942
      %944 = vrot.lane.b32.xlu0 %v849, 64
      %v945 = vpop.permute.xlu0 %944
      %vm978 = vcmask 1048064
      %979 = vst.msk [vmem:[#allocation3] sm:$0xff] %vm978, %v883
      %980 = vst.msk [vmem:[#allocation3 + $0x28] sm:$0xff] %vm978, %v885
      %981 = vst.msk [vmem:[#allocation3 + $0x50] sm:$0xff] %vm978, %v887
      %982 = vst.msk [vmem:[#allocation3 + $0x78] sm:$0xff] %vm978, %v889
      %983 = vst.msk [vmem:[#allocation3 + $0xa0] sm:$0xff] %vm978, %v891
      %984 = vst.msk [vmem:[#allocation3 + $0xc8] sm:$0xff] %vm978, %v893
      %985 = vst.msk [vmem:[#allocation3 + $0xf0] sm:$0xff] %vm978, %v895
      %986 = vst.msk [vmem:[#allocation3 + $0x118] sm:$0xff] %vm978, %v897
      %987 = vst.msk [vmem:[#allocation3 + $0x140] sm:$0xff] %vm978, %v899
      %988 = vst.msk [vmem:[#allocation3 + $0x168] sm:$0xff] %vm978, %v901
      %989 = vst.msk [vmem:[#allocation3 + $0x190] sm:$0xff] %vm978, %v903
      %990 = vst.msk [vmem:[#allocation3 + $0x1b8] sm:$0xff] %vm978, %v905
      %991 = vst.msk [vmem:[#allocation3 + $0x1e0] sm:$0xff] %vm978, %v907
      %992 = vst.msk [vmem:[#allocation3 + $0x208] sm:$0xff] %vm978, %v909
      %993 = vst.msk [vmem:[#allocation3 + $0x230] sm:$0xff] %vm978, %v911
      %994 = vst.msk [vmem:[#allocation3 + $0x258] sm:$0xff] %vm978, %v913
      %995 = vst.msk [vmem:[#allocation3 + $0x280] sm:$0xff] %vm978, %v915
      %996 = vst.msk [vmem:[#allocation3 + $0x2a8] sm:$0xff] %vm978, %v917
      %997 = vst.msk [vmem:[#allocation3 + $0x2d0] sm:$0xff] %vm978, %v919
      %998 = vst.msk [vmem:[#allocation3 + $0x2f8] sm:$0xff] %vm978, %v921
      %999 = vst.msk [vmem:[#allocation3 + $0x320] sm:$0xff] %vm978, %v923
      %1000 = vst.msk [vmem:[#allocation3 + $0x348] sm:$0xff] %vm978, %v925
      %1001 = vst.msk [vmem:[#allocation3 + $0x370] sm:$0xff] %vm978, %v927
      %1002 = vst.msk [vmem:[#allocation3 + $0x398] sm:$0xff] %vm978, %v929
      %1003 = vst.msk [vmem:[#allocation3 + $0x3c0] sm:$0xff] %vm978, %v931
      %1004 = vst.msk [vmem:[#allocation3 + $0x3e8] sm:$0xff] %vm978, %v933
      %1005 = vst.msk [vmem:[#allocation3 + $0x410] sm:$0xff] %vm978, %v935
      %1006 = vst.msk [vmem:[#allocation3 + $0x438] sm:$0xff] %vm978, %v937
      %1007 = vst.msk [vmem:[#allocation3 + $0x460] sm:$0xff] %vm978, %v939
      %1008 = vst.msk [vmem:[#allocation3 + $0x488] sm:$0xff] %vm978, %v941
      %1009 = vst.msk [vmem:[#allocation3 + $0x4b0] sm:$0xff] %vm978, %v943
      %1010 = vst.msk [vmem:[#allocation3 + $0x4d8] sm:$0xff] %vm978, %v945
      %v1011 = vld [vmem:[#allocation2 + $0x2] sm:$0xff]
      %v1012 = vld [vmem:[#allocation2 + $0xa] sm:$0xff]
      %v1013 = vld [vmem:[#allocation2 + $0x1a] sm:$0xff]
      %v1014 = vld [vmem:[#allocation2 + $0x22] sm:$0xff]
      %v1015 = vld [vmem:[#allocation2 + $0x32] sm:$0xff]
      %v1016 = vld [vmem:[#allocation2 + $0x3a] sm:$0xff]
      %v1017 = vld [vmem:[#allocation2 + $0x4a] sm:$0xff]
      %v1018 = vld [vmem:[#allocation2 + $0x52] sm:$0xff]
      %v1019 = vld [vmem:[#allocation2 + $0x62] sm:$0xff]
      %v1020 = vld [vmem:[#allocation2 + $0x6a] sm:$0xff]
      %v1021 = vld [vmem:[#allocation2 + $0x7a] sm:$0xff]
      %v1022 = vld [vmem:[#allocation2 + $0x82] sm:$0xff]
      %v1023 = vld [vmem:[#allocation2 + $0x92] sm:$0xff]
      %v1024 = vld [vmem:[#allocation2 + $0x9a] sm:$0xff]
      %v1025 = vld [vmem:[#allocation2 + $0xaa] sm:$0xff]
      %v1026 = vld [vmem:[#allocation2 + $0xb2] sm:$0xff]
      %v1027 = vld [vmem:[#allocation2 + $0xc2] sm:$0xff]
      %v1028 = vld [vmem:[#allocation2 + $0xca] sm:$0xff]
      %v1029 = vld [vmem:[#allocation2 + $0xda] sm:$0xff]
      %v1030 = vld [vmem:[#allocation2 + $0xe2] sm:$0xff]
      %v1031 = vld [vmem:[#allocation2 + $0xf2] sm:$0xff]
      %v1032 = vld [vmem:[#allocation2 + $0xfa] sm:$0xff]
      %v1033 = vld [vmem:[#allocation2 + $0x10a] sm:$0xff]
      %v1034 = vld [vmem:[#allocation2 + $0x112] sm:$0xff]
      %v1035 = vld [vmem:[#allocation2 + $0x122] sm:$0xff]
      %v1036 = vld [vmem:[#allocation2 + $0x12a] sm:$0xff]
      %v1037 = vld [vmem:[#allocation2 + $0x13a] sm:$0xff]
      %v1038 = vld [vmem:[#allocation2 + $0x142] sm:$0xff]
      %v1039 = vld [vmem:[#allocation2 + $0x152] sm:$0xff]
      %v1040 = vld [vmem:[#allocation2 + $0x15a] sm:$0xff]
      %v1041 = vld [vmem:[#allocation2 + $0x16a] sm:$0xff]
      %v1042 = vld [vmem:[#allocation2 + $0x172] sm:$0xff]
      %1043 = vst.msk [vmem:[#allocation3 + $0x8] sm:$0xff] %vm279, %v1011
      %1044 = vst.msk [vmem:[#allocation3 + $0x30] sm:$0xff] %vm279, %v1012
      %1045 = vst.msk [vmem:[#allocation3 + $0x58] sm:$0xff] %vm279, %v1013
      %1046 = vst.msk [vmem:[#allocation3 + $0x80] sm:$0xff] %vm279, %v1014
      %1047 = vst.msk [vmem:[#allocation3 + $0xa8] sm:$0xff] %vm279, %v1015
      %1048 = vst.msk [vmem:[#allocation3 + $0xd0] sm:$0xff] %vm279, %v1016
      %1049 = vst.msk [vmem:[#allocation3 + $0xf8] sm:$0xff] %vm279, %v1017
      %1050 = vst.msk [vmem:[#allocation3 + $0x120] sm:$0xff] %vm279, %v1018
      %1051 = vst.msk [vmem:[#allocation3 + $0x148] sm:$0xff] %vm279, %v1019
      %1052 = vst.msk [vmem:[#allocation3 + $0x170] sm:$0xff] %vm279, %v1020
      %1053 = vst.msk [vmem:[#allocation3 + $0x198] sm:$0xff] %vm279, %v1021
      %1054 = vst.msk [vmem:[#allocation3 + $0x1c0] sm:$0xff] %vm279, %v1022
      %1055 = vst.msk [vmem:[#allocation3 + $0x1e8] sm:$0xff] %vm279, %v1023
      %1056 = vst.msk [vmem:[#allocation3 + $0x210] sm:$0xff] %vm279, %v1024
      %1057 = vst.msk [vmem:[#allocation3 + $0x238] sm:$0xff] %vm279, %v1025
      %1058 = vst.msk [vmem:[#allocation3 + $0x260] sm:$0xff] %vm279, %v1026
      %1059 = vst.msk [vmem:[#allocation3 + $0x288] sm:$0xff] %vm279, %v1027
      %1060 = vst.msk [vmem:[#allocation3 + $0x2b0] sm:$0xff] %vm279, %v1028
      %1061 = vst.msk [vmem:[#allocation3 + $0x2d8] sm:$0xff] %vm279, %v1029
      %1062 = vst.msk [vmem:[#allocation3 + $0x300] sm:$0xff] %vm279, %v1030
      %1063 = vst.msk [vmem:[#allocation3 + $0x328] sm:$0xff] %vm279, %v1031
      %1064 = vst.msk [vmem:[#allocation3 + $0x350] sm:$0xff] %vm279, %v1032
      %1065 = vst.msk [vmem:[#allocation3 + $0x378] sm:$0xff] %vm279, %v1033
      %1066 = vst.msk [vmem:[#allocation3 + $0x3a0] sm:$0xff] %vm279, %v1034
      %1067 = vst.msk [vmem:[#allocation3 + $0x3c8] sm:$0xff] %vm279, %v1035
      %1068 = vst.msk [vmem:[#allocation3 + $0x3f0] sm:$0xff] %vm279, %v1036
      %1069 = vst.msk [vmem:[#allocation3 + $0x418] sm:$0xff] %vm279, %v1037
      %1070 = vst.msk [vmem:[#allocation3 + $0x440] sm:$0xff] %vm279, %v1038
      %1071 = vst.msk [vmem:[#allocation3 + $0x468] sm:$0xff] %vm279, %v1039
      %1072 = vst.msk [vmem:[#allocation3 + $0x490] sm:$0xff] %vm279, %v1040
      %1073 = vst.msk [vmem:[#allocation3 + $0x4b8] sm:$0xff] %vm279, %v1041
      %1074 = vst.msk [vmem:[#allocation3 + $0x4e0] sm:$0xff] %vm279, %v1042
      %v1075 = vld [vmem:[%s721] sm:$0xff]
      %v1076 = vld [vmem:[%s721 + $0x8] sm:$0xff]
      %v1077 = vld [vmem:[%s721 + $0x18] sm:$0xff]
      %v1078 = vld [vmem:[%s721 + $0x20] sm:$0xff]
      %v1079 = vld [vmem:[%s721 + $0x30] sm:$0xff]
      %v1080 = vld [vmem:[%s721 + $0x38] sm:$0xff]
      %v1081 = vld [vmem:[%s721 + $0x48] sm:$0xff]
      %v1082 = vld [vmem:[%s721 + $0x50] sm:$0xff]
      %v1083 = vld [vmem:[%s721 + $0x60] sm:$0xff]
      %v1084 = vld [vmem:[%s721 + $0x68] sm:$0xff]
      %v1085 = vld [vmem:[%s721 + $0x78] sm:$0xff]
      %v1086 = vld [vmem:[%s721 + $0x80] sm:$0xff]
      %v1087 = vld [vmem:[%s721 + $0x90] sm:$0xff]
      %v1088 = vld [vmem:[%s721 + $0x98] sm:$0xff]
      %v1089 = vld [vmem:[%s721 + $0xa8] sm:$0xff]
      %v1090 = vld [vmem:[%s721 + $0xb0] sm:$0xff]
      %v1091 = vld [vmem:[%s721 + $0xc0] sm:$0xff]
      %v1092 = vld [vmem:[%s721 + $0xc8] sm:$0xff]
      %v1093 = vld [vmem:[%s721 + $0xd8] sm:$0xff]
      %v1094 = vld [vmem:[%s721 + $0xe0] sm:$0xff]
      %v1095 = vld [vmem:[%s721 + $0xf0] sm:$0xff]
      %v1096 = vld [vmem:[%s721 + $0xf8] sm:$0xff]
      %v1097 = vld [vmem:[%s721 + $0x108] sm:$0xff]
      %v1098 = vld [vmem:[%s721 + $0x110] sm:$0xff]
      %v1099 = vld [vmem:[%s721 + $0x120] sm:$0xff]
      %v1100 = vld [vmem:[%s721 + $0x128] sm:$0xff]
      %v1101 = vld [vmem:[%s721 + $0x138] sm:$0xff]
      %v1102 = vld [vmem:[%s721 + $0x140] sm:$0xff]
      %v1103 = vld [vmem:[%s721 + $0x150] sm:$0xff]
      %v1104 = vld [vmem:[%s721 + $0x158] sm:$0xff]
      %v1105 = vld [vmem:[%s721 + $0x168] sm:$0xff]
      %v1106 = vld [vmem:[%s721 + $0x170] sm:$0xff]
      %1139 = vrot.lane.b32.xlu0 %v1075, 64
      %v1140 = vpop.permute.xlu0 %1139
      %1141 = vrot.lane.b32.xlu0 %v1076, 64
      %v1142 = vpop.permute.xlu0 %1141
      %1143 = vrot.lane.b32.xlu0 %v1077, 64
      %v1144 = vpop.permute.xlu0 %1143
      %1145 = vrot.lane.b32.xlu0 %v1078, 64
      %v1146 = vpop.permute.xlu0 %1145
      %1147 = vrot.lane.b32.xlu0 %v1079, 64
      %v1148 = vpop.permute.xlu0 %1147
      %1149 = vrot.lane.b32.xlu0 %v1080, 64
      %v1150 = vpop.permute.xlu0 %1149
      %1151 = vrot.lane.b32.xlu0 %v1081, 64
      %v1152 = vpop.permute.xlu0 %1151
      %1153 = vrot.lane.b32.xlu0 %v1082, 64
      %v1154 = vpop.permute.xlu0 %1153
      %1155 = vrot.lane.b32.xlu0 %v1083, 64
      %v1156 = vpop.permute.xlu0 %1155
      %1157 = vrot.lane.b32.xlu0 %v1084, 64
      %v1158 = vpop.permute.xlu0 %1157
      %1159 = vrot.lane.b32.xlu0 %v1085, 64
      %v1160 = vpop.permute.xlu0 %1159
      %1161 = vrot.lane.b32.xlu0 %v1086, 64
      %v1162 = vpop.permute.xlu0 %1161
      %1163 = vrot.lane.b32.xlu0 %v1087, 64
      %v1164 = vpop.permute.xlu0 %1163
      %1165 = vrot.lane.b32.xlu0 %v1088, 64
      %v1166 = vpop.permute.xlu0 %1165
      %1167 = vrot.lane.b32.xlu0 %v1089, 64
      %v1168 = vpop.permute.xlu0 %1167
      %1169 = vrot.lane.b32.xlu0 %v1090, 64
      %v1170 = vpop.permute.xlu0 %1169
      %1171 = vrot.lane.b32.xlu0 %v1091, 64
      %v1172 = vpop.permute.xlu0 %1171
      %1173 = vrot.lane.b32.xlu0 %v1092, 64
      %v1174 = vpop.permute.xlu0 %1173
      %1175 = vrot.lane.b32.xlu0 %v1093, 64
      %v1176 = vpop.permute.xlu0 %1175
      %1177 = vrot.lane.b32.xlu0 %v1094, 64
      %v1178 = vpop.permute.xlu0 %1177
      %1179 = vrot.lane.b32.xlu0 %v1095, 64
      %v1180 = vpop.permute.xlu0 %1179
      %1181 = vrot.lane.b32.xlu0 %v1096, 64
      %v1182 = vpop.permute.xlu0 %1181
      %1183 = vrot.lane.b32.xlu0 %v1097, 64
      %v1184 = vpop.permute.xlu0 %1183
      %1185 = vrot.lane.b32.xlu0 %v1098, 64
      %v1186 = vpop.permute.xlu0 %1185
      %1187 = vrot.lane.b32.xlu0 %v1099, 64
      %v1188 = vpop.permute.xlu0 %1187
      %1189 = vrot.lane.b32.xlu0 %v1100, 64
      %v1190 = vpop.permute.xlu0 %1189
      %1191 = vrot.lane.b32.xlu0 %v1101, 64
      %v1192 = vpop.permute.xlu0 %1191
      %1193 = vrot.lane.b32.xlu0 %v1102, 64
      %v1194 = vpop.permute.xlu0 %1193
      %1195 = vrot.lane.b32.xlu0 %v1103, 64
      %v1196 = vpop.permute.xlu0 %1195
      %1197 = vrot.lane.b32.xlu0 %v1104, 64
      %v1198 = vpop.permute.xlu0 %1197
      %1199 = vrot.lane.b32.xlu0 %v1105, 64
      %v1200 = vpop.permute.xlu0 %1199
      %1201 = vrot.lane.b32.xlu0 %v1106, 64
      %v1202 = vpop.permute.xlu0 %1201
      %1235 = vst.msk [vmem:[#allocation3 + $0x8] sm:$0xff] %vm978, %v1140
      %1236 = vst.msk [vmem:[#allocation3 + $0x30] sm:$0xff] %vm978, %v1142
      %1237 = vst.msk [vmem:[#allocation3 + $0x58] sm:$0xff] %vm978, %v1144
      %1238 = vst.msk [vmem:[#allocation3 + $0x80] sm:$0xff] %vm978, %v1146
      %1239 = vst.msk [vmem:[#allocation3 + $0xa8] sm:$0xff] %vm978, %v1148
      %1240 = vst.msk [vmem:[#allocation3 + $0xd0] sm:$0xff] %vm978, %v1150
      %1241 = vst.msk [vmem:[#allocation3 + $0xf8] sm:$0xff] %vm978, %v1152
      %1242 = vst.msk [vmem:[#allocation3 + $0x120] sm:$0xff] %vm978, %v1154
      %1243 = vst.msk [vmem:[#allocation3 + $0x148] sm:$0xff] %vm978, %v1156
      %1244 = vst.msk [vmem:[#allocation3 + $0x170] sm:$0xff] %vm978, %v1158
      %1245 = vst.msk [vmem:[#allocation3 + $0x198] sm:$0xff] %vm978, %v1160
      %1246 = vst.msk [vmem:[#allocation3 + $0x1c0] sm:$0xff] %vm978, %v1162
      %1247 = vst.msk [vmem:[#allocation3 + $0x1e8] sm:$0xff] %vm978, %v1164
      %1248 = vst.msk [vmem:[#allocation3 + $0x210] sm:$0xff] %vm978, %v1166
      %1249 = vst.msk [vmem:[#allocation3 + $0x238] sm:$0xff] %vm978, %v1168
      %1250 = vst.msk [vmem:[#allocation3 + $0x260] sm:$0xff] %vm978, %v1170
      %1251 = vst.msk [vmem:[#allocation3 + $0x288] sm:$0xff] %vm978, %v1172
      %1252 = vst.msk [vmem:[#allocation3 + $0x2b0] sm:$0xff] %vm978, %v1174
      %1253 = vst.msk [vmem:[#allocation3 + $0x2d8] sm:$0xff] %vm978, %v1176
      %1254 = vst.msk [vmem:[#allocation3 + $0x300] sm:$0xff] %vm978, %v1178
      %1255 = vst.msk [vmem:[#allocation3 + $0x328] sm:$0xff] %vm978, %v1180
      %1256 = vst.msk [vmem:[#allocation3 + $0x350] sm:$0xff] %vm978, %v1182
      %1257 = vst.msk [vmem:[#allocation3 + $0x378] sm:$0xff] %vm978, %v1184
      %1258 = vst.msk [vmem:[#allocation3 + $0x3a0] sm:$0xff] %vm978, %v1186
      %1259 = vst.msk [vmem:[#allocation3 + $0x3c8] sm:$0xff] %vm978, %v1188
      %1260 = vst.msk [vmem:[#allocation3 + $0x3f0] sm:$0xff] %vm978, %v1190
      %1261 = vst.msk [vmem:[#allocation3 + $0x418] sm:$0xff] %vm978, %v1192
      %1262 = vst.msk [vmem:[#allocation3 + $0x440] sm:$0xff] %vm978, %v1194
      %1263 = vst.msk [vmem:[#allocation3 + $0x468] sm:$0xff] %vm978, %v1196
      %1264 = vst.msk [vmem:[#allocation3 + $0x490] sm:$0xff] %vm978, %v1198
      %1265 = vst.msk [vmem:[#allocation3 + $0x4b8] sm:$0xff] %vm978, %v1200
      %1266 = vst.msk [vmem:[#allocation3 + $0x4e0] sm:$0xff] %vm978, %v1202
      %v1267 = vld [vmem:[%s721 + $0x1] sm:$0xff]
      %v1268 = vld [vmem:[%s721 + $0x9] sm:$0xff]
      %v1269 = vld [vmem:[%s721 + $0x19] sm:$0xff]
      %v1270 = vld [vmem:[%s721 + $0x21] sm:$0xff]
      %v1271 = vld [vmem:[%s721 + $0x31] sm:$0xff]
      %v1272 = vld [vmem:[%s721 + $0x39] sm:$0xff]
      %v1273 = vld [vmem:[%s721 + $0x49] sm:$0xff]
      %v1274 = vld [vmem:[%s721 + $0x51] sm:$0xff]
      %v1275 = vld [vmem:[%s721 + $0x61] sm:$0xff]
      %v1276 = vld [vmem:[%s721 + $0x69] sm:$0xff]
      %v1277 = vld [vmem:[%s721 + $0x79] sm:$0xff]
      %v1278 = vld [vmem:[%s721 + $0x81] sm:$0xff]
      %v1279 = vld [vmem:[%s721 + $0x91] sm:$0xff]
      %v1280 = vld [vmem:[%s721 + $0x99] sm:$0xff]
      %v1281 = vld [vmem:[%s721 + $0xa9] sm:$0xff]
      %v1282 = vld [vmem:[%s721 + $0xb1] sm:$0xff]
      %v1283 = vld [vmem:[%s721 + $0xc1] sm:$0xff]
      %v1284 = vld [vmem:[%s721 + $0xc9] sm:$0xff]
      %v1285 = vld [vmem:[%s721 + $0xd9] sm:$0xff]
      %v1286 = vld [vmem:[%s721 + $0xe1] sm:$0xff]
      %v1287 = vld [vmem:[%s721 + $0xf1] sm:$0xff]
      %v1288 = vld [vmem:[%s721 + $0xf9] sm:$0xff]
      %v1289 = vld [vmem:[%s721 + $0x109] sm:$0xff]
      %v1290 = vld [vmem:[%s721 + $0x111] sm:$0xff]
      %v1291 = vld [vmem:[%s721 + $0x121] sm:$0xff]
      %v1292 = vld [vmem:[%s721 + $0x129] sm:$0xff]
      %v1293 = vld [vmem:[%s721 + $0x139] sm:$0xff]
      %v1294 = vld [vmem:[%s721 + $0x141] sm:$0xff]
      %v1295 = vld [vmem:[%s721 + $0x151] sm:$0xff]
      %v1296 = vld [vmem:[%s721 + $0x159] sm:$0xff]
      %v1297 = vld [vmem:[%s721 + $0x169] sm:$0xff]
      %v1298 = vld [vmem:[%s721 + $0x171] sm:$0xff]
      %1299 = vst.msk [vmem:[#allocation3 + $0x10] sm:$0xff] %vm279, %v1267
      %1300 = vst.msk [vmem:[#allocation3 + $0x38] sm:$0xff] %vm279, %v1268
      %1301 = vst.msk [vmem:[#allocation3 + $0x60] sm:$0xff] %vm279, %v1269
      %1302 = vst.msk [vmem:[#allocation3 + $0x88] sm:$0xff] %vm279, %v1270
      %1303 = vst.msk [vmem:[#allocation3 + $0xb0] sm:$0xff] %vm279, %v1271
      %1304 = vst.msk [vmem:[#allocation3 + $0xd8] sm:$0xff] %vm279, %v1272
      %1305 = vst.msk [vmem:[#allocation3 + $0x100] sm:$0xff] %vm279, %v1273
      %1306 = vst.msk [vmem:[#allocation3 + $0x128] sm:$0xff] %vm279, %v1274
      %1307 = vst.msk [vmem:[#allocation3 + $0x150] sm:$0xff] %vm279, %v1275
      %1308 = vst.msk [vmem:[#allocation3 + $0x178] sm:$0xff] %vm279, %v1276
      %1309 = vst.msk [vmem:[#allocation3 + $0x1a0] sm:$0xff] %vm279, %v1277
      %1310 = vst.msk [vmem:[#allocation3 + $0x1c8] sm:$0xff] %vm279, %v1278
      %1311 = vst.msk [vmem:[#allocation3 + $0x1f0] sm:$0xff] %vm279, %v1279
      %1312 = vst.msk [vmem:[#allocation3 + $0x218] sm:$0xff] %vm279, %v1280
      %1313 = vst.msk [vmem:[#allocation3 + $0x240] sm:$0xff] %vm279, %v1281
      %1314 = vst.msk [vmem:[#allocation3 + $0x268] sm:$0xff] %vm279, %v1282
      %1315 = vst.msk [vmem:[#allocation3 + $0x290] sm:$0xff] %vm279, %v1283
      %1316 = vst.msk [vmem:[#allocation3 + $0x2b8] sm:$0xff] %vm279, %v1284
      %1317 = vst.msk [vmem:[#allocation3 + $0x2e0] sm:$0xff] %vm279, %v1285
      %1318 = vst.msk [vmem:[#allocation3 + $0x308] sm:$0xff] %vm279, %v1286
      %1319 = vst.msk [vmem:[#allocation3 + $0x330] sm:$0xff] %vm279, %v1287
      %1320 = vst.msk [vmem:[#allocation3 + $0x358] sm:$0xff] %vm279, %v1288
      %1321 = vst.msk [vmem:[#allocation3 + $0x380] sm:$0xff] %vm279, %v1289
      %1322 = vst.msk [vmem:[#allocation3 + $0x3a8] sm:$0xff] %vm279, %v1290
      %1323 = vst.msk [vmem:[#allocation3 + $0x3d0] sm:$0xff] %vm279, %v1291
      %1324 = vst.msk [vmem:[#allocation3 + $0x3f8] sm:$0xff] %vm279, %v1292
      %1325 = vst.msk [vmem:[#allocation3 + $0x420] sm:$0xff] %vm279, %v1293
      %1326 = vst.msk [vmem:[#allocation3 + $0x448] sm:$0xff] %vm279, %v1294
      %1327 = vst.msk [vmem:[#allocation3 + $0x470] sm:$0xff] %vm279, %v1295
      %1328 = vst.msk [vmem:[#allocation3 + $0x498] sm:$0xff] %vm279, %v1296
      %1329 = vst.msk [vmem:[#allocation3 + $0x4c0] sm:$0xff] %vm279, %v1297
      %1330 = vst.msk [vmem:[#allocation3 + $0x4e8] sm:$0xff] %vm279, %v1298
      %v1331 = vld [vmem:[%s721 + $0x2] sm:$0xff]
      %v1332 = vld [vmem:[%s721 + $0xa] sm:$0xff]
      %v1333 = vld [vmem:[%s721 + $0x1a] sm:$0xff]
      %v1334 = vld [vmem:[%s721 + $0x22] sm:$0xff]
      %v1335 = vld [vmem:[%s721 + $0x32] sm:$0xff]
      %v1336 = vld [vmem:[%s721 + $0x3a] sm:$0xff]
      %v1337 = vld [vmem:[%s721 + $0x4a] sm:$0xff]
      %v1338 = vld [vmem:[%s721 + $0x52] sm:$0xff]
      %v1339 = vld [vmem:[%s721 + $0x62] sm:$0xff]
      %v1340 = vld [vmem:[%s721 + $0x6a] sm:$0xff]
      %v1341 = vld [vmem:[%s721 + $0x7a] sm:$0xff]
      %v1342 = vld [vmem:[%s721 + $0x82] sm:$0xff]
      %v1343 = vld [vmem:[%s721 + $0x92] sm:$0xff]
      %v1344 = vld [vmem:[%s721 + $0x9a] sm:$0xff]
      %v1345 = vld [vmem:[%s721 + $0xaa] sm:$0xff]
      %v1346 = vld [vmem:[%s721 + $0xb2] sm:$0xff]
      %v1347 = vld [vmem:[%s721 + $0xc2] sm:$0xff]
      %v1348 = vld [vmem:[%s721 + $0xca] sm:$0xff]
      %v1349 = vld [vmem:[%s721 + $0xda] sm:$0xff]
      %v1350 = vld [vmem:[%s721 + $0xe2] sm:$0xff]
      %v1351 = vld [vmem:[%s721 + $0xf2] sm:$0xff]
      %v1352 = vld [vmem:[%s721 + $0xfa] sm:$0xff]
      %v1353 = vld [vmem:[%s721 + $0x10a] sm:$0xff]
      %v1354 = vld [vmem:[%s721 + $0x112] sm:$0xff]
      %v1355 = vld [vmem:[%s721 + $0x122] sm:$0xff]
      %v1356 = vld [vmem:[%s721 + $0x12a] sm:$0xff]
      %v1357 = vld [vmem:[%s721 + $0x13a] sm:$0xff]
      %v1358 = vld [vmem:[%s721 + $0x142] sm:$0xff]
      %v1359 = vld [vmem:[%s721 + $0x152] sm:$0xff]
      %v1360 = vld [vmem:[%s721 + $0x15a] sm:$0xff]
      %v1361 = vld [vmem:[%s721 + $0x16a] sm:$0xff]
      %v1362 = vld [vmem:[%s721 + $0x172] sm:$0xff]
      %1395 = vrot.lane.b32.xlu0 %v1331, 64
      %v1396 = vpop.permute.xlu0 %1395
      %1397 = vrot.lane.b32.xlu0 %v1332, 64
      %v1398 = vpop.permute.xlu0 %1397
      %1399 = vrot.lane.b32.xlu0 %v1333, 64
      %v1400 = vpop.permute.xlu0 %1399
      %1401 = vrot.lane.b32.xlu0 %v1334, 64
      %v1402 = vpop.permute.xlu0 %1401
      %1403 = vrot.lane.b32.xlu0 %v1335, 64
      %v1404 = vpop.permute.xlu0 %1403
      %1405 = vrot.lane.b32.xlu0 %v1336, 64
      %v1406 = vpop.permute.xlu0 %1405
      %1407 = vrot.lane.b32.xlu0 %v1337, 64
      %v1408 = vpop.permute.xlu0 %1407
      %1409 = vrot.lane.b32.xlu0 %v1338, 64
      %v1410 = vpop.permute.xlu0 %1409
      %1411 = vrot.lane.b32.xlu0 %v1339, 64
      %v1412 = vpop.permute.xlu0 %1411
      %1413 = vrot.lane.b32.xlu0 %v1340, 64
      %v1414 = vpop.permute.xlu0 %1413
      %1415 = vrot.lane.b32.xlu0 %v1341, 64
      %v1416 = vpop.permute.xlu0 %1415
      %1417 = vrot.lane.b32.xlu0 %v1342, 64
      %v1418 = vpop.permute.xlu0 %1417
      %1419 = vrot.lane.b32.xlu0 %v1343, 64
      %v1420 = vpop.permute.xlu0 %1419
      %1421 = vrot.lane.b32.xlu0 %v1344, 64
      %v1422 = vpop.permute.xlu0 %1421
      %1423 = vrot.lane.b32.xlu0 %v1345, 64
      %v1424 = vpop.permute.xlu0 %1423
      %1425 = vrot.lane.b32.xlu0 %v1346, 64
      %v1426 = vpop.permute.xlu0 %1425
      %1427 = vrot.lane.b32.xlu0 %v1347, 64
      %v1428 = vpop.permute.xlu0 %1427
      %1429 = vrot.lane.b32.xlu0 %v1348, 64
      %v1430 = vpop.permute.xlu0 %1429
      %1431 = vrot.lane.b32.xlu0 %v1349, 64
      %v1432 = vpop.permute.xlu0 %1431
      %1433 = vrot.lane.b32.xlu0 %v1350, 64
      %v1434 = vpop.permute.xlu0 %1433
      %1435 = vrot.lane.b32.xlu0 %v1351, 64
      %v1436 = vpop.permute.xlu0 %1435
      %1437 = vrot.lane.b32.xlu0 %v1352, 64
      %v1438 = vpop.permute.xlu0 %1437
      %1439 = vrot.lane.b32.xlu0 %v1353, 64
      %v1440 = vpop.permute.xlu0 %1439
      %1441 = vrot.lane.b32.xlu0 %v1354, 64
      %v1442 = vpop.permute.xlu0 %1441
      %1443 = vrot.lane.b32.xlu0 %v1355, 64
      %v1444 = vpop.permute.xlu0 %1443
      %1445 = vrot.lane.b32.xlu0 %v1356, 64
      %v1446 = vpop.permute.xlu0 %1445
      %1447 = vrot.lane.b32.xlu0 %v1357, 64
      %v1448 = vpop.permute.xlu0 %1447
      %1449 = vrot.lane.b32.xlu0 %v1358, 64
      %v1450 = vpop.permute.xlu0 %1449
      %1451 = vrot.lane.b32.xlu0 %v1359, 64
      %v1452 = vpop.permute.xlu0 %1451
      %1453 = vrot.lane.b32.xlu0 %v1360, 64
      %v1454 = vpop.permute.xlu0 %1453
      %1455 = vrot.lane.b32.xlu0 %v1361, 64
      %v1456 = vpop.permute.xlu0 %1455
      %1457 = vrot.lane.b32.xlu0 %v1362, 64
      %v1458 = vpop.permute.xlu0 %1457
      %1491 = vst.msk [vmem:[#allocation3 + $0x10] sm:$0xff] %vm978, %v1396
      %1492 = vst.msk [vmem:[#allocation3 + $0x38] sm:$0xff] %vm978, %v1398
      %1493 = vst.msk [vmem:[#allocation3 + $0x60] sm:$0xff] %vm978, %v1400
      %1494 = vst.msk [vmem:[#allocation3 + $0x88] sm:$0xff] %vm978, %v1402
      %1495 = vst.msk [vmem:[#allocation3 + $0xb0] sm:$0xff] %vm978, %v1404
      %1496 = vst.msk [vmem:[#allocation3 + $0xd8] sm:$0xff] %vm978, %v1406
      %1497 = vst.msk [vmem:[#allocation3 + $0x100] sm:$0xff] %vm978, %v1408
      %1498 = vst.msk [vmem:[#allocation3 + $0x128] sm:$0xff] %vm978, %v1410
      %1499 = vst.msk [vmem:[#allocation3 + $0x150] sm:$0xff] %vm978, %v1412
      %1500 = vst.msk [vmem:[#allocation3 + $0x178] sm:$0xff] %vm978, %v1414
      %1501 = vst.msk [vmem:[#allocation3 + $0x1a0] sm:$0xff] %vm978, %v1416
      %1502 = vst.msk [vmem:[#allocation3 + $0x1c8] sm:$0xff] %vm978, %v1418
      %1503 = vst.msk [vmem:[#allocation3 + $0x1f0] sm:$0xff] %vm978, %v1420
      %1504 = vst.msk [vmem:[#allocation3 + $0x218] sm:$0xff] %vm978, %v1422
      %1505 = vst.msk [vmem:[#allocation3 + $0x240] sm:$0xff] %vm978, %v1424
      %1506 = vst.msk [vmem:[#allocation3 + $0x268] sm:$0xff] %vm978, %v1426
      %1507 = vst.msk [vmem:[#allocation3 + $0x290] sm:$0xff] %vm978, %v1428
      %1508 = vst.msk [vmem:[#allocation3 + $0x2b8] sm:$0xff] %vm978, %v1430
      %1509 = vst.msk [vmem:[#allocation3 + $0x2e0] sm:$0xff] %vm978, %v1432
      %1510 = vst.msk [vmem:[#allocation3 + $0x308] sm:$0xff] %vm978, %v1434
      %1511 = vst.msk [vmem:[#allocation3 + $0x330] sm:$0xff] %vm978, %v1436
      %1512 = vst.msk [vmem:[#allocation3 + $0x358] sm:$0xff] %vm978, %v1438
      %1513 = vst.msk [vmem:[#allocation3 + $0x380] sm:$0xff] %vm978, %v1440
      %1514 = vst.msk [vmem:[#allocation3 + $0x3a8] sm:$0xff] %vm978, %v1442
      %1515 = vst.msk [vmem:[#allocation3 + $0x3d0] sm:$0xff] %vm978, %v1444
      %1516 = vst.msk [vmem:[#allocation3 + $0x3f8] sm:$0xff] %vm978, %v1446
      %1517 = vst.msk [vmem:[#allocation3 + $0x420] sm:$0xff] %vm978, %v1448
      %1518 = vst.msk [vmem:[#allocation3 + $0x448] sm:$0xff] %vm978, %v1450
      %1519 = vst.msk [vmem:[#allocation3 + $0x470] sm:$0xff] %vm978, %v1452
      %1520 = vst.msk [vmem:[#allocation3 + $0x498] sm:$0xff] %vm978, %v1454
      %1521 = vst.msk [vmem:[#allocation3 + $0x4c0] sm:$0xff] %vm978, %v1456
      %1522 = vst.msk [vmem:[#allocation3 + $0x4e8] sm:$0xff] %vm978, %v1458
      %s1523 = scalar_lea.vmem [#allocation2], 48
      %v1524 = vld [vmem:[%s1523] sm:$0xff]
      %v1525 = vld [vmem:[%s1523 + $0x8] sm:$0xff]
      %v1526 = vld [vmem:[%s1523 + $0x18] sm:$0xff]
      %v1527 = vld [vmem:[%s1523 + $0x20] sm:$0xff]
      %v1528 = vld [vmem:[%s1523 + $0x30] sm:$0xff]
      %v1529 = vld [vmem:[%s1523 + $0x38] sm:$0xff]
      %v1530 = vld [vmem:[%s1523 + $0x48] sm:$0xff]
      %v1531 = vld [vmem:[%s1523 + $0x50] sm:$0xff]
      %v1532 = vld [vmem:[%s1523 + $0x60] sm:$0xff]
      %v1533 = vld [vmem:[%s1523 + $0x68] sm:$0xff]
      %v1534 = vld [vmem:[%s1523 + $0x78] sm:$0xff]
      %v1535 = vld [vmem:[%s1523 + $0x80] sm:$0xff]
      %v1536 = vld [vmem:[%s1523 + $0x90] sm:$0xff]
      %v1537 = vld [vmem:[%s1523 + $0x98] sm:$0xff]
      %v1538 = vld [vmem:[%s1523 + $0xa8] sm:$0xff]
      %v1539 = vld [vmem:[%s1523 + $0xb0] sm:$0xff]
      %v1540 = vld [vmem:[%s1523 + $0xc0] sm:$0xff]
      %v1541 = vld [vmem:[%s1523 + $0xc8] sm:$0xff]
      %v1542 = vld [vmem:[%s1523 + $0xd8] sm:$0xff]
      %v1543 = vld [vmem:[%s1523 + $0xe0] sm:$0xff]
      %v1544 = vld [vmem:[%s1523 + $0xf0] sm:$0xff]
      %v1545 = vld [vmem:[%s1523 + $0xf8] sm:$0xff]
      %v1546 = vld [vmem:[%s1523 + $0x108] sm:$0xff]
      %v1547 = vld [vmem:[%s1523 + $0x110] sm:$0xff]
      %v1548 = vld [vmem:[%s1523 + $0x120] sm:$0xff]
      %v1549 = vld [vmem:[%s1523 + $0x128] sm:$0xff]
      %v1550 = vld [vmem:[%s1523 + $0x138] sm:$0xff]
      %v1551 = vld [vmem:[%s1523 + $0x140] sm:$0xff]
      %v1552 = vld [vmem:[%s1523 + $0x150] sm:$0xff]
      %v1553 = vld [vmem:[%s1523 + $0x158] sm:$0xff]
      %v1554 = vld [vmem:[%s1523 + $0x168] sm:$0xff]
      %v1555 = vld [vmem:[%s1523 + $0x170] sm:$0xff]
      %1556 = vst.msk [vmem:[#allocation3 + $0x18] sm:$0xff] %vm279, %v1524
      %1557 = vst.msk [vmem:[#allocation3 + $0x40] sm:$0xff] %vm279, %v1525
      %1558 = vst.msk [vmem:[#allocation3 + $0x68] sm:$0xff] %vm279, %v1526
      %1559 = vst.msk [vmem:[#allocation3 + $0x90] sm:$0xff] %vm279, %v1527
      %1560 = vst.msk [vmem:[#allocation3 + $0xb8] sm:$0xff] %vm279, %v1528
      %1561 = vst.msk [vmem:[#allocation3 + $0xe0] sm:$0xff] %vm279, %v1529
      %1562 = vst.msk [vmem:[#allocation3 + $0x108] sm:$0xff] %vm279, %v1530
      %1563 = vst.msk [vmem:[#allocation3 + $0x130] sm:$0xff] %vm279, %v1531
      %1564 = vst.msk [vmem:[#allocation3 + $0x158] sm:$0xff] %vm279, %v1532
      %1565 = vst.msk [vmem:[#allocation3 + $0x180] sm:$0xff] %vm279, %v1533
      %1566 = vst.msk [vmem:[#allocation3 + $0x1a8] sm:$0xff] %vm279, %v1534
      %1567 = vst.msk [vmem:[#allocation3 + $0x1d0] sm:$0xff] %vm279, %v1535
      %1568 = vst.msk [vmem:[#allocation3 + $0x1f8] sm:$0xff] %vm279, %v1536
      %1569 = vst.msk [vmem:[#allocation3 + $0x220] sm:$0xff] %vm279, %v1537
      %1570 = vst.msk [vmem:[#allocation3 + $0x248] sm:$0xff] %vm279, %v1538
      %1571 = vst.msk [vmem:[#allocation3 + $0x270] sm:$0xff] %vm279, %v1539
      %1572 = vst.msk [vmem:[#allocation3 + $0x298] sm:$0xff] %vm279, %v1540
      %1573 = vst.msk [vmem:[#allocation3 + $0x2c0] sm:$0xff] %vm279, %v1541
      %1574 = vst.msk [vmem:[#allocation3 + $0x2e8] sm:$0xff] %vm279, %v1542
      %1575 = vst.msk [vmem:[#allocation3 + $0x310] sm:$0xff] %vm279, %v1543
      %1576 = vst.msk [vmem:[#allocation3 + $0x338] sm:$0xff] %vm279, %v1544
      %1577 = vst.msk [vmem:[#allocation3 + $0x360] sm:$0xff] %vm279, %v1545
      %1578 = vst.msk [vmem:[#allocation3 + $0x388] sm:$0xff] %vm279, %v1546
      %1579 = vst.msk [vmem:[#allocation3 + $0x3b0] sm:$0xff] %vm279, %v1547
      %1580 = vst.msk [vmem:[#allocation3 + $0x3d8] sm:$0xff] %vm279, %v1548
      %1581 = vst.msk [vmem:[#allocation3 + $0x400] sm:$0xff] %vm279, %v1549
      %1582 = vst.msk [vmem:[#allocation3 + $0x428] sm:$0xff] %vm279, %v1550
      %1583 = vst.msk [vmem:[#allocation3 + $0x450] sm:$0xff] %vm279, %v1551
      %1584 = vst.msk [vmem:[#allocation3 + $0x478] sm:$0xff] %vm279, %v1552
      %1585 = vst.msk [vmem:[#allocation3 + $0x4a0] sm:$0xff] %vm279, %v1553
      %1586 = vst.msk [vmem:[#allocation3 + $0x4c8] sm:$0xff] %vm279, %v1554
      %1587 = vst.msk [vmem:[#allocation3 + $0x4f0] sm:$0xff] %vm279, %v1555
      %v1588 = vld [vmem:[%s1523 + $0x1] sm:$0xff]
      %v1589 = vld [vmem:[%s1523 + $0x9] sm:$0xff]
      %v1590 = vld [vmem:[%s1523 + $0x19] sm:$0xff]
      %v1591 = vld [vmem:[%s1523 + $0x21] sm:$0xff]
      %v1592 = vld [vmem:[%s1523 + $0x31] sm:$0xff]
      %v1593 = vld [vmem:[%s1523 + $0x39] sm:$0xff]
      %v1594 = vld [vmem:[%s1523 + $0x49] sm:$0xff]
      %v1595 = vld [vmem:[%s1523 + $0x51] sm:$0xff]
      %v1596 = vld [vmem:[%s1523 + $0x61] sm:$0xff]
      %v1597 = vld [vmem:[%s1523 + $0x69] sm:$0xff]
      %v1598 = vld [vmem:[%s1523 + $0x79] sm:$0xff]
      %v1599 = vld [vmem:[%s1523 + $0x81] sm:$0xff]
      %v1600 = vld [vmem:[%s1523 + $0x91] sm:$0xff]
      %v1601 = vld [vmem:[%s1523 + $0x99] sm:$0xff]
      %v1602 = vld [vmem:[%s1523 + $0xa9] sm:$0xff]
      %v1603 = vld [vmem:[%s1523 + $0xb1] sm:$0xff]
      %v1604 = vld [vmem:[%s1523 + $0xc1] sm:$0xff]
      %v1605 = vld [vmem:[%s1523 + $0xc9] sm:$0xff]
      %v1606 = vld [vmem:[%s1523 + $0xd9] sm:$0xff]
      %v1607 = vld [vmem:[%s1523 + $0xe1] sm:$0xff]
      %v1608 = vld [vmem:[%s1523 + $0xf1] sm:$0xff]
      %v1609 = vld [vmem:[%s1523 + $0xf9] sm:$0xff]
      %v1610 = vld [vmem:[%s1523 + $0x109] sm:$0xff]
      %v1611 = vld [vmem:[%s1523 + $0x111] sm:$0xff]
      %v1612 = vld [vmem:[%s1523 + $0x121] sm:$0xff]
      %v1613 = vld [vmem:[%s1523 + $0x129] sm:$0xff]
      %v1614 = vld [vmem:[%s1523 + $0x139] sm:$0xff]
      %v1615 = vld [vmem:[%s1523 + $0x141] sm:$0xff]
      %v1616 = vld [vmem:[%s1523 + $0x151] sm:$0xff]
      %v1617 = vld [vmem:[%s1523 + $0x159] sm:$0xff]
      %v1618 = vld [vmem:[%s1523 + $0x169] sm:$0xff]
      %v1619 = vld [vmem:[%s1523 + $0x171] sm:$0xff]
      %1652 = vrot.lane.b32.xlu0 %v1588, 64
      %v1653 = vpop.permute.xlu0 %1652
      %1654 = vrot.lane.b32.xlu0 %v1589, 64
      %v1655 = vpop.permute.xlu0 %1654
      %1656 = vrot.lane.b32.xlu0 %v1590, 64
      %v1657 = vpop.permute.xlu0 %1656
      %1658 = vrot.lane.b32.xlu0 %v1591, 64
      %v1659 = vpop.permute.xlu0 %1658
      %1660 = vrot.lane.b32.xlu0 %v1592, 64
      %v1661 = vpop.permute.xlu0 %1660
      %1662 = vrot.lane.b32.xlu0 %v1593, 64
      %v1663 = vpop.permute.xlu0 %1662
      %1664 = vrot.lane.b32.xlu0 %v1594, 64
      %v1665 = vpop.permute.xlu0 %1664
      %1666 = vrot.lane.b32.xlu0 %v1595, 64
      %v1667 = vpop.permute.xlu0 %1666
      %1668 = vrot.lane.b32.xlu0 %v1596, 64
      %v1669 = vpop.permute.xlu0 %1668
      %1670 = vrot.lane.b32.xlu0 %v1597, 64
      %v1671 = vpop.permute.xlu0 %1670
      %1672 = vrot.lane.b32.xlu0 %v1598, 64
      %v1673 = vpop.permute.xlu0 %1672
      %1674 = vrot.lane.b32.xlu0 %v1599, 64
      %v1675 = vpop.permute.xlu0 %1674
      %1676 = vrot.lane.b32.xlu0 %v1600, 64
      %v1677 = vpop.permute.xlu0 %1676
      %1678 = vrot.lane.b32.xlu0 %v1601, 64
      %v1679 = vpop.permute.xlu0 %1678
      %1680 = vrot.lane.b32.xlu0 %v1602, 64
      %v1681 = vpop.permute.xlu0 %1680
      %1682 = vrot.lane.b32.xlu0 %v1603, 64
      %v1683 = vpop.permute.xlu0 %1682
      %1684 = vrot.lane.b32.xlu0 %v1604, 64
      %v1685 = vpop.permute.xlu0 %1684
      %1686 = vrot.lane.b32.xlu0 %v1605, 64
      %v1687 = vpop.permute.xlu0 %1686
      %1688 = vrot.lane.b32.xlu0 %v1606, 64
      %v1689 = vpop.permute.xlu0 %1688
      %1690 = vrot.lane.b32.xlu0 %v1607, 64
      %v1691 = vpop.permute.xlu0 %1690
      %1692 = vrot.lane.b32.xlu0 %v1608, 64
      %v1693 = vpop.permute.xlu0 %1692
      %1694 = vrot.lane.b32.xlu0 %v1609, 64
      %v1695 = vpop.permute.xlu0 %1694
      %1696 = vrot.lane.b32.xlu0 %v1610, 64
      %v1697 = vpop.permute.xlu0 %1696
      %1698 = vrot.lane.b32.xlu0 %v1611, 64
      %v1699 = vpop.permute.xlu0 %1698
      %1700 = vrot.lane.b32.xlu0 %v1612, 64
      %v1701 = vpop.permute.xlu0 %1700
      %1702 = vrot.lane.b32.xlu0 %v1613, 64
      %v1703 = vpop.permute.xlu0 %1702
      %1704 = vrot.lane.b32.xlu0 %v1614, 64
      %v1705 = vpop.permute.xlu0 %1704
      %1706 = vrot.lane.b32.xlu0 %v1615, 64
      %v1707 = vpop.permute.xlu0 %1706
      %1708 = vrot.lane.b32.xlu0 %v1616, 64
      %v1709 = vpop.permute.xlu0 %1708
      %1710 = vrot.lane.b32.xlu0 %v1617, 64
      %v1711 = vpop.permute.xlu0 %1710
      %1712 = vrot.lane.b32.xlu0 %v1618, 64
      %v1713 = vpop.permute.xlu0 %1712
      %1714 = vrot.lane.b32.xlu0 %v1619, 64
      %v1715 = vpop.permute.xlu0 %1714
      %1748 = vst.msk [vmem:[#allocation3 + $0x18] sm:$0xff] %vm978, %v1653
      %1749 = vst.msk [vmem:[#allocation3 + $0x40] sm:$0xff] %vm978, %v1655
      %1750 = vst.msk [vmem:[#allocation3 + $0x68] sm:$0xff] %vm978, %v1657
      %1751 = vst.msk [vmem:[#allocation3 + $0x90] sm:$0xff] %vm978, %v1659
      %1752 = vst.msk [vmem:[#allocation3 + $0xb8] sm:$0xff] %vm978, %v1661
      %1753 = vst.msk [vmem:[#allocation3 + $0xe0] sm:$0xff] %vm978, %v1663
      %1754 = vst.msk [vmem:[#allocation3 + $0x108] sm:$0xff] %vm978, %v1665
      %1755 = vst.msk [vmem:[#allocation3 + $0x130] sm:$0xff] %vm978, %v1667
      %1756 = vst.msk [vmem:[#allocation3 + $0x158] sm:$0xff] %vm978, %v1669
      %1757 = vst.msk [vmem:[#allocation3 + $0x180] sm:$0xff] %vm978, %v1671
      %1758 = vst.msk [vmem:[#allocation3 + $0x1a8] sm:$0xff] %vm978, %v1673
      %1759 = vst.msk [vmem:[#allocation3 + $0x1d0] sm:$0xff] %vm978, %v1675
      %1760 = vst.msk [vmem:[#allocation3 + $0x1f8] sm:$0xff] %vm978, %v1677
      %1761 = vst.msk [vmem:[#allocation3 + $0x220] sm:$0xff] %vm978, %v1679
      %1762 = vst.msk [vmem:[#allocation3 + $0x248] sm:$0xff] %vm978, %v1681
      %1763 = vst.msk [vmem:[#allocation3 + $0x270] sm:$0xff] %vm978, %v1683
      %1764 = vst.msk [vmem:[#allocation3 + $0x298] sm:$0xff] %vm978, %v1685
      %1765 = vst.msk [vmem:[#allocation3 + $0x2c0] sm:$0xff] %vm978, %v1687
      %1766 = vst.msk [vmem:[#allocation3 + $0x2e8] sm:$0xff] %vm978, %v1689
      %1767 = vst.msk [vmem:[#allocation3 + $0x310] sm:$0xff] %vm978, %v1691
      %1768 = vst.msk [vmem:[#allocation3 + $0x338] sm:$0xff] %vm978, %v1693
      %1769 = vst.msk [vmem:[#allocation3 + $0x360] sm:$0xff] %vm978, %v1695
      %1770 = vst.msk [vmem:[#allocation3 + $0x388] sm:$0xff] %vm978, %v1697
      %1771 = vst.msk [vmem:[#allocation3 + $0x3b0] sm:$0xff] %vm978, %v1699
      %1772 = vst.msk [vmem:[#allocation3 + $0x3d8] sm:$0xff] %vm978, %v1701
      %1773 = vst.msk [vmem:[#allocation3 + $0x400] sm:$0xff] %vm978, %v1703
      %1774 = vst.msk [vmem:[#allocation3 + $0x428] sm:$0xff] %vm978, %v1705
      %1775 = vst.msk [vmem:[#allocation3 + $0x450] sm:$0xff] %vm978, %v1707
      %1776 = vst.msk [vmem:[#allocation3 + $0x478] sm:$0xff] %vm978, %v1709
      %1777 = vst.msk [vmem:[#allocation3 + $0x4a0] sm:$0xff] %vm978, %v1711
      %1778 = vst.msk [vmem:[#allocation3 + $0x4c8] sm:$0xff] %vm978, %v1713
      %1779 = vst.msk [vmem:[#allocation3 + $0x4f0] sm:$0xff] %vm978, %v1715
      %v1780 = vld [vmem:[%s1523 + $0x2] sm:$0xff]
      %v1781 = vld [vmem:[%s1523 + $0xa] sm:$0xff]
      %v1782 = vld [vmem:[%s1523 + $0x1a] sm:$0xff]
      %v1783 = vld [vmem:[%s1523 + $0x22] sm:$0xff]
      %v1784 = vld [vmem:[%s1523 + $0x32] sm:$0xff]
      %v1785 = vld [vmem:[%s1523 + $0x3a] sm:$0xff]
      %v1786 = vld [vmem:[%s1523 + $0x4a] sm:$0xff]
      %v1787 = vld [vmem:[%s1523 + $0x52] sm:$0xff]
      %v1788 = vld [vmem:[%s1523 + $0x62] sm:$0xff]
      %v1789 = vld [vmem:[%s1523 + $0x6a] sm:$0xff]
      %v1790 = vld [vmem:[%s1523 + $0x7a] sm:$0xff]
      %v1791 = vld [vmem:[%s1523 + $0x82] sm:$0xff]
      %v1792 = vld [vmem:[%s1523 + $0x92] sm:$0xff]
      %v1793 = vld [vmem:[%s1523 + $0x9a] sm:$0xff]
      %v1794 = vld [vmem:[%s1523 + $0xaa] sm:$0xff]
      %v1795 = vld [vmem:[%s1523 + $0xb2] sm:$0xff]
      %v1796 = vld [vmem:[%s1523 + $0xc2] sm:$0xff]
      %v1797 = vld [vmem:[%s1523 + $0xca] sm:$0xff]
      %v1798 = vld [vmem:[%s1523 + $0xda] sm:$0xff]
      %v1799 = vld [vmem:[%s1523 + $0xe2] sm:$0xff]
      %v1800 = vld [vmem:[%s1523 + $0xf2] sm:$0xff]
      %v1801 = vld [vmem:[%s1523 + $0xfa] sm:$0xff]
      %v1802 = vld [vmem:[%s1523 + $0x10a] sm:$0xff]
      %v1803 = vld [vmem:[%s1523 + $0x112] sm:$0xff]
      %v1804 = vld [vmem:[%s1523 + $0x122] sm:$0xff]
      %v1805 = vld [vmem:[%s1523 + $0x12a] sm:$0xff]
      %v1806 = vld [vmem:[%s1523 + $0x13a] sm:$0xff]
      %v1807 = vld [vmem:[%s1523 + $0x142] sm:$0xff]
      %v1808 = vld [vmem:[%s1523 + $0x152] sm:$0xff]
      %v1809 = vld [vmem:[%s1523 + $0x15a] sm:$0xff]
      %v1810 = vld [vmem:[%s1523 + $0x16a] sm:$0xff]
      %v1811 = vld [vmem:[%s1523 + $0x172] sm:$0xff]
      %1812 = vst.msk [vmem:[#allocation3 + $0x20] sm:$0xff] %vm279, %v1780
      %1813 = vst.msk [vmem:[#allocation3 + $0x48] sm:$0xff] %vm279, %v1781
      %1814 = vst.msk [vmem:[#allocation3 + $0x70] sm:$0xff] %vm279, %v1782
      %1815 = vst.msk [vmem:[#allocation3 + $0x98] sm:$0xff] %vm279, %v1783
      %1816 = vst.msk [vmem:[#allocation3 + $0xc0] sm:$0xff] %vm279, %v1784
      %1817 = vst.msk [vmem:[#allocation3 + $0xe8] sm:$0xff] %vm279, %v1785
      %1818 = vst.msk [vmem:[#allocation3 + $0x110] sm:$0xff] %vm279, %v1786
      %1819 = vst.msk [vmem:[#allocation3 + $0x138] sm:$0xff] %vm279, %v1787
      %1820 = vst.msk [vmem:[#allocation3 + $0x160] sm:$0xff] %vm279, %v1788
      %1821 = vst.msk [vmem:[#allocation3 + $0x188] sm:$0xff] %vm279, %v1789
      %1822 = vst.msk [vmem:[#allocation3 + $0x1b0] sm:$0xff] %vm279, %v1790
      %1823 = vst.msk [vmem:[#allocation3 + $0x1d8] sm:$0xff] %vm279, %v1791
      %1824 = vst.msk [vmem:[#allocation3 + $0x200] sm:$0xff] %vm279, %v1792
      %1825 = vst.msk [vmem:[#allocation3 + $0x228] sm:$0xff] %vm279, %v1793
      %1826 = vst.msk [vmem:[#allocation3 + $0x250] sm:$0xff] %vm279, %v1794
      %1827 = vst.msk [vmem:[#allocation3 + $0x278] sm:$0xff] %vm279, %v1795
      %1828 = vst.msk [vmem:[#allocation3 + $0x2a0] sm:$0xff] %vm279, %v1796
      %1829 = vst.msk [vmem:[#allocation3 + $0x2c8] sm:$0xff] %vm279, %v1797
      %1830 = vst.msk [vmem:[#allocation3 + $0x2f0] sm:$0xff] %vm279, %v1798
      %1831 = vst.msk [vmem:[#allocation3 + $0x318] sm:$0xff] %vm279, %v1799
      %1832 = vst.msk [vmem:[#allocation3 + $0x340] sm:$0xff] %vm279, %v1800
      %1833 = vst.msk [vmem:[#allocation3 + $0x368] sm:$0xff] %vm279, %v1801
      %1834 = vst.msk [vmem:[#allocation3 + $0x390] sm:$0xff] %vm279, %v1802
      %1835 = vst.msk [vmem:[#allocation3 + $0x3b8] sm:$0xff] %vm279, %v1803
      %1836 = vst.msk [vmem:[#allocation3 + $0x3e0] sm:$0xff] %vm279, %v1804
      %1837 = vst.msk [vmem:[#allocation3 + $0x408] sm:$0xff] %vm279, %v1805
      %1838 = vst.msk [vmem:[#allocation3 + $0x430] sm:$0xff] %vm279, %v1806
      %1839 = vst.msk [vmem:[#allocation3 + $0x458] sm:$0xff] %vm279, %v1807
      %1840 = vst.msk [vmem:[#allocation3 + $0x480] sm:$0xff] %vm279, %v1808
      %1841 = vst.msk [vmem:[#allocation3 + $0x4a8] sm:$0xff] %vm279, %v1809
      %1842 = vst.msk [vmem:[#allocation3 + $0x4d0] sm:$0xff] %vm279, %v1810
      %1843 = vst.msk [vmem:[#allocation3 + $0x4f8] sm:$0xff] %vm279, %v1811
      %v1844 = vld [vmem:[#allocation3] sm:$0xff]
      %v1845 = vld [vmem:[#allocation3 + $0x8] sm:$0xff]
      %v1846 = vld [vmem:[#allocation3 + $0x10] sm:$0xff]
      %v1847 = vld [vmem:[#allocation3 + $0x18] sm:$0xff]
      %v1848 = vld [vmem:[#allocation3 + $0x20] sm:$0xff]
      %v1849 = vld [vmem:[#allocation3 + $0x28] sm:$0xff]
      %v1850 = vld [vmem:[#allocation3 + $0x30] sm:$0xff]
      %v1851 = vld [vmem:[#allocation3 + $0x38] sm:$0xff]
      %v1852 = vld [vmem:[#allocation3 + $0x40] sm:$0xff]
      %v1853 = vld [vmem:[#allocation3 + $0x48] sm:$0xff]
      %v1854 = vld [vmem:[#allocation3 + $0x50] sm:$0xff]
      %v1855 = vld [vmem:[#allocation3 + $0x58] sm:$0xff]
      %v1856 = vld [vmem:[#allocation3 + $0x60] sm:$0xff]
      %v1857 = vld [vmem:[#allocation3 + $0x68] sm:$0xff]
      %v1858 = vld [vmem:[#allocation3 + $0x70] sm:$0xff]
      %v1859 = vld [vmem:[#allocation3 + $0x78] sm:$0xff]
      %v1860 = vld [vmem:[#allocation3 + $0x80] sm:$0xff]
      %v1861 = vld [vmem:[#allocation3 + $0x88] sm:$0xff]
      %v1862 = vld [vmem:[#allocation3 + $0x90] sm:$0xff]
      %v1863 = vld [vmem:[#allocation3 + $0x98] sm:$0xff]
      %v1864 = vld [vmem:[#allocation3 + $0xa0] sm:$0xff]
      %v1865 = vld [vmem:[#allocation3 + $0xa8] sm:$0xff]
      %v1866 = vld [vmem:[#allocation3 + $0xb0] sm:$0xff]
      %v1867 = vld [vmem:[#allocation3 + $0xb8] sm:$0xff]
      %v1868 = vld [vmem:[#allocation3 + $0xc0] sm:$0xff]
      %v1869 = vld [vmem:[#allocation3 + $0xc8] sm:$0xff]
      %v1870 = vld [vmem:[#allocation3 + $0xd0] sm:$0xff]
      %v1871 = vld [vmem:[#allocation3 + $0xd8] sm:$0xff]
      %v1872 = vld [vmem:[#allocation3 + $0xe0] sm:$0xff]
      %v1873 = vld [vmem:[#allocation3 + $0xe8] sm:$0xff]
      %v1874 = vld [vmem:[#allocation3 + $0xf0] sm:$0xff]
      %v1875 = vld [vmem:[#allocation3 + $0xf8] sm:$0xff]
      %v1876 = vld [vmem:[#allocation3 + $0x100] sm:$0xff]
      %v1877 = vld [vmem:[#allocation3 + $0x108] sm:$0xff]
      %v1878 = vld [vmem:[#allocation3 + $0x110] sm:$0xff]
      %v1879 = vld [vmem:[#allocation3 + $0x118] sm:$0xff]
      %v1880 = vld [vmem:[#allocation3 + $0x120] sm:$0xff]
      %v1881 = vld [vmem:[#allocation3 + $0x128] sm:$0xff]
      %v1882 = vld [vmem:[#allocation3 + $0x130] sm:$0xff]
      %v1883 = vld [vmem:[#allocation3 + $0x138] sm:$0xff]
      %v1884 = vld [vmem:[#allocation3 + $0x140] sm:$0xff]
      %v1885 = vld [vmem:[#allocation3 + $0x148] sm:$0xff]
      %v1886 = vld [vmem:[#allocation3 + $0x150] sm:$0xff]
      %v1887 = vld [vmem:[#allocation3 + $0x158] sm:$0xff]
      %v1888 = vld [vmem:[#allocation3 + $0x160] sm:$0xff]
      %v1889 = vld [vmem:[#allocation3 + $0x168] sm:$0xff]
      %v1890 = vld [vmem:[#allocation3 + $0x170] sm:$0xff]
      %v1891 = vld [vmem:[#allocation3 + $0x178] sm:$0xff]
      %v1892 = vld [vmem:[#allocation3 + $0x180] sm:$0xff]
      %v1893 = vld [vmem:[#allocation3 + $0x188] sm:$0xff]
      %v1894 = vld [vmem:[#allocation3 + $0x190] sm:$0xff]
      %v1895 = vld [vmem:[#allocation3 + $0x198] sm:$0xff]
      %v1896 = vld [vmem:[#allocation3 + $0x1a0] sm:$0xff]
      %v1897 = vld [vmem:[#allocation3 + $0x1a8] sm:$0xff]
      %v1898 = vld [vmem:[#allocation3 + $0x1b0] sm:$0xff]
      %v1899 = vld [vmem:[#allocation3 + $0x1b8] sm:$0xff]
      %v1900 = vld [vmem:[#allocation3 + $0x1c0] sm:$0xff]
      %v1901 = vld [vmem:[#allocation3 + $0x1c8] sm:$0xff]
      %v1902 = vld [vmem:[#allocation3 + $0x1d0] sm:$0xff]
      %v1903 = vld [vmem:[#allocation3 + $0x1d8] sm:$0xff]
      %v1904 = vld [vmem:[#allocation3 + $0x1e0] sm:$0xff]
      %v1905 = vld [vmem:[#allocation3 + $0x1e8] sm:$0xff]
      %v1906 = vld [vmem:[#allocation3 + $0x1f0] sm:$0xff]
      %v1907 = vld [vmem:[#allocation3 + $0x1f8] sm:$0xff]
      %v1908 = vld [vmem:[#allocation3 + $0x200] sm:$0xff]
      %v1909 = vld [vmem:[#allocation3 + $0x208] sm:$0xff]
      %v1910 = vld [vmem:[#allocation3 + $0x210] sm:$0xff]
      %v1911 = vld [vmem:[#allocation3 + $0x218] sm:$0xff]
      %v1912 = vld [vmem:[#allocation3 + $0x220] sm:$0xff]
      %v1913 = vld [vmem:[#allocation3 + $0x228] sm:$0xff]
      %v1914 = vld [vmem:[#allocation3 + $0x230] sm:$0xff]
      %v1915 = vld [vmem:[#allocation3 + $0x238] sm:$0xff]
      %v1916 = vld [vmem:[#allocation3 + $0x240] sm:$0xff]
      %v1917 = vld [vmem:[#allocation3 + $0x248] sm:$0xff]
      %v1918 = vld [vmem:[#allocation3 + $0x250] sm:$0xff]
      %v1919 = vld [vmem:[#allocation3 + $0x258] sm:$0xff]
      %v1920 = vld [vmem:[#allocation3 + $0x260] sm:$0xff]
      %v1921 = vld [vmem:[#allocation3 + $0x268] sm:$0xff]
      %v1922 = vld [vmem:[#allocation3 + $0x270] sm:$0xff]
      %v1923 = vld [vmem:[#allocation3 + $0x278] sm:$0xff]
      %v1924 = vld [vmem:[#allocation3 + $0x280] sm:$0xff]
      %v1925 = vld [vmem:[#allocation3 + $0x288] sm:$0xff]
      %v1926 = vld [vmem:[#allocation3 + $0x290] sm:$0xff]
      %v1927 = vld [vmem:[#allocation3 + $0x298] sm:$0xff]
      %v1928 = vld [vmem:[#allocation3 + $0x2a0] sm:$0xff]
      %v1929 = vld [vmem:[#allocation3 + $0x2a8] sm:$0xff]
      %v1930 = vld [vmem:[#allocation3 + $0x2b0] sm:$0xff]
      %v1931 = vld [vmem:[#allocation3 + $0x2b8] sm:$0xff]
      %v1932 = vld [vmem:[#allocation3 + $0x2c0] sm:$0xff]
      %v1933 = vld [vmem:[#allocation3 + $0x2c8] sm:$0xff]
      %v1934 = vld [vmem:[#allocation3 + $0x2d0] sm:$0xff]
      %v1935 = vld [vmem:[#allocation3 + $0x2d8] sm:$0xff]
      %v1936 = vld [vmem:[#allocation3 + $0x2e0] sm:$0xff]
      %v1937 = vld [vmem:[#allocation3 + $0x2e8] sm:$0xff]
      %v1938 = vld [vmem:[#allocation3 + $0x2f0] sm:$0xff]
      %v1939 = vld [vmem:[#allocation3 + $0x2f8] sm:$0xff]
      %v1940 = vld [vmem:[#allocation3 + $0x300] sm:$0xff]
      %v1941 = vld [vmem:[#allocation3 + $0x308] sm:$0xff]
      %v1942 = vld [vmem:[#allocation3 + $0x310] sm:$0xff]
      %v1943 = vld [vmem:[#allocation3 + $0x318] sm:$0xff]
      %v1944 = vld [vmem:[#allocation3 + $0x320] sm:$0xff]
      %v1945 = vld [vmem:[#allocation3 + $0x328] sm:$0xff]
      %v1946 = vld [vmem:[#allocation3 + $0x330] sm:$0xff]
      %v1947 = vld [vmem:[#allocation3 + $0x338] sm:$0xff]
      %v1948 = vld [vmem:[#allocation3 + $0x340] sm:$0xff]
      %v1949 = vld [vmem:[#allocation3 + $0x348] sm:$0xff]
      %v1950 = vld [vmem:[#allocation3 + $0x350] sm:$0xff]
      %v1951 = vld [vmem:[#allocation3 + $0x358] sm:$0xff]
      %v1952 = vld [vmem:[#allocation3 + $0x360] sm:$0xff]
      %v1953 = vld [vmem:[#allocation3 + $0x368] sm:$0xff]
      %v1954 = vld [vmem:[#allocation3 + $0x370] sm:$0xff]
      %v1955 = vld [vmem:[#allocation3 + $0x378] sm:$0xff]
      %v1956 = vld [vmem:[#allocation3 + $0x380] sm:$0xff]
      %v1957 = vld [vmem:[#allocation3 + $0x388] sm:$0xff]
      %v1958 = vld [vmem:[#allocation3 + $0x390] sm:$0xff]
      %v1959 = vld [vmem:[#allocation3 + $0x398] sm:$0xff]
      %v1960 = vld [vmem:[#allocation3 + $0x3a0] sm:$0xff]
      %v1961 = vld [vmem:[#allocation3 + $0x3a8] sm:$0xff]
      %v1962 = vld [vmem:[#allocation3 + $0x3b0] sm:$0xff]
      %v1963 = vld [vmem:[#allocation3 + $0x3b8] sm:$0xff]
      %v1964 = vld [vmem:[#allocation3 + $0x3c0] sm:$0xff]
      %v1965 = vld [vmem:[#allocation3 + $0x3c8] sm:$0xff]
      %v1966 = vld [vmem:[#allocation3 + $0x3d0] sm:$0xff]
      %v1967 = vld [vmem:[#allocation3 + $0x3d8] sm:$0xff]
      %v1968 = vld [vmem:[#allocation3 + $0x3e0] sm:$0xff]
      %v1969 = vld [vmem:[#allocation3 + $0x3e8] sm:$0xff]
      %v1970 = vld [vmem:[#allocation3 + $0x3f0] sm:$0xff]
      %v1971 = vld [vmem:[#allocation3 + $0x3f8] sm:$0xff]
      %v1972 = vld [vmem:[#allocation3 + $0x400] sm:$0xff]
      %v1973 = vld [vmem:[#allocation3 + $0x408] sm:$0xff]
      %v1974 = vld [vmem:[#allocation3 + $0x410] sm:$0xff]
      %v1975 = vld [vmem:[#allocation3 + $0x418] sm:$0xff]
      %v1976 = vld [vmem:[#allocation3 + $0x420] sm:$0xff]
      %v1977 = vld [vmem:[#allocation3 + $0x428] sm:$0xff]
      %v1978 = vld [vmem:[#allocation3 + $0x430] sm:$0xff]
      %v1979 = vld [vmem:[#allocation3 + $0x438] sm:$0xff]
      %v1980 = vld [vmem:[#allocation3 + $0x440] sm:$0xff]
      %v1981 = vld [vmem:[#allocation3 + $0x448] sm:$0xff]
      %v1982 = vld [vmem:[#allocation3 + $0x450] sm:$0xff]
      %v1983 = vld [vmem:[#allocation3 + $0x458] sm:$0xff]
      %v1984 = vld [vmem:[#allocation3 + $0x460] sm:$0xff]
      %v1985 = vld [vmem:[#allocation3 + $0x468] sm:$0xff]
      %v1986 = vld [vmem:[#allocation3 + $0x470] sm:$0xff]
      %v1987 = vld [vmem:[#allocation3 + $0x478] sm:$0xff]
      %v1988 = vld [vmem:[#allocation3 + $0x480] sm:$0xff]
      %v1989 = vld [vmem:[#allocation3 + $0x488] sm:$0xff]
      %v1990 = vld [vmem:[#allocation3 + $0x490] sm:$0xff]
      %v1991 = vld [vmem:[#allocation3 + $0x498] sm:$0xff]
      %v1992 = vld [vmem:[#allocation3 + $0x4a0] sm:$0xff]
      %v1993 = vld [vmem:[#allocation3 + $0x4a8] sm:$0xff]
      %v1994 = vld [vmem:[#allocation3 + $0x4b0] sm:$0xff]
      %v1995 = vld [vmem:[#allocation3 + $0x4b8] sm:$0xff]
      %v1996 = vld [vmem:[#allocation3 + $0x4c0] sm:$0xff]
      %v1997 = vld [vmem:[#allocation3 + $0x4c8] sm:$0xff]
      %v1998 = vld [vmem:[#allocation3 + $0x4d0] sm:$0xff]
      %v1999 = vld [vmem:[#allocation3 + $0x4d8] sm:$0xff]
      %v2000 = vld [vmem:[#allocation3 + $0x4e0] sm:$0xff]
      %v2001 = vld [vmem:[#allocation3 + $0x4e8] sm:$0xff]
      %v2002 = vld [vmem:[#allocation3 + $0x4f0] sm:$0xff]
      %v2003 = vld [vmem:[#allocation3 + $0x4f8] sm:$0xff]
      %v2004 = vld [vmem:[%s3] sm:$0xff]
      %v2005 = vld [vmem:[%s3 + $0x8] sm:$0xff]
      %v2006 = vld [vmem:[%s3 + $0x10] sm:$0xff]
      %v2007 = vld [vmem:[%s3 + $0x18] sm:$0xff]
      %v2008 = vld [vmem:[%s3 + $0x20] sm:$0xff]
      %v2009 = vld [vmem:[%s3 + $0x28] sm:$0xff]
      %v2010 = vld [vmem:[%s3 + $0x30] sm:$0xff]
      %v2011 = vld [vmem:[%s3 + $0x38] sm:$0xff]
      %v2012 = vld [vmem:[%s3 + $0x40] sm:$0xff]
      %v2013 = vld [vmem:[%s3 + $0x48] sm:$0xff]
      %v2014 = vld [vmem:[%s3 + $0x50] sm:$0xff]
      %v2015 = vld [vmem:[%s3 + $0x58] sm:$0xff]
      %v2016 = vld [vmem:[%s3 + $0x60] sm:$0xff]
      %v2017 = vld [vmem:[%s3 + $0x68] sm:$0xff]
      %v2018 = vld [vmem:[%s3 + $0x70] sm:$0xff]
      %v2019 = vld [vmem:[%s3 + $0x78] sm:$0xff]
      %v2020 = vld [vmem:[%s3 + $0x80] sm:$0xff]
      %v2021 = vld [vmem:[%s3 + $0x88] sm:$0xff]
      %v2022 = vld [vmem:[%s3 + $0x90] sm:$0xff]
      %v2023 = vld [vmem:[%s3 + $0x98] sm:$0xff]
      %v2024 = vld [vmem:[%s3 + $0xa0] sm:$0xff]
      %v2025 = vld [vmem:[%s3 + $0xa8] sm:$0xff]
      %v2026 = vld [vmem:[%s3 + $0xb0] sm:$0xff]
      %v2027 = vld [vmem:[%s3 + $0xb8] sm:$0xff]
      %v2028 = vld [vmem:[%s3 + $0xc0] sm:$0xff]
      %v2029 = vld [vmem:[%s3 + $0xc8] sm:$0xff]
      %v2030 = vld [vmem:[%s3 + $0xd0] sm:$0xff]
      %v2031 = vld [vmem:[%s3 + $0xd8] sm:$0xff]
      %v2032 = vld [vmem:[%s3 + $0xe0] sm:$0xff]
      %v2033 = vld [vmem:[%s3 + $0xe8] sm:$0xff]
      %v2034 = vld [vmem:[%s3 + $0xf0] sm:$0xff]
      %v2035 = vld [vmem:[%s3 + $0xf8] sm:$0xff]
      %v2036 = vld [vmem:[%s3 + $0x100] sm:$0xff]
      %v2037 = vld [vmem:[%s3 + $0x108] sm:$0xff]
      %v2038 = vld [vmem:[%s3 + $0x110] sm:$0xff]
      %v2039 = vld [vmem:[%s3 + $0x118] sm:$0xff]
      %v2040 = vld [vmem:[%s3 + $0x120] sm:$0xff]
      %v2041 = vld [vmem:[%s3 + $0x128] sm:$0xff]
      %v2042 = vld [vmem:[%s3 + $0x130] sm:$0xff]
      %v2043 = vld [vmem:[%s3 + $0x138] sm:$0xff]
      %v2044 = vld [vmem:[%s3 + $0x140] sm:$0xff]
      %v2045 = vld [vmem:[%s3 + $0x148] sm:$0xff]
      %v2046 = vld [vmem:[%s3 + $0x150] sm:$0xff]
      %v2047 = vld [vmem:[%s3 + $0x158] sm:$0xff]
      %v2048 = vld [vmem:[%s3 + $0x160] sm:$0xff]
      %v2049 = vld [vmem:[%s3 + $0x168] sm:$0xff]
      %v2050 = vld [vmem:[%s3 + $0x170] sm:$0xff]
      %v2051 = vld [vmem:[%s3 + $0x178] sm:$0xff]
      %v2052 = vld [vmem:[%s3 + $0x180] sm:$0xff]
      %v2053 = vld [vmem:[%s3 + $0x188] sm:$0xff]
      %v2054 = vld [vmem:[%s3 + $0x190] sm:$0xff]
      %v2055 = vld [vmem:[%s3 + $0x198] sm:$0xff]
      %v2056 = vld [vmem:[%s3 + $0x1a0] sm:$0xff]
      %v2057 = vld [vmem:[%s3 + $0x1a8] sm:$0xff]
      %v2058 = vld [vmem:[%s3 + $0x1b0] sm:$0xff]
      %v2059 = vld [vmem:[%s3 + $0x1b8] sm:$0xff]
      %v2060 = vld [vmem:[%s3 + $0x1c0] sm:$0xff]
      %v2061 = vld [vmem:[%s3 + $0x1c8] sm:$0xff]
      %v2062 = vld [vmem:[%s3 + $0x1d0] sm:$0xff]
      %v2063 = vld [vmem:[%s3 + $0x1d8] sm:$0xff]
      %v2064 = vld [vmem:[%s3 + $0x1e0] sm:$0xff]
      %v2065 = vld [vmem:[%s3 + $0x1e8] sm:$0xff]
      %v2066 = vld [vmem:[%s3 + $0x1f0] sm:$0xff]
      %v2067 = vld [vmem:[%s3 + $0x1f8] sm:$0xff]
      %v2068 = vld [vmem:[%s3 + $0x200] sm:$0xff]
      %v2069 = vld [vmem:[%s3 + $0x208] sm:$0xff]
      %v2070 = vld [vmem:[%s3 + $0x210] sm:$0xff]
      %v2071 = vld [vmem:[%s3 + $0x218] sm:$0xff]
      %v2072 = vld [vmem:[%s3 + $0x220] sm:$0xff]
      %v2073 = vld [vmem:[%s3 + $0x228] sm:$0xff]
      %v2074 = vld [vmem:[%s3 + $0x230] sm:$0xff]
      %v2075 = vld [vmem:[%s3 + $0x238] sm:$0xff]
      %v2076 = vld [vmem:[%s4] sm:$0x1]
      %v2078 = vlaneseq
      %v2079 = vshrl.u32 %v2078, 7
      %v2080 = vsub.s32 0, %v2079
      %v2081 = vrot.slane %v2076, %v2080
      %v2084 = vsel %vm279, %v1848, 0
      %v2087 = vsel %vm279, %v1853, 0
      %v2090 = vsel %vm279, %v1858, 0
      %v2093 = vsel %vm279, %v1863, 0
      %v2096 = vsel %vm279, %v1868, 0
      %v2099 = vsel %vm279, %v1873, 0
      %v2102 = vsel %vm279, %v1878, 0
      %v2105 = vsel %vm279, %v1883, 0
      %v2108 = vsel %vm279, %v1888, 0
      %v2111 = vsel %vm279, %v1893, 0
      %v2114 = vsel %vm279, %v1898, 0
      %v2117 = vsel %vm279, %v1903, 0
      %v2120 = vsel %vm279, %v1908, 0
      %v2123 = vsel %vm279, %v1913, 0
      %v2126 = vsel %vm279, %v1918, 0
      %v2129 = vsel %vm279, %v1923, 0
      %v2132 = vsel %vm279, %v1928, 0
      %v2135 = vsel %vm279, %v1933, 0
      %v2138 = vsel %vm279, %v1938, 0
      %v2141 = vsel %vm279, %v1943, 0
      %v2144 = vsel %vm279, %v1948, 0
      %v2147 = vsel %vm279, %v1953, 0
      %v2150 = vsel %vm279, %v1958, 0
      %v2153 = vsel %vm279, %v1963, 0
      %v2156 = vsel %vm279, %v1968, 0
      %v2159 = vsel %vm279, %v1973, 0
      %v2162 = vsel %vm279, %v1978, 0
      %v2165 = vsel %vm279, %v1983, 0
      %v2168 = vsel %vm279, %v1988, 0
      %v2171 = vsel %vm279, %v1993, 0
      %v2174 = vsel %vm279, %v1998, 0
      %v2177 = vsel %vm279, %v2003, 0
      %2179 = vmatprep.subr.mxu0 0.0
      %2180 = vmatpush1.msra.mxu0 %v2004
      %2181 = vmatprep.subr.mxu0 0.0
      %2182 = vmatpush1.msra.mxu0 %v2005
      %2183 = vmatprep.subr.mxu0 0.0
      %2184 = vmatpush1.msra.mxu0 %v2006
      %2185 = vmatprep.subr.mxu0 0.0
      %2186 = vmatpush1.msra.mxu0 %v2007
      %2187 = vmatprep.subr.mxu0 0.0
      %2188 = vmatpush1.msra.mxu0 %v2008
      %2189 = vmatprep.subr.mxu0 0.0
      %2190 = vmatpush1.msra.mxu0 %v2009
      %2191 = vmatprep.subr.mxu0 0.0
      %2192 = vmatpush1.msra.mxu0 %v2010
      %2193 = vmatprep.subr.mxu0 0.0
      %2194 = vmatpush1.msra.mxu0 %v2011
      %2195 = vmatprep.subr.mxu0 0.0
      %2196 = vmatpush1.msra.mxu0 %v2012
      %2197 = vmatprep.subr.mxu0 0.0
      %2198 = vmatpush1.msra.mxu0 %v2013
      %2199 = vmatprep.subr.mxu0 0.0
      %2200 = vmatpush1.msra.mxu0 %v2014
      %2201 = vmatprep.subr.mxu0 0.0
      %2202 = vmatpush1.msra.mxu0 %v2015
      %2203 = vmatprep.subr.mxu0 0.0
      %2204 = vmatpush1.msra.mxu0 %v2016
      %2205 = vmatprep.subr.mxu0 0.0
      %2206 = vmatpush1.msra.mxu0 %v2017
      %2207 = vmatprep.subr.mxu0 0.0
      %2208 = vmatpush1.msra.mxu0 %v2018
      %2209 = vmatprep.subr.mxu0 0.0
      %2210 = vmatpush1.msra.mxu0 %v2019
      %2211 = vmatprep.subr.mxu0 0.0
      %2212 = vmatpush1.msra.mxu0 %v2020
      %2213 = vmatprep.subr.mxu0 0.0
      %2214 = vmatpush1.msra.mxu0 %v2021
      %2215 = vmatprep.subr.mxu0 0.0
      %2216 = vmatpush1.msra.mxu0 %v2022
      %2217 = vmatprep.subr.mxu0 0.0
      %2218 = vmatpush1.msra.mxu0 %v2023
      %2219 = vmatprep.subr.mxu0 0.0
      %2220 = vmatpush1.msra.mxu0 %v2024
      %2221 = vmatprep.subr.mxu0 0.0
      %2222 = vmatpush1.msra.mxu0 %v2025
      %2223 = vmatprep.subr.mxu0 0.0
      %2224 = vmatpush1.msra.mxu0 %v2026
      %2225 = vmatprep.subr.mxu0 0.0
      %2226 = vmatpush1.msra.mxu0 %v2027
      %2227 = vmatprep.subr.mxu0 0.0
      %2228 = vmatpush1.msra.mxu0 %v2028
      %2229 = vmatprep.subr.mxu0 0.0
      %2230 = vmatpush1.msra.mxu0 %v2029
      %2231 = vmatprep.subr.mxu0 0.0
      %2232 = vmatpush1.msra.mxu0 %v2030
      %2233 = vmatprep.subr.mxu0 0.0
      %2234 = vmatpush1.msra.mxu0 %v2031
      %2235 = vmatprep.subr.mxu0 0.0
      %2236 = vmatpush1.msra.mxu0 %v2032
      %2237 = vmatprep.subr.mxu0 0.0
      %2238 = vmatpush1.msra.mxu0 %v2033
      %2239 = vmatprep.subr.mxu0 0.0
      %2240 = vmatpush1.msra.mxu0 %v2034
      %2241 = vmatprep.subr.mxu0 0.0
      %2242 = vmatpush1.msra.mxu0 %v2035
      %2243 = vmatprep.mubr.f32.mxu0 %v1845
      %2244 = vmatmul.mubr.f32.gmra.mrb[0].mxu0 %v1844
      %v2245 = vpop.f32.mrb[0].mxu0
      %v2246 = vadd.f32 %v2081, %v2245
      %v2247 = vpop.f32.mrb[0].mxu0
      %2248 = vmatprep.mubr.f32.mxu0 %v1850
      %2249 = vmatmul.mubr.f32.gmra.mrb[0].mxu0 %v1849
      %v2250 = vpop.f32.mrb[0].mxu0
      %v2251 = vadd.f32 %v2081, %v2250
      %v2252 = vpop.f32.mrb[0].mxu0
      %2253 = vmatprep.mubr.f32.mxu0 %v1855
      %2254 = vmatmul.mubr.f32.gmra.mrb[0].mxu0 %v1854
      %v2255 = vpop.f32.mrb[0].mxu0
      %v2256 = vadd.f32 %v2081, %v2255
      %v2257 = vpop.f32.mrb[0].mxu0
      %2258 = vmatprep.mubr.f32.mxu0 %v1860
      %2259 = vmatmul.mubr.f32.gmra.mrb[0].mxu0 %v1859
      %v2260 = vpop.f32.mrb[0].mxu0
      %v2261 = vadd.f32 %v2081, %v2260
      %v2262 = vpop.f32.mrb[0].mxu0
      %2263 = vmatprep.mubr.f32.mxu0 %v1865
      %2264 = vmatmul.mubr.f32.gmra.mrb[0].mxu0 %v1864
      %v2265 = vpop.f32.mrb[0].mxu0
      %v2266 = vadd.f32 %v2081, %v2265
      %v2267 = vpop.f32.mrb[0].mxu0
      %2268 = vmatprep.mubr.f32.mxu0 %v1870
      %2269 = vmatmul.mubr.f32.gmra.mrb[0].mxu0 %v1869
      %v2270 = vpop.f32.mrb[0].mxu0
      %v2271 = vadd.f32 %v2081, %v2270
      %v2272 = vpop.f32.mrb[0].mxu0
      %2273 = vmatprep.mubr.f32.mxu0 %v1875
      %2274 = vmatmul.mubr.f32.gmra.mrb[0].mxu0 %v1874
      %v2275 = vpop.f32.mrb[0].mxu0
      %v2276 = vadd.f32 %v2081, %v2275
      %v2277 = vpop.f32.mrb[0].mxu0
      %2278 = vmatprep.mubr.f32.mxu0 %v1880
      %2279 = vmatmul.mubr.f32.gmra.mrb[0].mxu0 %v1879
      %v2280 = vpop.f32.mrb[0].mxu0
      %v2281 = vadd.f32 %v2081, %v2280
      %v2282 = vpop.f32.mrb[0].mxu0
      %2283 = vmatprep.mubr.f32.mxu0 %v1885
      %2284 = vmatmul.mubr.f32.gmra.mrb[0].mxu0 %v1884
      %v2285 = vpop.f32.mrb[0].mxu0
      %v2286 = vadd.f32 %v2081, %v2285
      %v2287 = vpop.f32.mrb[0].mxu0
      %2288 = vmatprep.mubr.f32.mxu0 %v1890
      %2289 = vmatmul.mubr.f32.gmra.mrb[0].mxu0 %v1889
      %v2290 = vpop.f32.mrb[0].mxu0
      %v2291 = vadd.f32 %v2081, %v2290
      %v2292 = vpop.f32.mrb[0].mxu0
      %2293 = vmatprep.mubr.f32.mxu0 %v1895
      %2294 = vmatmul.mubr.f32.gmra.mrb[0].mxu0 %v1894
      %v2295 = vpop.f32.mrb[0].mxu0
      %v2296 = vadd.f32 %v2081, %v2295
      %v2297 = vpop.f32.mrb[0].mxu0
      %2298 = vmatprep.mubr.f32.mxu0 %v1900
      %2299 = vmatmul.mubr.f32.gmra.mrb[0].mxu0 %v1899
      %v2300 = vpop.f32.mrb[0].mxu0
      %v2301 = vadd.f32 %v2081, %v2300
      %v2302 = vpop.f32.mrb[0].mxu0
      %2303 = vmatprep.mubr.f32.mxu0 %v1905
      %2304 = vmatmul.mubr.f32.gmra.mrb[0].mxu0 %v1904
      %v2305 = vpop.f32.mrb[0].mxu0
      %v2306 = vadd.f32 %v2081, %v2305
      %v2307 = vpop.f32.mrb[0].mxu0
      %2308 = vmatprep.mubr.f32.mxu0 %v1910
      %2309 = vmatmul.mubr.f32.gmra.mrb[0].mxu0 %v1909
      %v2310 = vpop.f32.mrb[0].mxu0
      %v2311 = vadd.f32 %v2081, %v2310
      %v2312 = vpop.f32.mrb[0].mxu0
      %2313 = vmatprep.mubr.f32.mxu0 %v1915
      %2314 = vmatmul.mubr.f32.gmra.mrb[0].mxu0 %v1914
      %v2315 = vpop.f32.mrb[0].mxu0
      %v2316 = vadd.f32 %v2081, %v2315
      %v2317 = vpop.f32.mrb[0].mxu0
      %2318 = vmatprep.mubr.f32.mxu0 %v1920
      %2319 = vmatmul.mubr.f32.gmra.mrb[0].mxu0 %v1919
      %v2320 = vpop.f32.mrb[0].mxu0
      %v2321 = vadd.f32 %v2081, %v2320
      %v2322 = vpop.f32.mrb[0].mxu0
      %2323 = vmatprep.mubr.f32.mxu0 %v1925
      %2324 = vmatmul.mubr.f32.gmra.mrb[0].mxu0 %v1924
      %v2325 = vpop.f32.mrb[0].mxu0
      %v2326 = vadd.f32 %v2081, %v2325
      %v2327 = vpop.f32.mrb[0].mxu0
      %2328 = vmatprep.mubr.f32.mxu0 %v1930
      %2329 = vmatmul.mubr.f32.gmra.mrb[0].mxu0 %v1929
      %v2330 = vpop.f32.mrb[0].mxu0
      %v2331 = vadd.f32 %v2081, %v2330
      %v2332 = vpop.f32.mrb[0].mxu0
      %2333 = vmatprep.mubr.f32.mxu0 %v1935
      %2334 = vmatmul.mubr.f32.gmra.mrb[0].mxu0 %v1934
      %v2335 = vpop.f32.mrb[0].mxu0
      %v2336 = vadd.f32 %v2081, %v2335
      %v2337 = vpop.f32.mrb[0].mxu0
      %2338 = vmatprep.mubr.f32.mxu0 %v1940
      %2339 = vmatmul.mubr.f32.gmra.mrb[0].mxu0 %v1939
      %v2340 = vpop.f32.mrb[0].mxu0
      %v2341 = vadd.f32 %v2081, %v2340
      %v2342 = vpop.f32.mrb[0].mxu0
      %2343 = vmatprep.mubr.f32.mxu0 %v1945
      %2344 = vmatmul.mubr.f32.gmra.mrb[0].mxu0 %v1944
      %v2345 = vpop.f32.mrb[0].mxu0
      %v2346 = vadd.f32 %v2081, %v2345
      %v2347 = vpop.f32.mrb[0].mxu0
      %2348 = vmatprep.mubr.f32.mxu0 %v1950
      %2349 = vmatmul.mubr.f32.gmra.mrb[0].mxu0 %v1949
      %v2350 = vpop.f32.mrb[0].mxu0
      %v2351 = vadd.f32 %v2081, %v2350
      %v2352 = vpop.f32.mrb[0].mxu0
      %2353 = vmatprep.mubr.f32.mxu0 %v1955
      %2354 = vmatmul.mubr.f32.gmra.mrb[0].mxu0 %v1954
      %v2355 = vpop.f32.mrb[0].mxu0
      %v2356 = vadd.f32 %v2081, %v2355
      %v2357 = vpop.f32.mrb[0].mxu0
      %2358 = vmatprep.mubr.f32.mxu0 %v1960
      %2359 = vmatmul.mubr.f32.gmra.mrb[0].mxu0 %v1959
      %v2360 = vpop.f32.mrb[0].mxu0
      %v2361 = vadd.f32 %v2081, %v2360
      %v2362 = vpop.f32.mrb[0].mxu0
      %2363 = vmatprep.mubr.f32.mxu0 %v1965
      %2364 = vmatmul.mubr.f32.gmra.mrb[0].mxu0 %v1964
      %v2365 = vpop.f32.mrb[0].mxu0
      %v2366 = vadd.f32 %v2081, %v2365
      %v2367 = vpop.f32.mrb[0].mxu0
      %2368 = vmatprep.mubr.f32.mxu0 %v1970
      %2369 = vmatmul.mubr.f32.gmra.mrb[0].mxu0 %v1969
      %v2370 = vpop.f32.mrb[0].mxu0
      %v2371 = vadd.f32 %v2081, %v2370
      %v2372 = vpop.f32.mrb[0].mxu0
      %2373 = vmatprep.mubr.f32.mxu0 %v1975
      %2374 = vmatmul.mubr.f32.gmra.mrb[0].mxu0 %v1974
      %v2375 = vpop.f32.mrb[0].mxu0
      %v2376 = vadd.f32 %v2081, %v2375
      %v2377 = vpop.f32.mrb[0].mxu0
      %2378 = vmatprep.mubr.f32.mxu0 %v1980
      %2379 = vmatmul.mubr.f32.gmra.mrb[0].mxu0 %v1979
      %v2380 = vpop.f32.mrb[0].mxu0
      %v2381 = vadd.f32 %v2081, %v2380
      %v2382 = vpop.f32.mrb[0].mxu0
      %2383 = vmatprep.mubr.f32.mxu0 %v1985
      %2384 = vmatmul.mubr.f32.gmra.mrb[0].mxu0 %v1984
      %v2385 = vpop.f32.mrb[0].mxu0
      %v2386 = vadd.f32 %v2081, %v2385
      %v2387 = vpop.f32.mrb[0].mxu0
      %2388 = vmatprep.mubr.f32.mxu0 %v1990
      %2389 = vmatmul.mubr.f32.gmra.mrb[0].mxu0 %v1989
      %v2390 = vpop.f32.mrb[0].mxu0
      %v2391 = vadd.f32 %v2081, %v2390
      %v2392 = vpop.f32.mrb[0].mxu0
      %2393 = vmatprep.mubr.f32.mxu0 %v1995
      %2394 = vmatmul.mubr.f32.gmra.mrb[0].mxu0 %v1994
      %v2395 = vpop.f32.mrb[0].mxu0
      %v2396 = vadd.f32 %v2081, %v2395
      %v2397 = vpop.f32.mrb[0].mxu0
      %2398 = vmatprep.mubr.f32.mxu0 %v2000
      %2399 = vmatmul.mubr.f32.gmra.mrb[0].mxu0 %v1999
      %v2400 = vpop.f32.mrb[0].mxu0
      %v2401 = vadd.f32 %v2081, %v2400
      %v2402 = vpop.f32.mrb[0].mxu0
      %2403 = vdwg.mxu0
      %2404 = vmatprep.subr.mxu0 0.0
      %2405 = vmatpush1.msra.mxu0 %v2036
      %2406 = vmatprep.subr.mxu0 0.0
      %2407 = vmatpush1.msra.mxu0 %v2037
      %2408 = vmatprep.subr.mxu0 0.0
      %2409 = vmatpush1.msra.mxu0 %v2038
      %2410 = vmatprep.subr.mxu0 0.0
      %2411 = vmatpush1.msra.mxu0 %v2039
      %2412 = vmatprep.subr.mxu0 0.0
      %2413 = vmatpush1.msra.mxu0 %v2040
      %2414 = vmatprep.subr.mxu0 0.0
      %2415 = vmatpush1.msra.mxu0 %v2041
      %2416 = vmatprep.subr.mxu0 0.0
      %2417 = vmatpush1.msra.mxu0 %v2042
      %2418 = vmatprep.subr.mxu0 0.0
      %2419 = vmatpush1.msra.mxu0 %v2043
      %2420 = vmatprep.subr.mxu0 0.0
      %2421 = vmatpush1.msra.mxu0 %v2044
      %2422 = vmatprep.subr.mxu0 0.0
      %2423 = vmatpush1.msra.mxu0 %v2045
      %2424 = vmatprep.subr.mxu0 0.0
      %2425 = vmatpush1.msra.mxu0 %v2046
      %2426 = vmatprep.subr.mxu0 0.0
      %2427 = vmatpush1.msra.mxu0 %v2047
      %2428 = vmatprep.subr.mxu0 0.0
      %2429 = vmatpush1.msra.mxu0 %v2048
      %2430 = vmatprep.subr.mxu0 0.0
      %2431 = vmatpush1.msra.mxu0 %v2049
      %2432 = vmatprep.subr.mxu0 0.0
      %2433 = vmatpush1.msra.mxu0 %v2050
      %2434 = vmatprep.subr.mxu0 0.0
      %2435 = vmatpush1.msra.mxu0 %v2051
      %2436 = vmatprep.subr.mxu0 0.0
      %2437 = vmatpush1.msra.mxu0 %v2052
      %2438 = vmatprep.subr.mxu0 0.0
      %2439 = vmatpush1.msra.mxu0 %v2053
      %2440 = vmatprep.subr.mxu0 0.0
      %2441 = vmatpush1.msra.mxu0 %v2054
      %2442 = vmatprep.subr.mxu0 0.0
      %2443 = vmatpush1.msra.mxu0 %v2055
      %2444 = vmatprep.subr.mxu0 0.0
      %2445 = vmatpush1.msra.mxu0 %v2056
      %2446 = vmatprep.subr.mxu0 0.0
      %2447 = vmatpush1.msra.mxu0 %v2057
      %2448 = vmatprep.subr.mxu0 0.0
      %2449 = vmatpush1.msra.mxu0 %v2058
      %2450 = vmatprep.subr.mxu0 0.0
      %2451 = vmatpush1.msra.mxu0 %v2059
      %2452 = vmatprep.subr.mxu0 0.0
      %2453 = vmatpush1.msra.mxu0 %v2060
      %2454 = vmatprep.subr.mxu0 0.0
      %2455 = vmatpush1.msra.mxu0 %v2061
      %2456 = vmatprep.subr.mxu0 0.0
      %2457 = vmatpush1.msra.mxu0 %v2062
      %2458 = vmatprep.subr.mxu0 0.0
      %2459 = vmatpush1.msra.mxu0 %v2063
      %2460 = vmatprep.subr.mxu0 0.0
      %2461 = vmatpush1.msra.mxu0 %v2064
      %2462 = vmatprep.subr.mxu0 0.0
      %2463 = vmatpush1.msra.mxu0 %v2065
      %2464 = vmatprep.subr.mxu0 0.0
      %2465 = vmatpush1.msra.mxu0 %v2066
      %2466 = vmatprep.subr.mxu0 0.0
      %2467 = vmatpush1.msra.mxu0 %v2067
      %2468 = vmatprep.mubr.f32.mxu0 %v1847
      %2469 = vmatmul.mubr.f32.gmra.mrb[0].mxu0 %v1846
      %v2470 = vpop.f32.mrb[0].mxu0
      %v2471 = vadd.f32 %v2246, %v2470
      %v2472 = vpop.f32.mrb[0].mxu0
      %2473 = vmatprep.mubr.f32.mxu0 %v1852
      %2474 = vmatmul.mubr.f32.gmra.mrb[0].mxu0 %v1851
      %v2475 = vpop.f32.mrb[0].mxu0
      %v2476 = vadd.f32 %v2251, %v2475
      %v2477 = vpop.f32.mrb[0].mxu0
      %2478 = vmatprep.mubr.f32.mxu0 %v1857
      %2479 = vmatmul.mubr.f32.gmra.mrb[0].mxu0 %v1856
      %v2480 = vpop.f32.mrb[0].mxu0
      %v2481 = vadd.f32 %v2256, %v2480
      %v2482 = vpop.f32.mrb[0].mxu0
      %2483 = vmatprep.mubr.f32.mxu0 %v1862
      %2484 = vmatmul.mubr.f32.gmra.mrb[0].mxu0 %v1861
      %v2485 = vpop.f32.mrb[0].mxu0
      %v2486 = vadd.f32 %v2261, %v2485
      %v2487 = vpop.f32.mrb[0].mxu0
      %2488 = vmatprep.mubr.f32.mxu0 %v1867
      %2489 = vmatmul.mubr.f32.gmra.mrb[0].mxu0 %v1866
      %v2490 = vpop.f32.mrb[0].mxu0
      %v2491 = vadd.f32 %v2266, %v2490
      %v2492 = vpop.f32.mrb[0].mxu0
      %2493 = vmatprep.mubr.f32.mxu0 %v1872
      %2494 = vmatmul.mubr.f32.gmra.mrb[0].mxu0 %v1871
      %v2495 = vpop.f32.mrb[0].mxu0
      %v2496 = vadd.f32 %v2271, %v2495
      %v2497 = vpop.f32.mrb[0].mxu0
      %2498 = vmatprep.mubr.f32.mxu0 %v1877
      %2499 = vmatmul.mubr.f32.gmra.mrb[0].mxu0 %v1876
      %v2500 = vpop.f32.mrb[0].mxu0
      %v2501 = vadd.f32 %v2276, %v2500
      %v2502 = vpop.f32.mrb[0].mxu0
      %2503 = vmatprep.mubr.f32.mxu0 %v1882
      %2504 = vmatmul.mubr.f32.gmra.mrb[0].mxu0 %v1881
      %v2505 = vpop.f32.mrb[0].mxu0
      %v2506 = vadd.f32 %v2281, %v2505
      %v2507 = vpop.f32.mrb[0].mxu0
      %2508 = vmatprep.mubr.f32.mxu0 %v1887
      %2509 = vmatmul.mubr.f32.gmra.mrb[0].mxu0 %v1886
      %v2510 = vpop.f32.mrb[0].mxu0
      %v2511 = vadd.f32 %v2286, %v2510
      %v2512 = vpop.f32.mrb[0].mxu0
      %2513 = vmatprep.mubr.f32.mxu0 %v1892
      %2514 = vmatmul.mubr.f32.gmra.mrb[0].mxu0 %v1891
      %v2515 = vpop.f32.mrb[0].mxu0
      %v2516 = vadd.f32 %v2291, %v2515
      %v2517 = vpop.f32.mrb[0].mxu0
      %2518 = vmatprep.mubr.f32.mxu0 %v1897
      %2519 = vmatmul.mubr.f32.gmra.mrb[0].mxu0 %v1896
      %v2520 = vpop.f32.mrb[0].mxu0
      %v2521 = vadd.f32 %v2296, %v2520
      %v2522 = vpop.f32.mrb[0].mxu0
      %2523 = vmatprep.mubr.f32.mxu0 %v1902
      %2524 = vmatmul.mubr.f32.gmra.mrb[0].mxu0 %v1901
      %v2525 = vpop.f32.mrb[0].mxu0
      %v2526 = vadd.f32 %v2301, %v2525
      %v2527 = vpop.f32.mrb[0].mxu0
      %2528 = vmatprep.mubr.f32.mxu0 %v1907
      %2529 = vmatmul.mubr.f32.gmra.mrb[0].mxu0 %v1906
      %v2530 = vpop.f32.mrb[0].mxu0
      %v2531 = vadd.f32 %v2306, %v2530
      %v2532 = vpop.f32.mrb[0].mxu0
      %2533 = vmatprep.mubr.f32.mxu0 %v1912
      %2534 = vmatmul.mubr.f32.gmra.mrb[0].mxu0 %v1911
      %v2535 = vpop.f32.mrb[0].mxu0
      %v2536 = vadd.f32 %v2311, %v2535
      %v2537 = vpop.f32.mrb[0].mxu0
      %2538 = vmatprep.mubr.f32.mxu0 %v1917
      %2539 = vmatmul.mubr.f32.gmra.mrb[0].mxu0 %v1916
      %v2540 = vpop.f32.mrb[0].mxu0
      %v2541 = vadd.f32 %v2316, %v2540
      %v2542 = vpop.f32.mrb[0].mxu0
      %2543 = vmatprep.mubr.f32.mxu0 %v1922
      %2544 = vmatmul.mubr.f32.gmra.mrb[0].mxu0 %v1921
      %v2545 = vpop.f32.mrb[0].mxu0
      %v2546 = vadd.f32 %v2321, %v2545
      %v2547 = vpop.f32.mrb[0].mxu0
      %2548 = vmatprep.mubr.f32.mxu0 %v1927
      %2549 = vmatmul.mubr.f32.gmra.mrb[0].mxu0 %v1926
      %v2550 = vpop.f32.mrb[0].mxu0
      %v2551 = vadd.f32 %v2326, %v2550
      %v2552 = vpop.f32.mrb[0].mxu0
      %2553 = vmatprep.mubr.f32.mxu0 %v1932
      %2554 = vmatmul.mubr.f32.gmra.mrb[0].mxu0 %v1931
      %v2555 = vpop.f32.mrb[0].mxu0
      %v2556 = vadd.f32 %v2331, %v2555
      %v2557 = vpop.f32.mrb[0].mxu0
      %2558 = vmatprep.mubr.f32.mxu0 %v1937
      %2559 = vmatmul.mubr.f32.gmra.mrb[0].mxu0 %v1936
      %v2560 = vpop.f32.mrb[0].mxu0
      %v2561 = vadd.f32 %v2336, %v2560
      %v2562 = vpop.f32.mrb[0].mxu0
      %2563 = vmatprep.mubr.f32.mxu0 %v1942
      %2564 = vmatmul.mubr.f32.gmra.mrb[0].mxu0 %v1941
      %v2565 = vpop.f32.mrb[0].mxu0
      %v2566 = vadd.f32 %v2341, %v2565
      %v2567 = vpop.f32.mrb[0].mxu0
      %2568 = vmatprep.mubr.f32.mxu0 %v1947
      %2569 = vmatmul.mubr.f32.gmra.mrb[0].mxu0 %v1946
      %v2570 = vpop.f32.mrb[0].mxu0
      %v2571 = vadd.f32 %v2346, %v2570
      %v2572 = vpop.f32.mrb[0].mxu0
      %2573 = vmatprep.mubr.f32.mxu0 %v1952
      %2574 = vmatmul.mubr.f32.gmra.mrb[0].mxu0 %v1951
      %v2575 = vpop.f32.mrb[0].mxu0
      %v2576 = vadd.f32 %v2351, %v2575
      %v2577 = vpop.f32.mrb[0].mxu0
      %2578 = vmatprep.mubr.f32.mxu0 %v1957
      %2579 = vmatmul.mubr.f32.gmra.mrb[0].mxu0 %v1956
      %v2580 = vpop.f32.mrb[0].mxu0
      %v2581 = vadd.f32 %v2356, %v2580
      %v2582 = vpop.f32.mrb[0].mxu0
      %2583 = vmatprep.mubr.f32.mxu0 %v1962
      %2584 = vmatmul.mubr.f32.gmra.mrb[0].mxu0 %v1961
      %v2585 = vpop.f32.mrb[0].mxu0
      %v2586 = vadd.f32 %v2361, %v2585
      %v2587 = vpop.f32.mrb[0].mxu0
      %2588 = vmatprep.mubr.f32.mxu0 %v1967
      %2589 = vmatmul.mubr.f32.gmra.mrb[0].mxu0 %v1966
      %v2590 = vpop.f32.mrb[0].mxu0
      %v2591 = vadd.f32 %v2366, %v2590
      %v2592 = vpop.f32.mrb[0].mxu0
      %2593 = vmatprep.mubr.f32.mxu0 %v1972
      %2594 = vmatmul.mubr.f32.gmra.mrb[0].mxu0 %v1971
      %v2595 = vpop.f32.mrb[0].mxu0
      %v2596 = vadd.f32 %v2371, %v2595
      %v2597 = vpop.f32.mrb[0].mxu0
      %2598 = vmatprep.mubr.f32.mxu0 %v1977
      %2599 = vmatmul.mubr.f32.gmra.mrb[0].mxu0 %v1976
      %v2600 = vpop.f32.mrb[0].mxu0
      %v2601 = vadd.f32 %v2376, %v2600
      %v2602 = vpop.f32.mrb[0].mxu0
      %2603 = vmatprep.mubr.f32.mxu0 %v1982
      %2604 = vmatmul.mubr.f32.gmra.mrb[0].mxu0 %v1981
      %v2605 = vpop.f32.mrb[0].mxu0
      %v2606 = vadd.f32 %v2381, %v2605
      %v2607 = vpop.f32.mrb[0].mxu0
      %2608 = vmatprep.mubr.f32.mxu0 %v1987
      %2609 = vmatmul.mubr.f32.gmra.mrb[0].mxu0 %v1986
      %v2610 = vpop.f32.mrb[0].mxu0
      %v2611 = vadd.f32 %v2386, %v2610
      %v2612 = vpop.f32.mrb[0].mxu0
      %2613 = vmatprep.mubr.f32.mxu0 %v1992
      %2614 = vmatmul.mubr.f32.gmra.mrb[0].mxu0 %v1991
      %v2615 = vpop.f32.mrb[0].mxu0
      %v2616 = vadd.f32 %v2391, %v2615
      %v2617 = vpop.f32.mrb[0].mxu0
      %2618 = vmatprep.mubr.f32.mxu0 %v1997
      %2619 = vmatmul.mubr.f32.gmra.mrb[0].mxu0 %v1996
      %v2620 = vpop.f32.mrb[0].mxu0
      %v2621 = vadd.f32 %v2396, %v2620
      %v2622 = vpop.f32.mrb[0].mxu0
      %2623 = vmatprep.mubr.f32.mxu0 %v2002
      %2624 = vmatmul.mubr.f32.gmra.mrb[0].mxu0 %v2001
      %v2625 = vpop.f32.mrb[0].mxu0
      %v2626 = vadd.f32 %v2401, %v2625
      %v2627 = vpop.f32.mrb[0].mxu0
      %2628 = vdwg.mxu0
      %2629 = vmatprep.subr.mxu0 0.0
      %2630 = vmatpush1.msra.mxu0 %v2068
      %2631 = vmatprep.subr.mxu0 0.0
      %2632 = vmatpush1.msra.mxu0 %v2069
      %2633 = vmatprep.subr.mxu0 0.0
      %2634 = vmatpush1.msra.mxu0 %v2070
      %2635 = vmatprep.subr.mxu0 0.0
      %2636 = vmatpush1.msra.mxu0 %v2071
      %2637 = vmatprep.subr.mxu0 0.0
      %2638 = vmatpush1.msra.mxu0 %v2072
      %2639 = vmatprep.subr.mxu0 0.0
      %2640 = vmatpush1.msra.mxu0 %v2073
      %2641 = vmatprep.subr.mxu0 0.0
      %2642 = vmatpush1.msra.mxu0 %v2074
      %2643 = vmatprep.subr.mxu0 0.0
      %2644 = vmatpush1.msra.mxu0 %v2075
      %2645 = vmatprep.subr.mxu0 0.0
      %2646 = vmatpush1.msra.mxu0 0.0
      %2647 = vmatprep.subr.mxu0 0.0
      %2648 = vmatpush1.msra.mxu0 0.0
      %2649 = vmatprep.subr.mxu0 0.0
      %2650 = vmatpush1.msra.mxu0 0.0
      %2651 = vmatprep.subr.mxu0 0.0
      %2652 = vmatpush1.msra.mxu0 0.0
      %2653 = vmatprep.subr.mxu0 0.0
      %2654 = vmatpush1.msra.mxu0 0.0
      %2655 = vmatprep.subr.mxu0 0.0
      %2656 = vmatpush1.msra.mxu0 0.0
      %2657 = vmatprep.subr.mxu0 0.0
      %2658 = vmatpush1.msra.mxu0 0.0
      %2659 = vmatprep.subr.mxu0 0.0
      %2660 = vmatpush1.msra.mxu0 0.0
      %2661 = vmatprep.subr.mxu0 0.0
      %2662 = vmatpush1.msra.mxu0 0.0
      %2663 = vmatprep.subr.mxu0 0.0
      %2664 = vmatpush1.msra.mxu0 0.0
      %2665 = vmatprep.subr.mxu0 0.0
      %2666 = vmatpush1.msra.mxu0 0.0
      %2667 = vmatprep.subr.mxu0 0.0
      %2668 = vmatpush1.msra.mxu0 0.0
      %2669 = vmatprep.subr.mxu0 0.0
      %2670 = vmatpush1.msra.mxu0 0.0
      %2671 = vmatprep.subr.mxu0 0.0
      %2672 = vmatpush1.msra.mxu0 0.0
      %2673 = vmatprep.subr.mxu0 0.0
      %2674 = vmatpush1.msra.mxu0 0.0
      %2675 = vmatprep.subr.mxu0 0.0
      %2676 = vmatpush1.msra.mxu0 0.0
      %2677 = vmatprep.subr.mxu0 0.0
      %2678 = vmatpush1.msra.mxu0 0.0
      %2679 = vmatprep.subr.mxu0 0.0
      %2680 = vmatpush1.msra.mxu0 0.0
      %2681 = vmatprep.subr.mxu0 0.0
      %2682 = vmatpush1.msra.mxu0 0.0
      %2683 = vmatprep.subr.mxu0 0.0
      %2684 = vmatpush1.msra.mxu0 0.0
      %2685 = vmatprep.subr.mxu0 0.0
      %2686 = vmatpush1.msra.mxu0 0.0
      %2687 = vmatprep.subr.mxu0 0.0
      %2688 = vmatpush1.msra.mxu0 0.0
      %2689 = vmatprep.subr.mxu0 0.0
      %2690 = vmatpush1.msra.mxu0 0.0
      %2691 = vmatprep.subr.mxu0 0.0
      %2692 = vmatpush1.msra.mxu0 0.0
      %2693 = vmatprep.mubr.f32.mxu0 0.0
      %2694 = vmatmul.mubr.f32.gmra.mrb[0].mxu0 %v2084
      %v2695 = vpop.f32.mrb[0].mxu0
      %v2696 = vadd.f32 %v2471, %v2695
      %v2697 = vpop.f32.mrb[0].mxu0
      %2698 = vmatprep.mubr.f32.mxu0 0.0
      %2699 = vmatmul.mubr.f32.gmra.mrb[0].mxu0 %v2087
      %v2700 = vpop.f32.mrb[0].mxu0
      %v2701 = vadd.f32 %v2476, %v2700
      %v2702 = vpop.f32.mrb[0].mxu0
      %2703 = vmatprep.mubr.f32.mxu0 0.0
      %2704 = vmatmul.mubr.f32.gmra.mrb[0].mxu0 %v2090
      %v2705 = vpop.f32.mrb[0].mxu0
      %v2706 = vadd.f32 %v2481, %v2705
      %v2707 = vpop.f32.mrb[0].mxu0
      %2708 = vmatprep.mubr.f32.mxu0 0.0
      %2709 = vmatmul.mubr.f32.gmra.mrb[0].mxu0 %v2093
      %v2710 = vpop.f32.mrb[0].mxu0
      %v2711 = vadd.f32 %v2486, %v2710
      %v2712 = vpop.f32.mrb[0].mxu0
      %2713 = vmatprep.mubr.f32.mxu0 0.0
      %2714 = vmatmul.mubr.f32.gmra.mrb[0].mxu0 %v2096
      %v2715 = vpop.f32.mrb[0].mxu0
      %v2716 = vadd.f32 %v2491, %v2715
      %v2717 = vpop.f32.mrb[0].mxu0
      %2718 = vmatprep.mubr.f32.mxu0 0.0
      %2719 = vmatmul.mubr.f32.gmra.mrb[0].mxu0 %v2099
      %v2720 = vpop.f32.mrb[0].mxu0
      %v2721 = vadd.f32 %v2496, %v2720
      %v2722 = vpop.f32.mrb[0].mxu0
      %2723 = vmatprep.mubr.f32.mxu0 0.0
      %2724 = vmatmul.mubr.f32.gmra.mrb[0].mxu0 %v2102
      %v2725 = vpop.f32.mrb[0].mxu0
      %v2726 = vadd.f32 %v2501, %v2725
      %v2727 = vpop.f32.mrb[0].mxu0
      %2728 = vmatprep.mubr.f32.mxu0 0.0
      %2729 = vmatmul.mubr.f32.gmra.mrb[0].mxu0 %v2105
      %v2730 = vpop.f32.mrb[0].mxu0
      %v2731 = vadd.f32 %v2506, %v2730
      %v2732 = vpop.f32.mrb[0].mxu0
      %2733 = vmatprep.mubr.f32.mxu0 0.0
      %2734 = vmatmul.mubr.f32.gmra.mrb[0].mxu0 %v2108
      %v2735 = vpop.f32.mrb[0].mxu0
      %v2736 = vadd.f32 %v2511, %v2735
      %v2737 = vpop.f32.mrb[0].mxu0
      %2738 = vmatprep.mubr.f32.mxu0 0.0
      %2739 = vmatmul.mubr.f32.gmra.mrb[0].mxu0 %v2111
      %v2740 = vpop.f32.mrb[0].mxu0
      %v2741 = vadd.f32 %v2516, %v2740
      %v2742 = vpop.f32.mrb[0].mxu0
      %2743 = vmatprep.mubr.f32.mxu0 0.0
      %2744 = vmatmul.mubr.f32.gmra.mrb[0].mxu0 %v2114
      %v2745 = vpop.f32.mrb[0].mxu0
      %v2746 = vadd.f32 %v2521, %v2745
      %v2747 = vpop.f32.mrb[0].mxu0
      %2748 = vmatprep.mubr.f32.mxu0 0.0
      %2749 = vmatmul.mubr.f32.gmra.mrb[0].mxu0 %v2117
      %v2750 = vpop.f32.mrb[0].mxu0
      %v2751 = vadd.f32 %v2526, %v2750
      %v2752 = vpop.f32.mrb[0].mxu0
      %2753 = vmatprep.mubr.f32.mxu0 0.0
      %2754 = vmatmul.mubr.f32.gmra.mrb[0].mxu0 %v2120
      %v2755 = vpop.f32.mrb[0].mxu0
      %v2756 = vadd.f32 %v2531, %v2755
      %v2757 = vpop.f32.mrb[0].mxu0
      %2758 = vmatprep.mubr.f32.mxu0 0.0
      %2759 = vmatmul.mubr.f32.gmra.mrb[0].mxu0 %v2123
      %v2760 = vpop.f32.mrb[0].mxu0
      %v2761 = vadd.f32 %v2536, %v2760
      %v2762 = vpop.f32.mrb[0].mxu0
      %2763 = vmatprep.mubr.f32.mxu0 0.0
      %2764 = vmatmul.mubr.f32.gmra.mrb[0].mxu0 %v2126
      %v2765 = vpop.f32.mrb[0].mxu0
      %v2766 = vadd.f32 %v2541, %v2765
      %v2767 = vpop.f32.mrb[0].mxu0
      %2768 = vmatprep.mubr.f32.mxu0 0.0
      %2769 = vmatmul.mubr.f32.gmra.mrb[0].mxu0 %v2129
      %v2770 = vpop.f32.mrb[0].mxu0
      %v2771 = vadd.f32 %v2546, %v2770
      %v2772 = vpop.f32.mrb[0].mxu0
      %2773 = vmatprep.mubr.f32.mxu0 0.0
      %2774 = vmatmul.mubr.f32.gmra.mrb[0].mxu0 %v2132
      %v2775 = vpop.f32.mrb[0].mxu0
      %v2776 = vadd.f32 %v2551, %v2775
      %v2777 = vpop.f32.mrb[0].mxu0
      %2778 = vmatprep.mubr.f32.mxu0 0.0
      %2779 = vmatmul.mubr.f32.gmra.mrb[0].mxu0 %v2135
      %v2780 = vpop.f32.mrb[0].mxu0
      %v2781 = vadd.f32 %v2556, %v2780
      %v2782 = vpop.f32.mrb[0].mxu0
      %2783 = vmatprep.mubr.f32.mxu0 0.0
      %2784 = vmatmul.mubr.f32.gmra.mrb[0].mxu0 %v2138
      %v2785 = vpop.f32.mrb[0].mxu0
      %v2786 = vadd.f32 %v2561, %v2785
      %v2787 = vpop.f32.mrb[0].mxu0
      %2788 = vmatprep.mubr.f32.mxu0 0.0
      %2789 = vmatmul.mubr.f32.gmra.mrb[0].mxu0 %v2141
      %v2790 = vpop.f32.mrb[0].mxu0
      %v2791 = vadd.f32 %v2566, %v2790
      %v2792 = vpop.f32.mrb[0].mxu0
      %2793 = vmatprep.mubr.f32.mxu0 0.0
      %2794 = vmatmul.mubr.f32.gmra.mrb[0].mxu0 %v2144
      %v2795 = vpop.f32.mrb[0].mxu0
      %v2796 = vadd.f32 %v2571, %v2795
      %v2797 = vpop.f32.mrb[0].mxu0
      %2798 = vmatprep.mubr.f32.mxu0 0.0
      %2799 = vmatmul.mubr.f32.gmra.mrb[0].mxu0 %v2147
      %v2800 = vpop.f32.mrb[0].mxu0
      %v2801 = vadd.f32 %v2576, %v2800
      %v2802 = vpop.f32.mrb[0].mxu0
      %2803 = vmatprep.mubr.f32.mxu0 0.0
      %2804 = vmatmul.mubr.f32.gmra.mrb[0].mxu0 %v2150
      %v2805 = vpop.f32.mrb[0].mxu0
      %v2806 = vadd.f32 %v2581, %v2805
      %v2807 = vpop.f32.mrb[0].mxu0
      %2808 = vmatprep.mubr.f32.mxu0 0.0
      %2809 = vmatmul.mubr.f32.gmra.mrb[0].mxu0 %v2153
      %v2810 = vpop.f32.mrb[0].mxu0
      %v2811 = vadd.f32 %v2586, %v2810
      %v2812 = vpop.f32.mrb[0].mxu0
      %2813 = vmatprep.mubr.f32.mxu0 0.0
      %2814 = vmatmul.mubr.f32.gmra.mrb[0].mxu0 %v2156
      %v2815 = vpop.f32.mrb[0].mxu0
      %v2816 = vadd.f32 %v2591, %v2815
      %v2817 = vpop.f32.mrb[0].mxu0
      %2818 = vmatprep.mubr.f32.mxu0 0.0
      %2819 = vmatmul.mubr.f32.gmra.mrb[0].mxu0 %v2159
      %v2820 = vpop.f32.mrb[0].mxu0
      %v2821 = vadd.f32 %v2596, %v2820
      %v2822 = vpop.f32.mrb[0].mxu0
      %2823 = vmatprep.mubr.f32.mxu0 0.0
      %2824 = vmatmul.mubr.f32.gmra.mrb[0].mxu0 %v2162
      %v2825 = vpop.f32.mrb[0].mxu0
      %v2826 = vadd.f32 %v2601, %v2825
      %v2827 = vpop.f32.mrb[0].mxu0
      %2828 = vmatprep.mubr.f32.mxu0 0.0
      %2829 = vmatmul.mubr.f32.gmra.mrb[0].mxu0 %v2165
      %v2830 = vpop.f32.mrb[0].mxu0
      %v2831 = vadd.f32 %v2606, %v2830
      %v2832 = vpop.f32.mrb[0].mxu0
      %2833 = vmatprep.mubr.f32.mxu0 0.0
      %2834 = vmatmul.mubr.f32.gmra.mrb[0].mxu0 %v2168
      %v2835 = vpop.f32.mrb[0].mxu0
      %v2836 = vadd.f32 %v2611, %v2835
      %v2837 = vpop.f32.mrb[0].mxu0
      %2838 = vmatprep.mubr.f32.mxu0 0.0
      %2839 = vmatmul.mubr.f32.gmra.mrb[0].mxu0 %v2171
      %v2840 = vpop.f32.mrb[0].mxu0
      %v2841 = vadd.f32 %v2616, %v2840
      %v2842 = vpop.f32.mrb[0].mxu0
      %2843 = vmatprep.mubr.f32.mxu0 0.0
      %2844 = vmatmul.mubr.f32.gmra.mrb[0].mxu0 %v2174
      %v2845 = vpop.f32.mrb[0].mxu0
      %v2846 = vadd.f32 %v2621, %v2845
      %v2847 = vpop.f32.mrb[0].mxu0
      %2848 = vmatprep.mubr.f32.mxu0 0.0
      %2849 = vmatmul.mubr.f32.gmra.mrb[0].mxu0 %v2177
      %v2850 = vpop.f32.mrb[0].mxu0
      %v2851 = vadd.f32 %v2626, %v2850
      %v2852 = vpop.f32.mrb[0].mxu0
      %2853 = vdwg.mxu0
      %v2854 = vmax.f32 %v2696, 0.0
      %v2855 = vmax.f32 %v2701, 0.0
      %v2856 = vmax.f32 %v2706, 0.0
      %v2857 = vmax.f32 %v2711, 0.0
      %v2858 = vmax.f32 %v2716, 0.0
      %v2859 = vmax.f32 %v2721, 0.0
      %v2860 = vmax.f32 %v2726, 0.0
      %v2861 = vmax.f32 %v2731, 0.0
      %v2862 = vmax.f32 %v2736, 0.0
      %v2863 = vmax.f32 %v2741, 0.0
      %v2864 = vmax.f32 %v2746, 0.0
      %v2865 = vmax.f32 %v2751, 0.0
      %v2866 = vmax.f32 %v2756, 0.0
      %v2867 = vmax.f32 %v2761, 0.0
      %v2868 = vmax.f32 %v2766, 0.0
      %v2869 = vmax.f32 %v2771, 0.0
      %v2870 = vmax.f32 %v2776, 0.0
      %v2871 = vmax.f32 %v2781, 0.0
      %v2872 = vmax.f32 %v2786, 0.0
      %v2873 = vmax.f32 %v2791, 0.0
      %v2874 = vmax.f32 %v2796, 0.0
      %v2875 = vmax.f32 %v2801, 0.0
      %v2876 = vmax.f32 %v2806, 0.0
      %v2877 = vmax.f32 %v2811, 0.0
      %v2878 = vmax.f32 %v2816, 0.0
      %v2879 = vmax.f32 %v2821, 0.0
      %v2880 = vmax.f32 %v2826, 0.0
      %v2881 = vmax.f32 %v2831, 0.0
      %v2882 = vmax.f32 %v2836, 0.0
      %v2883 = vmax.f32 %v2841, 0.0
      %v2884 = vmax.f32 %v2846, 0.0
      %v2885 = vmax.f32 %v2851, 0.0
      %2886 = vst.msk [vmem:[%s721 + $0x1] sm:$0xff] %vm279, %v2854
      %2887 = vst.msk [vmem:[%s721 + $0x9] sm:$0xff] %vm279, %v2855
      %2888 = vst.msk [vmem:[%s721 + $0x19] sm:$0xff] %vm279, %v2856
      %2889 = vst.msk [vmem:[%s721 + $0x21] sm:$0xff] %vm279, %v2857
      %2890 = vst.msk [vmem:[%s721 + $0x31] sm:$0xff] %vm279, %v2858
      %2891 = vst.msk [vmem:[%s721 + $0x39] sm:$0xff] %vm279, %v2859
      %2892 = vst.msk [vmem:[%s721 + $0x49] sm:$0xff] %vm279, %v2860
      %2893 = vst.msk [vmem:[%s721 + $0x51] sm:$0xff] %vm279, %v2861
      %2894 = vst.msk [vmem:[%s721 + $0x61] sm:$0xff] %vm279, %v2862
      %2895 = vst.msk [vmem:[%s721 + $0x69] sm:$0xff] %vm279, %v2863
      %2896 = vst.msk [vmem:[%s721 + $0x79] sm:$0xff] %vm279, %v2864
      %2897 = vst.msk [vmem:[%s721 + $0x81] sm:$0xff] %vm279, %v2865
      %2898 = vst.msk [vmem:[%s721 + $0x91] sm:$0xff] %vm279, %v2866
      %2899 = vst.msk [vmem:[%s721 + $0x99] sm:$0xff] %vm279, %v2867
      %2900 = vst.msk [vmem:[%s721 + $0xa9] sm:$0xff] %vm279, %v2868
      %2901 = vst.msk [vmem:[%s721 + $0xb1] sm:$0xff] %vm279, %v2869
      %2902 = vst.msk [vmem:[%s721 + $0xc1] sm:$0xff] %vm279, %v2870
      %2903 = vst.msk [vmem:[%s721 + $0xc9] sm:$0xff] %vm279, %v2871
      %2904 = vst.msk [vmem:[%s721 + $0xd9] sm:$0xff] %vm279, %v2872
      %2905 = vst.msk [vmem:[%s721 + $0xe1] sm:$0xff] %vm279, %v2873
      %2906 = vst.msk [vmem:[%s721 + $0xf1] sm:$0xff] %vm279, %v2874
      %2907 = vst.msk [vmem:[%s721 + $0xf9] sm:$0xff] %vm279, %v2875
      %2908 = vst.msk [vmem:[%s721 + $0x109] sm:$0xff] %vm279, %v2876
      %2909 = vst.msk [vmem:[%s721 + $0x111] sm:$0xff] %vm279, %v2877
      %2910 = vst.msk [vmem:[%s721 + $0x121] sm:$0xff] %vm279, %v2878
      %2911 = vst.msk [vmem:[%s721 + $0x129] sm:$0xff] %vm279, %v2879
      %2912 = vst.msk [vmem:[%s721 + $0x139] sm:$0xff] %vm279, %v2880
      %2913 = vst.msk [vmem:[%s721 + $0x141] sm:$0xff] %vm279, %v2881
      %2914 = vst.msk [vmem:[%s721 + $0x151] sm:$0xff] %vm279, %v2882
      %2915 = vst.msk [vmem:[%s721 + $0x159] sm:$0xff] %vm279, %v2883
      %2916 = vst.msk [vmem:[%s721 + $0x169] sm:$0xff] %vm279, %v2884
      %2917 = vst.msk [vmem:[%s721 + $0x171] sm:$0xff] %vm279, %v2885
      %v2918 = vld [vmem:[#allocation2] sm:$0xff]
      %v2919 = vld [vmem:[#allocation2 + $0x8] sm:$0xff]
      %v2920 = vld [vmem:[#allocation2 + $0x18] sm:$0xff]
      %v2921 = vld [vmem:[#allocation2 + $0x20] sm:$0xff]
      %v2922 = vld [vmem:[#allocation2 + $0x30] sm:$0xff]
      %v2923 = vld [vmem:[#allocation2 + $0x38] sm:$0xff]
      %v2924 = vld [vmem:[#allocation2 + $0x48] sm:$0xff]
      %v2925 = vld [vmem:[#allocation2 + $0x50] sm:$0xff]
      %v2926 = vld [vmem:[#allocation2 + $0x60] sm:$0xff]
      %v2927 = vld [vmem:[#allocation2 + $0x68] sm:$0xff]
      %v2928 = vld [vmem:[#allocation2 + $0x78] sm:$0xff]
      %v2929 = vld [vmem:[#allocation2 + $0x80] sm:$0xff]
      %v2930 = vld [vmem:[#allocation2 + $0x90] sm:$0xff]
      %v2931 = vld [vmem:[#allocation2 + $0x98] sm:$0xff]
      %v2932 = vld [vmem:[#allocation2 + $0xa8] sm:$0xff]
      %v2933 = vld [vmem:[#allocation2 + $0xb0] sm:$0xff]
      %v2934 = vld [vmem:[#allocation2 + $0xc0] sm:$0xff]
      %v2935 = vld [vmem:[#allocation2 + $0xc8] sm:$0xff]
      %v2936 = vld [vmem:[#allocation2 + $0xd8] sm:$0xff]
      %v2937 = vld [vmem:[#allocation2 + $0xe0] sm:$0xff]
      %v2938 = vld [vmem:[#allocation2 + $0xf0] sm:$0xff]
      %v2939 = vld [vmem:[#allocation2 + $0xf8] sm:$0xff]
      %v2940 = vld [vmem:[#allocation2 + $0x108] sm:$0xff]
      %v2941 = vld [vmem:[#allocation2 + $0x110] sm:$0xff]
      %v2942 = vld [vmem:[#allocation2 + $0x120] sm:$0xff]
      %v2943 = vld [vmem:[#allocation2 + $0x128] sm:$0xff]
      %v2944 = vld [vmem:[#allocation2 + $0x138] sm:$0xff]
      %v2945 = vld [vmem:[#allocation2 + $0x140] sm:$0xff]
      %v2946 = vld [vmem:[#allocation2 + $0x150] sm:$0xff]
      %v2947 = vld [vmem:[#allocation2 + $0x158] sm:$0xff]
      %v2948 = vld [vmem:[#allocation2 + $0x168] sm:$0xff]
      %v2949 = vld [vmem:[#allocation2 + $0x170] sm:$0xff]
      %2950 = vst.msk [vmem:[#allocation3] sm:$0xff] %vm279, %v2918
      %2951 = vst.msk [vmem:[#allocation3 + $0x28] sm:$0xff] %vm279, %v2919
      %2952 = vst.msk [vmem:[#allocation3 + $0x50] sm:$0xff] %vm279, %v2920
      %2953 = vst.msk [vmem:[#allocation3 + $0x78] sm:$0xff] %vm279, %v2921
      %2954 = vst.msk [vmem:[#allocation3 + $0xa0] sm:$0xff] %vm279, %v2922
      %2955 = vst.msk [vmem:[#allocation3 + $0xc8] sm:$0xff] %vm279, %v2923
      %2956 = vst.msk [vmem:[#allocation3 + $0xf0] sm:$0xff] %vm279, %v2924
      %2957 = vst.msk [vmem:[#allocation3 + $0x118] sm:$0xff] %vm279, %v2925
      %2958 = vst.msk [vmem:[#allocation3 + $0x140] sm:$0xff] %vm279, %v2926
      %2959 = vst.msk [vmem:[#allocation3 + $0x168] sm:$0xff] %vm279, %v2927
      %2960 = vst.msk [vmem:[#allocation3 + $0x190] sm:$0xff] %vm279, %v2928
      %2961 = vst.msk [vmem:[#allocation3 + $0x1b8] sm:$0xff] %vm279, %v2929
      %2962 = vst.msk [vmem:[#allocation3 + $0x1e0] sm:$0xff] %vm279, %v2930
      %2963 = vst.msk [vmem:[#allocation3 + $0x208] sm:$0xff] %vm279, %v2931
      %2964 = vst.msk [vmem:[#allocation3 + $0x230] sm:$0xff] %vm279, %v2932
      %2965 = vst.msk [vmem:[#allocation3 + $0x258] sm:$0xff] %vm279, %v2933
      %2966 = vst.msk [vmem:[#allocation3 + $0x280] sm:$0xff] %vm279, %v2934
      %2967 = vst.msk [vmem:[#allocation3 + $0x2a8] sm:$0xff] %vm279, %v2935
      %2968 = vst.msk [vmem:[#allocation3 + $0x2d0] sm:$0xff] %vm279, %v2936
      %2969 = vst.msk [vmem:[#allocation3 + $0x2f8] sm:$0xff] %vm279, %v2937
      %2970 = vst.msk [vmem:[#allocation3 + $0x320] sm:$0xff] %vm279, %v2938
      %2971 = vst.msk [vmem:[#allocation3 + $0x348] sm:$0xff] %vm279, %v2939
      %2972 = vst.msk [vmem:[#allocation3 + $0x370] sm:$0xff] %vm279, %v2940
      %2973 = vst.msk [vmem:[#allocation3 + $0x398] sm:$0xff] %vm279, %v2941
      %2974 = vst.msk [vmem:[#allocation3 + $0x3c0] sm:$0xff] %vm279, %v2942
      %2975 = vst.msk [vmem:[#allocation3 + $0x3e8] sm:$0xff] %vm279, %v2943
      %2976 = vst.msk [vmem:[#allocation3 + $0x410] sm:$0xff] %vm279, %v2944
      %2977 = vst.msk [vmem:[#allocation3 + $0x438] sm:$0xff] %vm279, %v2945
      %2978 = vst.msk [vmem:[#allocation3 + $0x460] sm:$0xff] %vm279, %v2946
      %2979 = vst.msk [vmem:[#allocation3 + $0x488] sm:$0xff] %vm279, %v2947
      %2980 = vst.msk [vmem:[#allocation3 + $0x4b0] sm:$0xff] %vm279, %v2948
      %2981 = vst.msk [vmem:[#allocation3 + $0x4d8] sm:$0xff] %vm279, %v2949
      %v2982 = vld [vmem:[#allocation2 + $0x1] sm:$0xff]
      %v2983 = vld [vmem:[#allocation2 + $0x9] sm:$0xff]
      %v2984 = vld [vmem:[#allocation2 + $0x19] sm:$0xff]
      %v2985 = vld [vmem:[#allocation2 + $0x21] sm:$0xff]
      %v2986 = vld [vmem:[#allocation2 + $0x31] sm:$0xff]
      %v2987 = vld [vmem:[#allocation2 + $0x39] sm:$0xff]
      %v2988 = vld [vmem:[#allocation2 + $0x49] sm:$0xff]
      %v2989 = vld [vmem:[#allocation2 + $0x51] sm:$0xff]
      %v2990 = vld [vmem:[#allocation2 + $0x61] sm:$0xff]
      %v2991 = vld [vmem:[#allocation2 + $0x69] sm:$0xff]
      %v2992 = vld [vmem:[#allocation2 + $0x79] sm:$0xff]
      %v2993 = vld [vmem:[#allocation2 + $0x81] sm:$0xff]
      %v2994 = vld [vmem:[#allocation2 + $0x91] sm:$0xff]
      %v2995 = vld [vmem:[#allocation2 + $0x99] sm:$0xff]
      %v2996 = vld [vmem:[#allocation2 + $0xa9] sm:$0xff]
      %v2997 = vld [vmem:[#allocation2 + $0xb1] sm:$0xff]
      %v2998 = vld [vmem:[#allocation2 + $0xc1] sm:$0xff]
      %v2999 = vld [vmem:[#allocation2 + $0xc9] sm:$0xff]
      %v3000 = vld [vmem:[#allocation2 + $0xd9] sm:$0xff]
      %v3001 = vld [vmem:[#allocation2 + $0xe1] sm:$0xff]
      %v3002 = vld [vmem:[#allocation2 + $0xf1] sm:$0xff]
      %v3003 = vld [vmem:[#allocation2 + $0xf9] sm:$0xff]
      %v3004 = vld [vmem:[#allocation2 + $0x109] sm:$0xff]
      %v3005 = vld [vmem:[#allocation2 + $0x111] sm:$0xff]
      %v3006 = vld [vmem:[#allocation2 + $0x121] sm:$0xff]
      %v3007 = vld [vmem:[#allocation2 + $0x129] sm:$0xff]
      %v3008 = vld [vmem:[#allocation2 + $0x139] sm:$0xff]
      %v3009 = vld [vmem:[#allocation2 + $0x141] sm:$0xff]
      %v3010 = vld [vmem:[#allocation2 + $0x151] sm:$0xff]
      %v3011 = vld [vmem:[#allocation2 + $0x159] sm:$0xff]
      %v3012 = vld [vmem:[#allocation2 + $0x169] sm:$0xff]
      %v3013 = vld [vmem:[#allocation2 + $0x171] sm:$0xff]
      %3046 = vrot.lane.b32.xlu0 %v2982, 64
      %v3047 = vpop.permute.xlu0 %3046
      %3048 = vrot.lane.b32.xlu0 %v2983, 64
      %v3049 = vpop.permute.xlu0 %3048
      %3050 = vrot.lane.b32.xlu0 %v2984, 64
      %v3051 = vpop.permute.xlu0 %3050
      %3052 = vrot.lane.b32.xlu0 %v2985, 64
      %v3053 = vpop.permute.xlu0 %3052
      %3054 = vrot.lane.b32.xlu0 %v2986, 64
      %v3055 = vpop.permute.xlu0 %3054
      %3056 = vrot.lane.b32.xlu0 %v2987, 64
      %v3057 = vpop.permute.xlu0 %3056
      %3058 = vrot.lane.b32.xlu0 %v2988, 64
      %v3059 = vpop.permute.xlu0 %3058
      %3060 = vrot.lane.b32.xlu0 %v2989, 64
      %v3061 = vpop.permute.xlu0 %3060
      %3062 = vrot.lane.b32.xlu0 %v2990, 64
      %v3063 = vpop.permute.xlu0 %3062
      %3064 = vrot.lane.b32.xlu0 %v2991, 64
      %v3065 = vpop.permute.xlu0 %3064
      %3066 = vrot.lane.b32.xlu0 %v2992, 64
      %v3067 = vpop.permute.xlu0 %3066
      %3068 = vrot.lane.b32.xlu0 %v2993, 64
      %v3069 = vpop.permute.xlu0 %3068
      %3070 = vrot.lane.b32.xlu0 %v2994, 64
      %v3071 = vpop.permute.xlu0 %3070
      %3072 = vrot.lane.b32.xlu0 %v2995, 64
      %v3073 = vpop.permute.xlu0 %3072
      %3074 = vrot.lane.b32.xlu0 %v2996, 64
      %v3075 = vpop.permute.xlu0 %3074
      %3076 = vrot.lane.b32.xlu0 %v2997, 64
      %v3077 = vpop.permute.xlu0 %3076
      %3078 = vrot.lane.b32.xlu0 %v2998, 64
      %v3079 = vpop.permute.xlu0 %3078
      %3080 = vrot.lane.b32.xlu0 %v2999, 64
      %v3081 = vpop.permute.xlu0 %3080
      %3082 = vrot.lane.b32.xlu0 %v3000, 64
      %v3083 = vpop.permute.xlu0 %3082
      %3084 = vrot.lane.b32.xlu0 %v3001, 64
      %v3085 = vpop.permute.xlu0 %3084
      %3086 = vrot.lane.b32.xlu0 %v3002, 64
      %v3087 = vpop.permute.xlu0 %3086
      %3088 = vrot.lane.b32.xlu0 %v3003, 64
      %v3089 = vpop.permute.xlu0 %3088
      %3090 = vrot.lane.b32.xlu0 %v3004, 64
      %v3091 = vpop.permute.xlu0 %3090
      %3092 = vrot.lane.b32.xlu0 %v3005, 64
      %v3093 = vpop.permute.xlu0 %3092
      %3094 = vrot.lane.b32.xlu0 %v3006, 64
      %v3095 = vpop.permute.xlu0 %3094
      %3096 = vrot.lane.b32.xlu0 %v3007, 64
      %v3097 = vpop.permute.xlu0 %3096
      %3098 = vrot.lane.b32.xlu0 %v3008, 64
      %v3099 = vpop.permute.xlu0 %3098
      %3100 = vrot.lane.b32.xlu0 %v3009, 64
      %v3101 = vpop.permute.xlu0 %3100
      %3102 = vrot.lane.b32.xlu0 %v3010, 64
      %v3103 = vpop.permute.xlu0 %3102
      %3104 = vrot.lane.b32.xlu0 %v3011, 64
      %v3105 = vpop.permute.xlu0 %3104
      %3106 = vrot.lane.b32.xlu0 %v3012, 64
      %v3107 = vpop.permute.xlu0 %3106
      %3108 = vrot.lane.b32.xlu0 %v3013, 64
      %v3109 = vpop.permute.xlu0 %3108
      %3142 = vst.msk [vmem:[#allocation3] sm:$0xff] %vm978, %v3047
      %3143 = vst.msk [vmem:[#allocation3 + $0x28] sm:$0xff] %vm978, %v3049
      %3144 = vst.msk [vmem:[#allocation3 + $0x50] sm:$0xff] %vm978, %v3051
      %3145 = vst.msk [vmem:[#allocation3 + $0x78] sm:$0xff] %vm978, %v3053
      %3146 = vst.msk [vmem:[#allocation3 + $0xa0] sm:$0xff] %vm978, %v3055
      %3147 = vst.msk [vmem:[#allocation3 + $0xc8] sm:$0xff] %vm978, %v3057
      %3148 = vst.msk [vmem:[#allocation3 + $0xf0] sm:$0xff] %vm978, %v3059
      %3149 = vst.msk [vmem:[#allocation3 + $0x118] sm:$0xff] %vm978, %v3061
      %3150 = vst.msk [vmem:[#allocation3 + $0x140] sm:$0xff] %vm978, %v3063
      %3151 = vst.msk [vmem:[#allocation3 + $0x168] sm:$0xff] %vm978, %v3065
      %3152 = vst.msk [vmem:[#allocation3 + $0x190] sm:$0xff] %vm978, %v3067
      %3153 = vst.msk [vmem:[#allocation3 + $0x1b8] sm:$0xff] %vm978, %v3069
      %3154 = vst.msk [vmem:[#allocation3 + $0x1e0] sm:$0xff] %vm978, %v3071
      %3155 = vst.msk [vmem:[#allocation3 + $0x208] sm:$0xff] %vm978, %v3073
      %3156 = vst.msk [vmem:[#allocation3 + $0x230] sm:$0xff] %vm978, %v3075
      %3157 = vst.msk [vmem:[#allocation3 + $0x258] sm:$0xff] %vm978, %v3077
      %3158 = vst.msk [vmem:[#allocation3 + $0x280] sm:$0xff] %vm978, %v3079
      %3159 = vst.msk [vmem:[#allocation3 + $0x2a8] sm:$0xff] %vm978, %v3081
      %3160 = vst.msk [vmem:[#allocation3 + $0x2d0] sm:$0xff] %vm978, %v3083
      %3161 = vst.msk [vmem:[#allocation3 + $0x2f8] sm:$0xff] %vm978, %v3085
      %3162 = vst.msk [vmem:[#allocation3 + $0x320] sm:$0xff] %vm978, %v3087
      %3163 = vst.msk [vmem:[#allocation3 + $0x348] sm:$0xff] %vm978, %v3089
      %3164 = vst.msk [vmem:[#allocation3 + $0x370] sm:$0xff] %vm978, %v3091
      %3165 = vst.msk [vmem:[#allocation3 + $0x398] sm:$0xff] %vm978, %v3093
      %3166 = vst.msk [vmem:[#allocation3 + $0x3c0] sm:$0xff] %vm978, %v3095
      %3167 = vst.msk [vmem:[#allocation3 + $0x3e8] sm:$0xff] %vm978, %v3097
      %3168 = vst.msk [vmem:[#allocation3 + $0x410] sm:$0xff] %vm978, %v3099
      %3169 = vst.msk [vmem:[#allocation3 + $0x438] sm:$0xff] %vm978, %v3101
      %3170 = vst.msk [vmem:[#allocation3 + $0x460] sm:$0xff] %vm978, %v3103
      %3171 = vst.msk [vmem:[#allocation3 + $0x488] sm:$0xff] %vm978, %v3105
      %3172 = vst.msk [vmem:[#allocation3 + $0x4b0] sm:$0xff] %vm978, %v3107
      %3173 = vst.msk [vmem:[#allocation3 + $0x4d8] sm:$0xff] %vm978, %v3109
      %v3174 = vld [vmem:[#allocation2 + $0x2] sm:$0xff]
      %v3175 = vld [vmem:[#allocation2 + $0xa] sm:$0xff]
      %v3176 = vld [vmem:[#allocation2 + $0x1a] sm:$0xff]
      %v3177 = vld [vmem:[#allocation2 + $0x22] sm:$0xff]
      %v3178 = vld [vmem:[#allocation2 + $0x32] sm:$0xff]
      %v3179 = vld [vmem:[#allocation2 + $0x3a] sm:$0xff]
      %v3180 = vld [vmem:[#allocation2 + $0x4a] sm:$0xff]
      %v3181 = vld [vmem:[#allocation2 + $0x52] sm:$0xff]
      %v3182 = vld [vmem:[#allocation2 + $0x62] sm:$0xff]
      %v3183 = vld [vmem:[#allocation2 + $0x6a] sm:$0xff]
      %v3184 = vld [vmem:[#allocation2 + $0x7a] sm:$0xff]
      %v3185 = vld [vmem:[#allocation2 + $0x82] sm:$0xff]
      %v3186 = vld [vmem:[#allocation2 + $0x92] sm:$0xff]
      %v3187 = vld [vmem:[#allocation2 + $0x9a] sm:$0xff]
      %v3188 = vld [vmem:[#allocation2 + $0xaa] sm:$0xff]
      %v3189 = vld [vmem:[#allocation2 + $0xb2] sm:$0xff]
      %v3190 = vld [vmem:[#allocation2 + $0xc2] sm:$0xff]
      %v3191 = vld [vmem:[#allocation2 + $0xca] sm:$0xff]
      %v3192 = vld [vmem:[#allocation2 + $0xda] sm:$0xff]
      %v3193 = vld [vmem:[#allocation2 + $0xe2] sm:$0xff]
      %v3194 = vld [vmem:[#allocation2 + $0xf2] sm:$0xff]
      %v3195 = vld [vmem:[#allocation2 + $0xfa] sm:$0xff]
      %v3196 = vld [vmem:[#allocation2 + $0x10a] sm:$0xff]
      %v3197 = vld [vmem:[#allocation2 + $0x112] sm:$0xff]
      %v3198 = vld [vmem:[#allocation2 + $0x122] sm:$0xff]
      %v3199 = vld [vmem:[#allocation2 + $0x12a] sm:$0xff]
      %v3200 = vld [vmem:[#allocation2 + $0x13a] sm:$0xff]
      %v3201 = vld [vmem:[#allocation2 + $0x142] sm:$0xff]
      %v3202 = vld [vmem:[#allocation2 + $0x152] sm:$0xff]
      %v3203 = vld [vmem:[#allocation2 + $0x15a] sm:$0xff]
      %v3204 = vld [vmem:[#allocation2 + $0x16a] sm:$0xff]
      %v3205 = vld [vmem:[#allocation2 + $0x172] sm:$0xff]
      %3206 = vst.msk [vmem:[#allocation3 + $0x8] sm:$0xff] %vm279, %v3174
      %3207 = vst.msk [vmem:[#allocation3 + $0x30] sm:$0xff] %vm279, %v3175
      %3208 = vst.msk [vmem:[#allocation3 + $0x58] sm:$0xff] %vm279, %v3176
      %3209 = vst.msk [vmem:[#allocation3 + $0x80] sm:$0xff] %vm279, %v3177
      %3210 = vst.msk [vmem:[#allocation3 + $0xa8] sm:$0xff] %vm279, %v3178
      %3211 = vst.msk [vmem:[#allocation3 + $0xd0] sm:$0xff] %vm279, %v3179
      %3212 = vst.msk [vmem:[#allocation3 + $0xf8] sm:$0xff] %vm279, %v3180
      %3213 = vst.msk [vmem:[#allocation3 + $0x120] sm:$0xff] %vm279, %v3181
      %3214 = vst.msk [vmem:[#allocation3 + $0x148] sm:$0xff] %vm279, %v3182
      %3215 = vst.msk [vmem:[#allocation3 + $0x170] sm:$0xff] %vm279, %v3183
      %3216 = vst.msk [vmem:[#allocation3 + $0x198] sm:$0xff] %vm279, %v3184
      %3217 = vst.msk [vmem:[#allocation3 + $0x1c0] sm:$0xff] %vm279, %v3185
      %3218 = vst.msk [vmem:[#allocation3 + $0x1e8] sm:$0xff] %vm279, %v3186
      %3219 = vst.msk [vmem:[#allocation3 + $0x210] sm:$0xff] %vm279, %v3187
      %3220 = vst.msk [vmem:[#allocation3 + $0x238] sm:$0xff] %vm279, %v3188
      %3221 = vst.msk [vmem:[#allocation3 + $0x260] sm:$0xff] %vm279, %v3189
      %3222 = vst.msk [vmem:[#allocation3 + $0x288] sm:$0xff] %vm279, %v3190
      %3223 = vst.msk [vmem:[#allocation3 + $0x2b0] sm:$0xff] %vm279, %v3191
      %3224 = vst.msk [vmem:[#allocation3 + $0x2d8] sm:$0xff] %vm279, %v3192
      %3225 = vst.msk [vmem:[#allocation3 + $0x300] sm:$0xff] %vm279, %v3193
      %3226 = vst.msk [vmem:[#allocation3 + $0x328] sm:$0xff] %vm279, %v3194
      %3227 = vst.msk [vmem:[#allocation3 + $0x350] sm:$0xff] %vm279, %v3195
      %3228 = vst.msk [vmem:[#allocation3 + $0x378] sm:$0xff] %vm279, %v3196
      %3229 = vst.msk [vmem:[#allocation3 + $0x3a0] sm:$0xff] %vm279, %v3197
      %3230 = vst.msk [vmem:[#allocation3 + $0x3c8] sm:$0xff] %vm279, %v3198
      %3231 = vst.msk [vmem:[#allocation3 + $0x3f0] sm:$0xff] %vm279, %v3199
      %3232 = vst.msk [vmem:[#allocation3 + $0x418] sm:$0xff] %vm279, %v3200
      %3233 = vst.msk [vmem:[#allocation3 + $0x440] sm:$0xff] %vm279, %v3201
      %3234 = vst.msk [vmem:[#allocation3 + $0x468] sm:$0xff] %vm279, %v3202
      %3235 = vst.msk [vmem:[#allocation3 + $0x490] sm:$0xff] %vm279, %v3203
      %3236 = vst.msk [vmem:[#allocation3 + $0x4b8] sm:$0xff] %vm279, %v3204
      %3237 = vst.msk [vmem:[#allocation3 + $0x4e0] sm:$0xff] %vm279, %v3205
      %v3238 = vld [vmem:[%s721] sm:$0xff]
      %v3239 = vld [vmem:[%s721 + $0x8] sm:$0xff]
      %v3240 = vld [vmem:[%s721 + $0x18] sm:$0xff]
      %v3241 = vld [vmem:[%s721 + $0x20] sm:$0xff]
      %v3242 = vld [vmem:[%s721 + $0x30] sm:$0xff]
      %v3243 = vld [vmem:[%s721 + $0x38] sm:$0xff]
      %v3244 = vld [vmem:[%s721 + $0x48] sm:$0xff]
      %v3245 = vld [vmem:[%s721 + $0x50] sm:$0xff]
      %v3246 = vld [vmem:[%s721 + $0x60] sm:$0xff]
      %v3247 = vld [vmem:[%s721 + $0x68] sm:$0xff]
      %v3248 = vld [vmem:[%s721 + $0x78] sm:$0xff]
      %v3249 = vld [vmem:[%s721 + $0x80] sm:$0xff]
      %v3250 = vld [vmem:[%s721 + $0x90] sm:$0xff]
      %v3251 = vld [vmem:[%s721 + $0x98] sm:$0xff]
      %v3252 = vld [vmem:[%s721 + $0xa8] sm:$0xff]
      %v3253 = vld [vmem:[%s721 + $0xb0] sm:$0xff]
      %v3254 = vld [vmem:[%s721 + $0xc0] sm:$0xff]
      %v3255 = vld [vmem:[%s721 + $0xc8] sm:$0xff]
      %v3256 = vld [vmem:[%s721 + $0xd8] sm:$0xff]
      %v3257 = vld [vmem:[%s721 + $0xe0] sm:$0xff]
      %v3258 = vld [vmem:[%s721 + $0xf0] sm:$0xff]
      %v3259 = vld [vmem:[%s721 + $0xf8] sm:$0xff]
      %v3260 = vld [vmem:[%s721 + $0x108] sm:$0xff]
      %v3261 = vld [vmem:[%s721 + $0x110] sm:$0xff]
      %v3262 = vld [vmem:[%s721 + $0x120] sm:$0xff]
      %v3263 = vld [vmem:[%s721 + $0x128] sm:$0xff]
      %v3264 = vld [vmem:[%s721 + $0x138] sm:$0xff]
      %v3265 = vld [vmem:[%s721 + $0x140] sm:$0xff]
      %v3266 = vld [vmem:[%s721 + $0x150] sm:$0xff]
      %v3267 = vld [vmem:[%s721 + $0x158] sm:$0xff]
      %v3268 = vld [vmem:[%s721 + $0x168] sm:$0xff]
      %v3269 = vld [vmem:[%s721 + $0x170] sm:$0xff]
      %3302 = vrot.lane.b32.xlu0 %v3238, 64
      %v3303 = vpop.permute.xlu0 %3302
      %3304 = vrot.lane.b32.xlu0 %v3239, 64
      %v3305 = vpop.permute.xlu0 %3304
      %3306 = vrot.lane.b32.xlu0 %v3240, 64
      %v3307 = vpop.permute.xlu0 %3306
      %3308 = vrot.lane.b32.xlu0 %v3241, 64
      %v3309 = vpop.permute.xlu0 %3308
      %3310 = vrot.lane.b32.xlu0 %v3242, 64
      %v3311 = vpop.permute.xlu0 %3310
      %3312 = vrot.lane.b32.xlu0 %v3243, 64
      %v3313 = vpop.permute.xlu0 %3312
      %3314 = vrot.lane.b32.xlu0 %v3244, 64
      %v3315 = vpop.permute.xlu0 %3314
      %3316 = vrot.lane.b32.xlu0 %v3245, 64
      %v3317 = vpop.permute.xlu0 %3316
      %3318 = vrot.lane.b32.xlu0 %v3246, 64
      %v3319 = vpop.permute.xlu0 %3318
      %3320 = vrot.lane.b32.xlu0 %v3247, 64
      %v3321 = vpop.permute.xlu0 %3320
      %3322 = vrot.lane.b32.xlu0 %v3248, 64
      %v3323 = vpop.permute.xlu0 %3322
      %3324 = vrot.lane.b32.xlu0 %v3249, 64
      %v3325 = vpop.permute.xlu0 %3324
      %3326 = vrot.lane.b32.xlu0 %v3250, 64
      %v3327 = vpop.permute.xlu0 %3326
      %3328 = vrot.lane.b32.xlu0 %v3251, 64
      %v3329 = vpop.permute.xlu0 %3328
      %3330 = vrot.lane.b32.xlu0 %v3252, 64
      %v3331 = vpop.permute.xlu0 %3330
      %3332 = vrot.lane.b32.xlu0 %v3253, 64
      %v3333 = vpop.permute.xlu0 %3332
      %3334 = vrot.lane.b32.xlu0 %v3254, 64
      %v3335 = vpop.permute.xlu0 %3334
      %3336 = vrot.lane.b32.xlu0 %v3255, 64
      %v3337 = vpop.permute.xlu0 %3336
      %3338 = vrot.lane.b32.xlu0 %v3256, 64
      %v3339 = vpop.permute.xlu0 %3338
      %3340 = vrot.lane.b32.xlu0 %v3257, 64
      %v3341 = vpop.permute.xlu0 %3340
      %3342 = vrot.lane.b32.xlu0 %v3258, 64
      %v3343 = vpop.permute.xlu0 %3342
      %3344 = vrot.lane.b32.xlu0 %v3259, 64
      %v3345 = vpop.permute.xlu0 %3344
      %3346 = vrot.lane.b32.xlu0 %v3260, 64
      %v3347 = vpop.permute.xlu0 %3346
      %3348 = vrot.lane.b32.xlu0 %v3261, 64
      %v3349 = vpop.permute.xlu0 %3348
      %3350 = vrot.lane.b32.xlu0 %v3262, 64
      %v3351 = vpop.permute.xlu0 %3350
      %3352 = vrot.lane.b32.xlu0 %v3263, 64
      %v3353 = vpop.permute.xlu0 %3352
      %3354 = vrot.lane.b32.xlu0 %v3264, 64
      %v3355 = vpop.permute.xlu0 %3354
      %3356 = vrot.lane.b32.xlu0 %v3265, 64
      %v3357 = vpop.permute.xlu0 %3356
      %3358 = vrot.lane.b32.xlu0 %v3266, 64
      %v3359 = vpop.permute.xlu0 %3358
      %3360 = vrot.lane.b32.xlu0 %v3267, 64
      %v3361 = vpop.permute.xlu0 %3360
      %3362 = vrot.lane.b32.xlu0 %v3268, 64
      %v3363 = vpop.permute.xlu0 %3362
      %3364 = vrot.lane.b32.xlu0 %v3269, 64
      %v3365 = vpop.permute.xlu0 %3364
      %3398 = vst.msk [vmem:[#allocation3 + $0x8] sm:$0xff] %vm978, %v3303
      %3399 = vst.msk [vmem:[#allocation3 + $0x30] sm:$0xff] %vm978, %v3305
      %3400 = vst.msk [vmem:[#allocation3 + $0x58] sm:$0xff] %vm978, %v3307
      %3401 = vst.msk [vmem:[#allocation3 + $0x80] sm:$0xff] %vm978, %v3309
      %3402 = vst.msk [vmem:[#allocation3 + $0xa8] sm:$0xff] %vm978, %v3311
      %3403 = vst.msk [vmem:[#allocation3 + $0xd0] sm:$0xff] %vm978, %v3313
      %3404 = vst.msk [vmem:[#allocation3 + $0xf8] sm:$0xff] %vm978, %v3315
      %3405 = vst.msk [vmem:[#allocation3 + $0x120] sm:$0xff] %vm978, %v3317
      %3406 = vst.msk [vmem:[#allocation3 + $0x148] sm:$0xff] %vm978, %v3319
      %3407 = vst.msk [vmem:[#allocation3 + $0x170] sm:$0xff] %vm978, %v3321
      %3408 = vst.msk [vmem:[#allocation3 + $0x198] sm:$0xff] %vm978, %v3323
      %3409 = vst.msk [vmem:[#allocation3 + $0x1c0] sm:$0xff] %vm978, %v3325
      %3410 = vst.msk [vmem:[#allocation3 + $0x1e8] sm:$0xff] %vm978, %v3327
      %3411 = vst.msk [vmem:[#allocation3 + $0x210] sm:$0xff] %vm978, %v3329
      %3412 = vst.msk [vmem:[#allocation3 + $0x238] sm:$0xff] %vm978, %v3331
      %3413 = vst.msk [vmem:[#allocation3 + $0x260] sm:$0xff] %vm978, %v3333
      %3414 = vst.msk [vmem:[#allocation3 + $0x288] sm:$0xff] %vm978, %v3335
      %3415 = vst.msk [vmem:[#allocation3 + $0x2b0] sm:$0xff] %vm978, %v3337
      %3416 = vst.msk [vmem:[#allocation3 + $0x2d8] sm:$0xff] %vm978, %v3339
      %3417 = vst.msk [vmem:[#allocation3 + $0x300] sm:$0xff] %vm978, %v3341
      %3418 = vst.msk [vmem:[#allocation3 + $0x328] sm:$0xff] %vm978, %v3343
      %3419 = vst.msk [vmem:[#allocation3 + $0x350] sm:$0xff] %vm978, %v3345
      %3420 = vst.msk [vmem:[#allocation3 + $0x378] sm:$0xff] %vm978, %v3347
      %3421 = vst.msk [vmem:[#allocation3 + $0x3a0] sm:$0xff] %vm978, %v3349
      %3422 = vst.msk [vmem:[#allocation3 + $0x3c8] sm:$0xff] %vm978, %v3351
      %3423 = vst.msk [vmem:[#allocation3 + $0x3f0] sm:$0xff] %vm978, %v3353
      %3424 = vst.msk [vmem:[#allocation3 + $0x418] sm:$0xff] %vm978, %v3355
      %3425 = vst.msk [vmem:[#allocation3 + $0x440] sm:$0xff] %vm978, %v3357
      %3426 = vst.msk [vmem:[#allocation3 + $0x468] sm:$0xff] %vm978, %v3359
      %3427 = vst.msk [vmem:[#allocation3 + $0x490] sm:$0xff] %vm978, %v3361
      %3428 = vst.msk [vmem:[#allocation3 + $0x4b8] sm:$0xff] %vm978, %v3363
      %3429 = vst.msk [vmem:[#allocation3 + $0x4e0] sm:$0xff] %vm978, %v3365
      %v3430 = vld [vmem:[%s721 + $0x1] sm:$0xff]
      %v3431 = vld [vmem:[%s721 + $0x9] sm:$0xff]
      %v3432 = vld [vmem:[%s721 + $0x19] sm:$0xff]
      %v3433 = vld [vmem:[%s721 + $0x21] sm:$0xff]
      %v3434 = vld [vmem:[%s721 + $0x31] sm:$0xff]
      %v3435 = vld [vmem:[%s721 + $0x39] sm:$0xff]
      %v3436 = vld [vmem:[%s721 + $0x49] sm:$0xff]
      %v3437 = vld [vmem:[%s721 + $0x51] sm:$0xff]
      %v3438 = vld [vmem:[%s721 + $0x61] sm:$0xff]
      %v3439 = vld [vmem:[%s721 + $0x69] sm:$0xff]
      %v3440 = vld [vmem:[%s721 + $0x79] sm:$0xff]
      %v3441 = vld [vmem:[%s721 + $0x81] sm:$0xff]
      %v3442 = vld [vmem:[%s721 + $0x91] sm:$0xff]
      %v3443 = vld [vmem:[%s721 + $0x99] sm:$0xff]
      %v3444 = vld [vmem:[%s721 + $0xa9] sm:$0xff]
      %v3445 = vld [vmem:[%s721 + $0xb1] sm:$0xff]
      %v3446 = vld [vmem:[%s721 + $0xc1] sm:$0xff]
      %v3447 = vld [vmem:[%s721 + $0xc9] sm:$0xff]
      %v3448 = vld [vmem:[%s721 + $0xd9] sm:$0xff]
      %v3449 = vld [vmem:[%s721 + $0xe1] sm:$0xff]
      %v3450 = vld [vmem:[%s721 + $0xf1] sm:$0xff]
      %v3451 = vld [vmem:[%s721 + $0xf9] sm:$0xff]
      %v3452 = vld [vmem:[%s721 + $0x109] sm:$0xff]
      %v3453 = vld [vmem:[%s721 + $0x111] sm:$0xff]
      %v3454 = vld [vmem:[%s721 + $0x121] sm:$0xff]
      %v3455 = vld [vmem:[%s721 + $0x129] sm:$0xff]
      %v3456 = vld [vmem:[%s721 + $0x139] sm:$0xff]
      %v3457 = vld [vmem:[%s721 + $0x141] sm:$0xff]
      %v3458 = vld [vmem:[%s721 + $0x151] sm:$0xff]
      %v3459 = vld [vmem:[%s721 + $0x159] sm:$0xff]
      %v3460 = vld [vmem:[%s721 + $0x169] sm:$0xff]
      %v3461 = vld [vmem:[%s721 + $0x171] sm:$0xff]
      %3462 = vst.msk [vmem:[#allocation3 + $0x10] sm:$0xff] %vm279, %v3430
      %3463 = vst.msk [vmem:[#allocation3 + $0x38] sm:$0xff] %vm279, %v3431
      %3464 = vst.msk [vmem:[#allocation3 + $0x60] sm:$0xff] %vm279, %v3432
      %3465 = vst.msk [vmem:[#allocation3 + $0x88] sm:$0xff] %vm279, %v3433
      %3466 = vst.msk [vmem:[#allocation3 + $0xb0] sm:$0xff] %vm279, %v3434
      %3467 = vst.msk [vmem:[#allocation3 + $0xd8] sm:$0xff] %vm279, %v3435
      %3468 = vst.msk [vmem:[#allocation3 + $0x100] sm:$0xff] %vm279, %v3436
      %3469 = vst.msk [vmem:[#allocation3 + $0x128] sm:$0xff] %vm279, %v3437
      %3470 = vst.msk [vmem:[#allocation3 + $0x150] sm:$0xff] %vm279, %v3438
      %3471 = vst.msk [vmem:[#allocation3 + $0x178] sm:$0xff] %vm279, %v3439
      %3472 = vst.msk [vmem:[#allocation3 + $0x1a0] sm:$0xff] %vm279, %v3440
      %3473 = vst.msk [vmem:[#allocation3 + $0x1c8] sm:$0xff] %vm279, %v3441
      %3474 = vst.msk [vmem:[#allocation3 + $0x1f0] sm:$0xff] %vm279, %v3442
      %3475 = vst.msk [vmem:[#allocation3 + $0x218] sm:$0xff] %vm279, %v3443
      %3476 = vst.msk [vmem:[#allocation3 + $0x240] sm:$0xff] %vm279, %v3444
      %3477 = vst.msk [vmem:[#allocation3 + $0x268] sm:$0xff] %vm279, %v3445
      %3478 = vst.msk [vmem:[#allocation3 + $0x290] sm:$0xff] %vm279, %v3446
      %3479 = vst.msk [vmem:[#allocation3 + $0x2b8] sm:$0xff] %vm279, %v3447
      %3480 = vst.msk [vmem:[#allocation3 + $0x2e0] sm:$0xff] %vm279, %v3448
      %3481 = vst.msk [vmem:[#allocation3 + $0x308] sm:$0xff] %vm279, %v3449
      %3482 = vst.msk [vmem:[#allocation3 + $0x330] sm:$0xff] %vm279, %v3450
      %3483 = vst.msk [vmem:[#allocation3 + $0x358] sm:$0xff] %vm279, %v3451
      %3484 = vst.msk [vmem:[#allocation3 + $0x380] sm:$0xff] %vm279, %v3452
      %3485 = vst.msk [vmem:[#allocation3 + $0x3a8] sm:$0xff] %vm279, %v3453
      %3486 = vst.msk [vmem:[#allocation3 + $0x3d0] sm:$0xff] %vm279, %v3454
      %3487 = vst.msk [vmem:[#allocation3 + $0x3f8] sm:$0xff] %vm279, %v3455
      %3488 = vst.msk [vmem:[#allocation3 + $0x420] sm:$0xff] %vm279, %v3456
      %3489 = vst.msk [vmem:[#allocation3 + $0x448] sm:$0xff] %vm279, %v3457
      %3490 = vst.msk [vmem:[#allocation3 + $0x470] sm:$0xff] %vm279, %v3458
      %3491 = vst.msk [vmem:[#allocation3 + $0x498] sm:$0xff] %vm279, %v3459
      %3492 = vst.msk [vmem:[#allocation3 + $0x4c0] sm:$0xff] %vm279, %v3460
      %3493 = vst.msk [vmem:[#allocation3 + $0x4e8] sm:$0xff] %vm279, %v3461
      %v3494 = vld [vmem:[%s721 + $0x2] sm:$0xff]
      %v3495 = vld [vmem:[%s721 + $0xa] sm:$0xff]
      %v3496 = vld [vmem:[%s721 + $0x1a] sm:$0xff]
      %v3497 = vld [vmem:[%s721 + $0x22] sm:$0xff]
      %v3498 = vld [vmem:[%s721 + $0x32] sm:$0xff]
      %v3499 = vld [vmem:[%s721 + $0x3a] sm:$0xff]
      %v3500 = vld [vmem:[%s721 + $0x4a] sm:$0xff]
      %v3501 = vld [vmem:[%s721 + $0x52] sm:$0xff]
      %v3502 = vld [vmem:[%s721 + $0x62] sm:$0xff]
      %v3503 = vld [vmem:[%s721 + $0x6a] sm:$0xff]
      %v3504 = vld [vmem:[%s721 + $0x7a] sm:$0xff]
      %v3505 = vld [vmem:[%s721 + $0x82] sm:$0xff]
      %v3506 = vld [vmem:[%s721 + $0x92] sm:$0xff]
      %v3507 = vld [vmem:[%s721 + $0x9a] sm:$0xff]
      %v3508 = vld [vmem:[%s721 + $0xaa] sm:$0xff]
      %v3509 = vld [vmem:[%s721 + $0xb2] sm:$0xff]
      %v3510 = vld [vmem:[%s721 + $0xc2] sm:$0xff]
      %v3511 = vld [vmem:[%s721 + $0xca] sm:$0xff]
      %v3512 = vld [vmem:[%s721 + $0xda] sm:$0xff]
      %v3513 = vld [vmem:[%s721 + $0xe2] sm:$0xff]
      %v3514 = vld [vmem:[%s721 + $0xf2] sm:$0xff]
      %v3515 = vld [vmem:[%s721 + $0xfa] sm:$0xff]
      %v3516 = vld [vmem:[%s721 + $0x10a] sm:$0xff]
      %v3517 = vld [vmem:[%s721 + $0x112] sm:$0xff]
      %v3518 = vld [vmem:[%s721 + $0x122] sm:$0xff]
      %v3519 = vld [vmem:[%s721 + $0x12a] sm:$0xff]
      %v3520 = vld [vmem:[%s721 + $0x13a] sm:$0xff]
      %v3521 = vld [vmem:[%s721 + $0x142] sm:$0xff]
      %v3522 = vld [vmem:[%s721 + $0x152] sm:$0xff]
      %v3523 = vld [vmem:[%s721 + $0x15a] sm:$0xff]
      %v3524 = vld [vmem:[%s721 + $0x16a] sm:$0xff]
      %v3525 = vld [vmem:[%s721 + $0x172] sm:$0xff]
      %3558 = vrot.lane.b32.xlu0 %v3494, 64
      %v3559 = vpop.permute.xlu0 %3558
      %3560 = vrot.lane.b32.xlu0 %v3495, 64
      %v3561 = vpop.permute.xlu0 %3560
      %3562 = vrot.lane.b32.xlu0 %v3496, 64
      %v3563 = vpop.permute.xlu0 %3562
      %3564 = vrot.lane.b32.xlu0 %v3497, 64
      %v3565 = vpop.permute.xlu0 %3564
      %3566 = vrot.lane.b32.xlu0 %v3498, 64
      %v3567 = vpop.permute.xlu0 %3566
      %3568 = vrot.lane.b32.xlu0 %v3499, 64
      %v3569 = vpop.permute.xlu0 %3568
      %3570 = vrot.lane.b32.xlu0 %v3500, 64
      %v3571 = vpop.permute.xlu0 %3570
      %3572 = vrot.lane.b32.xlu0 %v3501, 64
      %v3573 = vpop.permute.xlu0 %3572
      %3574 = vrot.lane.b32.xlu0 %v3502, 64
      %v3575 = vpop.permute.xlu0 %3574
      %3576 = vrot.lane.b32.xlu0 %v3503, 64
      %v3577 = vpop.permute.xlu0 %3576
      %3578 = vrot.lane.b32.xlu0 %v3504, 64
      %v3579 = vpop.permute.xlu0 %3578
      %3580 = vrot.lane.b32.xlu0 %v3505, 64
      %v3581 = vpop.permute.xlu0 %3580
      %3582 = vrot.lane.b32.xlu0 %v3506, 64
      %v3583 = vpop.permute.xlu0 %3582
      %3584 = vrot.lane.b32.xlu0 %v3507, 64
      %v3585 = vpop.permute.xlu0 %3584
      %3586 = vrot.lane.b32.xlu0 %v3508, 64
      %v3587 = vpop.permute.xlu0 %3586
      %3588 = vrot.lane.b32.xlu0 %v3509, 64
      %v3589 = vpop.permute.xlu0 %3588
      %3590 = vrot.lane.b32.xlu0 %v3510, 64
      %v3591 = vpop.permute.xlu0 %3590
      %3592 = vrot.lane.b32.xlu0 %v3511, 64
      %v3593 = vpop.permute.xlu0 %3592
      %3594 = vrot.lane.b32.xlu0 %v3512, 64
      %v3595 = vpop.permute.xlu0 %3594
      %3596 = vrot.lane.b32.xlu0 %v3513, 64
      %v3597 = vpop.permute.xlu0 %3596
      %3598 = vrot.lane.b32.xlu0 %v3514, 64
      %v3599 = vpop.permute.xlu0 %3598
      %3600 = vrot.lane.b32.xlu0 %v3515, 64
      %v3601 = vpop.permute.xlu0 %3600
      %3602 = vrot.lane.b32.xlu0 %v3516, 64
      %v3603 = vpop.permute.xlu0 %3602
      %3604 = vrot.lane.b32.xlu0 %v3517, 64
      %v3605 = vpop.permute.xlu0 %3604
      %3606 = vrot.lane.b32.xlu0 %v3518, 64
      %v3607 = vpop.permute.xlu0 %3606
      %3608 = vrot.lane.b32.xlu0 %v3519, 64
      %v3609 = vpop.permute.xlu0 %3608
      %3610 = vrot.lane.b32.xlu0 %v3520, 64
      %v3611 = vpop.permute.xlu0 %3610
      %3612 = vrot.lane.b32.xlu0 %v3521, 64
      %v3613 = vpop.permute.xlu0 %3612
      %3614 = vrot.lane.b32.xlu0 %v3522, 64
      %v3615 = vpop.permute.xlu0 %3614
      %3616 = vrot.lane.b32.xlu0 %v3523, 64
      %v3617 = vpop.permute.xlu0 %3616
      %3618 = vrot.lane.b32.xlu0 %v3524, 64
      %v3619 = vpop.permute.xlu0 %3618
      %3620 = vrot.lane.b32.xlu0 %v3525, 64
      %v3621 = vpop.permute.xlu0 %3620
      %3654 = vst.msk [vmem:[#allocation3 + $0x10] sm:$0xff] %vm978, %v3559
      %3655 = vst.msk [vmem:[#allocation3 + $0x38] sm:$0xff] %vm978, %v3561
      %3656 = vst.msk [vmem:[#allocation3 + $0x60] sm:$0xff] %vm978, %v3563
      %3657 = vst.msk [vmem:[#allocation3 + $0x88] sm:$0xff] %vm978, %v3565
      %3658 = vst.msk [vmem:[#allocation3 + $0xb0] sm:$0xff] %vm978, %v3567
      %3659 = vst.msk [vmem:[#allocation3 + $0xd8] sm:$0xff] %vm978, %v3569
      %3660 = vst.msk [vmem:[#allocation3 + $0x100] sm:$0xff] %vm978, %v3571
      %3661 = vst.msk [vmem:[#allocation3 + $0x128] sm:$0xff] %vm978, %v3573
      %3662 = vst.msk [vmem:[#allocation3 + $0x150] sm:$0xff] %vm978, %v3575
      %3663 = vst.msk [vmem:[#allocation3 + $0x178] sm:$0xff] %vm978, %v3577
      %3664 = vst.msk [vmem:[#allocation3 + $0x1a0] sm:$0xff] %vm978, %v3579
      %3665 = vst.msk [vmem:[#allocation3 + $0x1c8] sm:$0xff] %vm978, %v3581
      %3666 = vst.msk [vmem:[#allocation3 + $0x1f0] sm:$0xff] %vm978, %v3583
      %3667 = vst.msk [vmem:[#allocation3 + $0x218] sm:$0xff] %vm978, %v3585
      %3668 = vst.msk [vmem:[#allocation3 + $0x240] sm:$0xff] %vm978, %v3587
      %3669 = vst.msk [vmem:[#allocation3 + $0x268] sm:$0xff] %vm978, %v3589
      %3670 = vst.msk [vmem:[#allocation3 + $0x290] sm:$0xff] %vm978, %v3591
      %3671 = vst.msk [vmem:[#allocation3 + $0x2b8] sm:$0xff] %vm978, %v3593
      %3672 = vst.msk [vmem:[#allocation3 + $0x2e0] sm:$0xff] %vm978, %v3595
      %3673 = vst.msk [vmem:[#allocation3 + $0x308] sm:$0xff] %vm978, %v3597
      %3674 = vst.msk [vmem:[#allocation3 + $0x330] sm:$0xff] %vm978, %v3599
      %3675 = vst.msk [vmem:[#allocation3 + $0x358] sm:$0xff] %vm978, %v3601
      %3676 = vst.msk [vmem:[#allocation3 + $0x380] sm:$0xff] %vm978, %v3603
      %3677 = vst.msk [vmem:[#allocation3 + $0x3a8] sm:$0xff] %vm978, %v3605
      %3678 = vst.msk [vmem:[#allocation3 + $0x3d0] sm:$0xff] %vm978, %v3607
      %3679 = vst.msk [vmem:[#allocation3 + $0x3f8] sm:$0xff] %vm978, %v3609
      %3680 = vst.msk [vmem:[#allocation3 + $0x420] sm:$0xff] %vm978, %v3611
      %3681 = vst.msk [vmem:[#allocation3 + $0x448] sm:$0xff] %vm978, %v3613
      %3682 = vst.msk [vmem:[#allocation3 + $0x470] sm:$0xff] %vm978, %v3615
      %3683 = vst.msk [vmem:[#allocation3 + $0x498] sm:$0xff] %vm978, %v3617
      %3684 = vst.msk [vmem:[#allocation3 + $0x4c0] sm:$0xff] %vm978, %v3619
      %3685 = vst.msk [vmem:[#allocation3 + $0x4e8] sm:$0xff] %vm978, %v3621
      %v3686 = vld [vmem:[%s1523] sm:$0xff]
      %v3687 = vld [vmem:[%s1523 + $0x8] sm:$0xff]
      %v3688 = vld [vmem:[%s1523 + $0x18] sm:$0xff]
      %v3689 = vld [vmem:[%s1523 + $0x20] sm:$0xff]
      %v3690 = vld [vmem:[%s1523 + $0x30] sm:$0xff]
      %v3691 = vld [vmem:[%s1523 + $0x38] sm:$0xff]
      %v3692 = vld [vmem:[%s1523 + $0x48] sm:$0xff]
      %v3693 = vld [vmem:[%s1523 + $0x50] sm:$0xff]
      %v3694 = vld [vmem:[%s1523 + $0x60] sm:$0xff]
      %v3695 = vld [vmem:[%s1523 + $0x68] sm:$0xff]
      %v3696 = vld [vmem:[%s1523 + $0x78] sm:$0xff]
      %v3697 = vld [vmem:[%s1523 + $0x80] sm:$0xff]
      %v3698 = vld [vmem:[%s1523 + $0x90] sm:$0xff]
      %v3699 = vld [vmem:[%s1523 + $0x98] sm:$0xff]
      %v3700 = vld [vmem:[%s1523 + $0xa8] sm:$0xff]
      %v3701 = vld [vmem:[%s1523 + $0xb0] sm:$0xff]
      %v3702 = vld [vmem:[%s1523 + $0xc0] sm:$0xff]
      %v3703 = vld [vmem:[%s1523 + $0xc8] sm:$0xff]
      %v3704 = vld [vmem:[%s1523 + $0xd8] sm:$0xff]
      %v3705 = vld [vmem:[%s1523 + $0xe0] sm:$0xff]
      %v3706 = vld [vmem:[%s1523 + $0xf0] sm:$0xff]
      %v3707 = vld [vmem:[%s1523 + $0xf8] sm:$0xff]
      %v3708 = vld [vmem:[%s1523 + $0x108] sm:$0xff]
      %v3709 = vld [vmem:[%s1523 + $0x110] sm:$0xff]
      %v3710 = vld [vmem:[%s1523 + $0x120] sm:$0xff]
      %v3711 = vld [vmem:[%s1523 + $0x128] sm:$0xff]
      %v3712 = vld [vmem:[%s1523 + $0x138] sm:$0xff]
      %v3713 = vld [vmem:[%s1523 + $0x140] sm:$0xff]
      %v3714 = vld [vmem:[%s1523 + $0x150] sm:$0xff]
      %v3715 = vld [vmem:[%s1523 + $0x158] sm:$0xff]
      %v3716 = vld [vmem:[%s1523 + $0x168] sm:$0xff]
      %v3717 = vld [vmem:[%s1523 + $0x170] sm:$0xff]
      %3718 = vst.msk [vmem:[#allocation3 + $0x18] sm:$0xff] %vm279, %v3686
      %3719 = vst.msk [vmem:[#allocation3 + $0x40] sm:$0xff] %vm279, %v3687
      %3720 = vst.msk [vmem:[#allocation3 + $0x68] sm:$0xff] %vm279, %v3688
      %3721 = vst.msk [vmem:[#allocation3 + $0x90] sm:$0xff] %vm279, %v3689
      %3722 = vst.msk [vmem:[#allocation3 + $0xb8] sm:$0xff] %vm279, %v3690
      %3723 = vst.msk [vmem:[#allocation3 + $0xe0] sm:$0xff] %vm279, %v3691
      %3724 = vst.msk [vmem:[#allocation3 + $0x108] sm:$0xff] %vm279, %v3692
      %3725 = vst.msk [vmem:[#allocation3 + $0x130] sm:$0xff] %vm279, %v3693
      %3726 = vst.msk [vmem:[#allocation3 + $0x158] sm:$0xff] %vm279, %v3694
      %3727 = vst.msk [vmem:[#allocation3 + $0x180] sm:$0xff] %vm279, %v3695
      %3728 = vst.msk [vmem:[#allocation3 + $0x1a8] sm:$0xff] %vm279, %v3696
      %3729 = vst.msk [vmem:[#allocation3 + $0x1d0] sm:$0xff] %vm279, %v3697
      %3730 = vst.msk [vmem:[#allocation3 + $0x1f8] sm:$0xff] %vm279, %v3698
      %3731 = vst.msk [vmem:[#allocation3 + $0x220] sm:$0xff] %vm279, %v3699
      %3732 = vst.msk [vmem:[#allocation3 + $0x248] sm:$0xff] %vm279, %v3700
      %3733 = vst.msk [vmem:[#allocation3 + $0x270] sm:$0xff] %vm279, %v3701
      %3734 = vst.msk [vmem:[#allocation3 + $0x298] sm:$0xff] %vm279, %v3702
      %3735 = vst.msk [vmem:[#allocation3 + $0x2c0] sm:$0xff] %vm279, %v3703
      %3736 = vst.msk [vmem:[#allocation3 + $0x2e8] sm:$0xff] %vm279, %v3704
      %3737 = vst.msk [vmem:[#allocation3 + $0x310] sm:$0xff] %vm279, %v3705
      %3738 = vst.msk [vmem:[#allocation3 + $0x338] sm:$0xff] %vm279, %v3706
      %3739 = vst.msk [vmem:[#allocation3 + $0x360] sm:$0xff] %vm279, %v3707
      %3740 = vst.msk [vmem:[#allocation3 + $0x388] sm:$0xff] %vm279, %v3708
      %3741 = vst.msk [vmem:[#allocation3 + $0x3b0] sm:$0xff] %vm279, %v3709
      %3742 = vst.msk [vmem:[#allocation3 + $0x3d8] sm:$0xff] %vm279, %v3710
      %3743 = vst.msk [vmem:[#allocation3 + $0x400] sm:$0xff] %vm279, %v3711
      %3744 = vst.msk [vmem:[#allocation3 + $0x428] sm:$0xff] %vm279, %v3712
      %3745 = vst.msk [vmem:[#allocation3 + $0x450] sm:$0xff] %vm279, %v3713
      %3746 = vst.msk [vmem:[#allocation3 + $0x478] sm:$0xff] %vm279, %v3714
      %3747 = vst.msk [vmem:[#allocation3 + $0x4a0] sm:$0xff] %vm279, %v3715
      %3748 = vst.msk [vmem:[#allocation3 + $0x4c8] sm:$0xff] %vm279, %v3716
      %3749 = vst.msk [vmem:[#allocation3 + $0x4f0] sm:$0xff] %vm279, %v3717
      %v3750 = vld [vmem:[%s1523 + $0x1] sm:$0xff]
      %v3751 = vld [vmem:[%s1523 + $0x9] sm:$0xff]
      %v3752 = vld [vmem:[%s1523 + $0x19] sm:$0xff]
      %v3753 = vld [vmem:[%s1523 + $0x21] sm:$0xff]
      %v3754 = vld [vmem:[%s1523 + $0x31] sm:$0xff]
      %v3755 = vld [vmem:[%s1523 + $0x39] sm:$0xff]
      %v3756 = vld [vmem:[%s1523 + $0x49] sm:$0xff]
      %v3757 = vld [vmem:[%s1523 + $0x51] sm:$0xff]
      %v3758 = vld [vmem:[%s1523 + $0x61] sm:$0xff]
      %v3759 = vld [vmem:[%s1523 + $0x69] sm:$0xff]
      %v3760 = vld [vmem:[%s1523 + $0x79] sm:$0xff]
      %v3761 = vld [vmem:[%s1523 + $0x81] sm:$0xff]
      %v3762 = vld [vmem:[%s1523 + $0x91] sm:$0xff]
      %v3763 = vld [vmem:[%s1523 + $0x99] sm:$0xff]
      %v3764 = vld [vmem:[%s1523 + $0xa9] sm:$0xff]
      %v3765 = vld [vmem:[%s1523 + $0xb1] sm:$0xff]
      %v3766 = vld [vmem:[%s1523 + $0xc1] sm:$0xff]
      %v3767 = vld [vmem:[%s1523 + $0xc9] sm:$0xff]
      %v3768 = vld [vmem:[%s1523 + $0xd9] sm:$0xff]
      %v3769 = vld [vmem:[%s1523 + $0xe1] sm:$0xff]
      %v3770 = vld [vmem:[%s1523 + $0xf1] sm:$0xff]
      %v3771 = vld [vmem:[%s1523 + $0xf9] sm:$0xff]
      %v3772 = vld [vmem:[%s1523 + $0x109] sm:$0xff]
      %v3773 = vld [vmem:[%s1523 + $0x111] sm:$0xff]
      %v3774 = vld [vmem:[%s1523 + $0x121] sm:$0xff]
      %v3775 = vld [vmem:[%s1523 + $0x129] sm:$0xff]
      %v3776 = vld [vmem:[%s1523 + $0x139] sm:$0xff]
      %v3777 = vld [vmem:[%s1523 + $0x141] sm:$0xff]
      %v3778 = vld [vmem:[%s1523 + $0x151] sm:$0xff]
      %v3779 = vld [vmem:[%s1523 + $0x159] sm:$0xff]
      %v3780 = vld [vmem:[%s1523 + $0x169] sm:$0xff]
      %v3781 = vld [vmem:[%s1523 + $0x171] sm:$0xff]
      %3814 = vrot.lane.b32.xlu0 %v3750, 64
      %v3815 = vpop.permute.xlu0 %3814
      %3816 = vrot.lane.b32.xlu0 %v3751, 64
      %v3817 = vpop.permute.xlu0 %3816
      %3818 = vrot.lane.b32.xlu0 %v3752, 64
      %v3819 = vpop.permute.xlu0 %3818
      %3820 = vrot.lane.b32.xlu0 %v3753, 64
      %v3821 = vpop.permute.xlu0 %3820
      %3822 = vrot.lane.b32.xlu0 %v3754, 64
      %v3823 = vpop.permute.xlu0 %3822
      %3824 = vrot.lane.b32.xlu0 %v3755, 64
      %v3825 = vpop.permute.xlu0 %3824
      %3826 = vrot.lane.b32.xlu0 %v3756, 64
      %v3827 = vpop.permute.xlu0 %3826
      %3828 = vrot.lane.b32.xlu0 %v3757, 64
      %v3829 = vpop.permute.xlu0 %3828
      %3830 = vrot.lane.b32.xlu0 %v3758, 64
      %v3831 = vpop.permute.xlu0 %3830
      %3832 = vrot.lane.b32.xlu0 %v3759, 64
      %v3833 = vpop.permute.xlu0 %3832
      %3834 = vrot.lane.b32.xlu0 %v3760, 64
      %v3835 = vpop.permute.xlu0 %3834
      %3836 = vrot.lane.b32.xlu0 %v3761, 64
      %v3837 = vpop.permute.xlu0 %3836
      %3838 = vrot.lane.b32.xlu0 %v3762, 64
      %v3839 = vpop.permute.xlu0 %3838
      %3840 = vrot.lane.b32.xlu0 %v3763, 64
      %v3841 = vpop.permute.xlu0 %3840
      %3842 = vrot.lane.b32.xlu0 %v3764, 64
      %v3843 = vpop.permute.xlu0 %3842
      %3844 = vrot.lane.b32.xlu0 %v3765, 64
      %v3845 = vpop.permute.xlu0 %3844
      %3846 = vrot.lane.b32.xlu0 %v3766, 64
      %v3847 = vpop.permute.xlu0 %3846
      %3848 = vrot.lane.b32.xlu0 %v3767, 64
      %v3849 = vpop.permute.xlu0 %3848
      %3850 = vrot.lane.b32.xlu0 %v3768, 64
      %v3851 = vpop.permute.xlu0 %3850
      %3852 = vrot.lane.b32.xlu0 %v3769, 64
      %v3853 = vpop.permute.xlu0 %3852
      %3854 = vrot.lane.b32.xlu0 %v3770, 64
      %v3855 = vpop.permute.xlu0 %3854
      %3856 = vrot.lane.b32.xlu0 %v3771, 64
      %v3857 = vpop.permute.xlu0 %3856
      %3858 = vrot.lane.b32.xlu0 %v3772, 64
      %v3859 = vpop.permute.xlu0 %3858
      %3860 = vrot.lane.b32.xlu0 %v3773, 64
      %v3861 = vpop.permute.xlu0 %3860
      %3862 = vrot.lane.b32.xlu0 %v3774, 64
      %v3863 = vpop.permute.xlu0 %3862
      %3864 = vrot.lane.b32.xlu0 %v3775, 64
      %v3865 = vpop.permute.xlu0 %3864
      %3866 = vrot.lane.b32.xlu0 %v3776, 64
      %v3867 = vpop.permute.xlu0 %3866
      %3868 = vrot.lane.b32.xlu0 %v3777, 64
      %v3869 = vpop.permute.xlu0 %3868
      %3870 = vrot.lane.b32.xlu0 %v3778, 64
      %v3871 = vpop.permute.xlu0 %3870
      %3872 = vrot.lane.b32.xlu0 %v3779, 64
      %v3873 = vpop.permute.xlu0 %3872
      %3874 = vrot.lane.b32.xlu0 %v3780, 64
      %v3875 = vpop.permute.xlu0 %3874
      %3876 = vrot.lane.b32.xlu0 %v3781, 64
      %v3877 = vpop.permute.xlu0 %3876
      %3910 = vst.msk [vmem:[#allocation3 + $0x18] sm:$0xff] %vm978, %v3815
      %3911 = vst.msk [vmem:[#allocation3 + $0x40] sm:$0xff] %vm978, %v3817
      %3912 = vst.msk [vmem:[#allocation3 + $0x68] sm:$0xff] %vm978, %v3819
      %3913 = vst.msk [vmem:[#allocation3 + $0x90] sm:$0xff] %vm978, %v3821
      %3914 = vst.msk [vmem:[#allocation3 + $0xb8] sm:$0xff] %vm978, %v3823
      %3915 = vst.msk [vmem:[#allocation3 + $0xe0] sm:$0xff] %vm978, %v3825
      %3916 = vst.msk [vmem:[#allocation3 + $0x108] sm:$0xff] %vm978, %v3827
      %3917 = vst.msk [vmem:[#allocation3 + $0x130] sm:$0xff] %vm978, %v3829
      %3918 = vst.msk [vmem:[#allocation3 + $0x158] sm:$0xff] %vm978, %v3831
      %3919 = vst.msk [vmem:[#allocation3 + $0x180] sm:$0xff] %vm978, %v3833
      %3920 = vst.msk [vmem:[#allocation3 + $0x1a8] sm:$0xff] %vm978, %v3835
      %3921 = vst.msk [vmem:[#allocation3 + $0x1d0] sm:$0xff] %vm978, %v3837
      %3922 = vst.msk [vmem:[#allocation3 + $0x1f8] sm:$0xff] %vm978, %v3839
      %3923 = vst.msk [vmem:[#allocation3 + $0x220] sm:$0xff] %vm978, %v3841
      %3924 = vst.msk [vmem:[#allocation3 + $0x248] sm:$0xff] %vm978, %v3843
      %3925 = vst.msk [vmem:[#allocation3 + $0x270] sm:$0xff] %vm978, %v3845
      %3926 = vst.msk [vmem:[#allocation3 + $0x298] sm:$0xff] %vm978, %v3847
      %3927 = vst.msk [vmem:[#allocation3 + $0x2c0] sm:$0xff] %vm978, %v3849
      %3928 = vst.msk [vmem:[#allocation3 + $0x2e8] sm:$0xff] %vm978, %v3851
      %3929 = vst.msk [vmem:[#allocation3 + $0x310] sm:$0xff] %vm978, %v3853
      %3930 = vst.msk [vmem:[#allocation3 + $0x338] sm:$0xff] %vm978, %v3855
      %3931 = vst.msk [vmem:[#allocation3 + $0x360] sm:$0xff] %vm978, %v3857
      %3932 = vst.msk [vmem:[#allocation3 + $0x388] sm:$0xff] %vm978, %v3859
      %3933 = vst.msk [vmem:[#allocation3 + $0x3b0] sm:$0xff] %vm978, %v3861
      %3934 = vst.msk [vmem:[#allocation3 + $0x3d8] sm:$0xff] %vm978, %v3863
      %3935 = vst.msk [vmem:[#allocation3 + $0x400] sm:$0xff] %vm978, %v3865
      %3936 = vst.msk [vmem:[#allocation3 + $0x428] sm:$0xff] %vm978, %v3867
      %3937 = vst.msk [vmem:[#allocation3 + $0x450] sm:$0xff] %vm978, %v3869
      %3938 = vst.msk [vmem:[#allocation3 + $0x478] sm:$0xff] %vm978, %v3871
      %3939 = vst.msk [vmem:[#allocation3 + $0x4a0] sm:$0xff] %vm978, %v3873
      %3940 = vst.msk [vmem:[#allocation3 + $0x4c8] sm:$0xff] %vm978, %v3875
      %3941 = vst.msk [vmem:[#allocation3 + $0x4f0] sm:$0xff] %vm978, %v3877
      %v3942 = vld [vmem:[%s1523 + $0x2] sm:$0xff]
      %v3943 = vld [vmem:[%s1523 + $0xa] sm:$0xff]
      %v3944 = vld [vmem:[%s1523 + $0x1a] sm:$0xff]
      %v3945 = vld [vmem:[%s1523 + $0x22] sm:$0xff]
      %v3946 = vld [vmem:[%s1523 + $0x32] sm:$0xff]
      %v3947 = vld [vmem:[%s1523 + $0x3a] sm:$0xff]
      %v3948 = vld [vmem:[%s1523 + $0x4a] sm:$0xff]
      %v3949 = vld [vmem:[%s1523 + $0x52] sm:$0xff]
      %v3950 = vld [vmem:[%s1523 + $0x62] sm:$0xff]
      %v3951 = vld [vmem:[%s1523 + $0x6a] sm:$0xff]
      %v3952 = vld [vmem:[%s1523 + $0x7a] sm:$0xff]
      %v3953 = vld [vmem:[%s1523 + $0x82] sm:$0xff]
      %v3954 = vld [vmem:[%s1523 + $0x92] sm:$0xff]
      %v3955 = vld [vmem:[%s1523 + $0x9a] sm:$0xff]
      %v3956 = vld [vmem:[%s1523 + $0xaa] sm:$0xff]
      %v3957 = vld [vmem:[%s1523 + $0xb2] sm:$0xff]
      %v3958 = vld [vmem:[%s1523 + $0xc2] sm:$0xff]
      %v3959 = vld [vmem:[%s1523 + $0xca] sm:$0xff]
      %v3960 = vld [vmem:[%s1523 + $0xda] sm:$0xff]
      %v3961 = vld [vmem:[%s1523 + $0xe2] sm:$0xff]
      %v3962 = vld [vmem:[%s1523 + $0xf2] sm:$0xff]
      %v3963 = vld [vmem:[%s1523 + $0xfa] sm:$0xff]
      %v3964 = vld [vmem:[%s1523 + $0x10a] sm:$0xff]
      %v3965 = vld [vmem:[%s1523 + $0x112] sm:$0xff]
      %v3966 = vld [vmem:[%s1523 + $0x122] sm:$0xff]
      %v3967 = vld [vmem:[%s1523 + $0x12a] sm:$0xff]
      %v3968 = vld [vmem:[%s1523 + $0x13a] sm:$0xff]
      %v3969 = vld [vmem:[%s1523 + $0x142] sm:$0xff]
      %v3970 = vld [vmem:[%s1523 + $0x152] sm:$0xff]
      %v3971 = vld [vmem:[%s1523 + $0x15a] sm:$0xff]
      %v3972 = vld [vmem:[%s1523 + $0x16a] sm:$0xff]
      %v3973 = vld [vmem:[%s1523 + $0x172] sm:$0xff]
      %3974 = vst.msk [vmem:[#allocation3 + $0x20] sm:$0xff] %vm279, %v3942
      %3975 = vst.msk [vmem:[#allocation3 + $0x48] sm:$0xff] %vm279, %v3943
      %3976 = vst.msk [vmem:[#allocation3 + $0x70] sm:$0xff] %vm279, %v3944
      %3977 = vst.msk [vmem:[#allocation3 + $0x98] sm:$0xff] %vm279, %v3945
      %3978 = vst.msk [vmem:[#allocation3 + $0xc0] sm:$0xff] %vm279, %v3946
      %3979 = vst.msk [vmem:[#allocation3 + $0xe8] sm:$0xff] %vm279, %v3947
      %3980 = vst.msk [vmem:[#allocation3 + $0x110] sm:$0xff] %vm279, %v3948
      %3981 = vst.msk [vmem:[#allocation3 + $0x138] sm:$0xff] %vm279, %v3949
      %3982 = vst.msk [vmem:[#allocation3 + $0x160] sm:$0xff] %vm279, %v3950
      %3983 = vst.msk [vmem:[#allocation3 + $0x188] sm:$0xff] %vm279, %v3951
      %3984 = vst.msk [vmem:[#allocation3 + $0x1b0] sm:$0xff] %vm279, %v3952
      %3985 = vst.msk [vmem:[#allocation3 + $0x1d8] sm:$0xff] %vm279, %v3953
      %3986 = vst.msk [vmem:[#allocation3 + $0x200] sm:$0xff] %vm279, %v3954
      %3987 = vst.msk [vmem:[#allocation3 + $0x228] sm:$0xff] %vm279, %v3955
      %3988 = vst.msk [vmem:[#allocation3 + $0x250] sm:$0xff] %vm279, %v3956
      %3989 = vst.msk [vmem:[#allocation3 + $0x278] sm:$0xff] %vm279, %v3957
      %3990 = vst.msk [vmem:[#allocation3 + $0x2a0] sm:$0xff] %vm279, %v3958
      %3991 = vst.msk [vmem:[#allocation3 + $0x2c8] sm:$0xff] %vm279, %v3959
      %3992 = vst.msk [vmem:[#allocation3 + $0x2f0] sm:$0xff] %vm279, %v3960
      %3993 = vst.msk [vmem:[#allocation3 + $0x318] sm:$0xff] %vm279, %v3961
      %3994 = vst.msk [vmem:[#allocation3 + $0x340] sm:$0xff] %vm279, %v3962
      %3995 = vst.msk [vmem:[#allocation3 + $0x368] sm:$0xff] %vm279, %v3963
      %3996 = vst.msk [vmem:[#allocation3 + $0x390] sm:$0xff] %vm279, %v3964
      %3997 = vst.msk [vmem:[#allocation3 + $0x3b8] sm:$0xff] %vm279, %v3965
      %3998 = vst.msk [vmem:[#allocation3 + $0x3e0] sm:$0xff] %vm279, %v3966
      %3999 = vst.msk [vmem:[#allocation3 + $0x408] sm:$0xff] %vm279, %v3967
      %4000 = vst.msk [vmem:[#allocation3 + $0x430] sm:$0xff] %vm279, %v3968
      %4001 = vst.msk [vmem:[#allocation3 + $0x458] sm:$0xff] %vm279, %v3969
      %4002 = vst.msk [vmem:[#allocation3 + $0x480] sm:$0xff] %vm279, %v3970
      %4003 = vst.msk [vmem:[#allocation3 + $0x4a8] sm:$0xff] %vm279, %v3971
      %4004 = vst.msk [vmem:[#allocation3 + $0x4d0] sm:$0xff] %vm279, %v3972
      %4005 = vst.msk [vmem:[#allocation3 + $0x4f8] sm:$0xff] %vm279, %v3973
      %v4006 = vld [vmem:[#allocation3] sm:$0xff]
      %v4007 = vld [vmem:[#allocation3 + $0x8] sm:$0xff]
      %v4008 = vld [vmem:[#allocation3 + $0x10] sm:$0xff]
      %v4009 = vld [vmem:[#allocation3 + $0x18] sm:$0xff]
      %v4010 = vld [vmem:[#allocation3 + $0x20] sm:$0xff]
      %v4011 = vld [vmem:[#allocation3 + $0x28] sm:$0xff]
      %v4012 = vld [vmem:[#allocation3 + $0x30] sm:$0xff]
      %v4013 = vld [vmem:[#allocation3 + $0x38] sm:$0xff]
      %v4014 = vld [vmem:[#allocation3 + $0x40] sm:$0xff]
      %v4015 = vld [vmem:[#allocation3 + $0x48] sm:$0xff]
      %v4016 = vld [vmem:[#allocation3 + $0x50] sm:$0xff]
      %v4017 = vld [vmem:[#allocation3 + $0x58] sm:$0xff]
      %v4018 = vld [vmem:[#allocation3 + $0x60] sm:$0xff]
      %v4019 = vld [vmem:[#allocation3 + $0x68] sm:$0xff]
      %v4020 = vld [vmem:[#allocation3 + $0x70] sm:$0xff]
      %v4021 = vld [vmem:[#allocation3 + $0x78] sm:$0xff]
      %v4022 = vld [vmem:[#allocation3 + $0x80] sm:$0xff]
      %v4023 = vld [vmem:[#allocation3 + $0x88] sm:$0xff]
      %v4024 = vld [vmem:[#allocation3 + $0x90] sm:$0xff]
      %v4025 = vld [vmem:[#allocation3 + $0x98] sm:$0xff]
      %v4026 = vld [vmem:[#allocation3 + $0xa0] sm:$0xff]
      %v4027 = vld [vmem:[#allocation3 + $0xa8] sm:$0xff]
      %v4028 = vld [vmem:[#allocation3 + $0xb0] sm:$0xff]
      %v4029 = vld [vmem:[#allocation3 + $0xb8] sm:$0xff]
      %v4030 = vld [vmem:[#allocation3 + $0xc0] sm:$0xff]
      %v4031 = vld [vmem:[#allocation3 + $0xc8] sm:$0xff]
      %v4032 = vld [vmem:[#allocation3 + $0xd0] sm:$0xff]
      %v4033 = vld [vmem:[#allocation3 + $0xd8] sm:$0xff]
      %v4034 = vld [vmem:[#allocation3 + $0xe0] sm:$0xff]
      %v4035 = vld [vmem:[#allocation3 + $0xe8] sm:$0xff]
      %v4036 = vld [vmem:[#allocation3 + $0xf0] sm:$0xff]
      %v4037 = vld [vmem:[#allocation3 + $0xf8] sm:$0xff]
      %v4038 = vld [vmem:[#allocation3 + $0x100] sm:$0xff]
      %v4039 = vld [vmem:[#allocation3 + $0x108] sm:$0xff]
      %v4040 = vld [vmem:[#allocation3 + $0x110] sm:$0xff]
      %v4041 = vld [vmem:[#allocation3 + $0x118] sm:$0xff]
      %v4042 = vld [vmem:[#allocation3 + $0x120] sm:$0xff]
      %v4043 = vld [vmem:[#allocation3 + $0x128] sm:$0xff]
      %v4044 = vld [vmem:[#allocation3 + $0x130] sm:$0xff]
      %v4045 = vld [vmem:[#allocation3 + $0x138] sm:$0xff]
      %v4046 = vld [vmem:[#allocation3 + $0x140] sm:$0xff]
      %v4047 = vld [vmem:[#allocation3 + $0x148] sm:$0xff]
      %v4048 = vld [vmem:[#allocation3 + $0x150] sm:$0xff]
      %v4049 = vld [vmem:[#allocation3 + $0x158] sm:$0xff]
      %v4050 = vld [vmem:[#allocation3 + $0x160] sm:$0xff]
      %v4051 = vld [vmem:[#allocation3 + $0x168] sm:$0xff]
      %v4052 = vld [vmem:[#allocation3 + $0x170] sm:$0xff]
      %v4053 = vld [vmem:[#allocation3 + $0x178] sm:$0xff]
      %v4054 = vld [vmem:[#allocation3 + $0x180] sm:$0xff]
      %v4055 = vld [vmem:[#allocation3 + $0x188] sm:$0xff]
      %v4056 = vld [vmem:[#allocation3 + $0x190] sm:$0xff]
      %v4057 = vld [vmem:[#allocation3 + $0x198] sm:$0xff]
      %v4058 = vld [vmem:[#allocation3 + $0x1a0] sm:$0xff]
      %v4059 = vld [vmem:[#allocation3 + $0x1a8] sm:$0xff]
      %v4060 = vld [vmem:[#allocation3 + $0x1b0] sm:$0xff]
      %v4061 = vld [vmem:[#allocation3 + $0x1b8] sm:$0xff]
      %v4062 = vld [vmem:[#allocation3 + $0x1c0] sm:$0xff]
      %v4063 = vld [vmem:[#allocation3 + $0x1c8] sm:$0xff]
      %v4064 = vld [vmem:[#allocation3 + $0x1d0] sm:$0xff]
      %v4065 = vld [vmem:[#allocation3 + $0x1d8] sm:$0xff]
      %v4066 = vld [vmem:[#allocation3 + $0x1e0] sm:$0xff]
      %v4067 = vld [vmem:[#allocation3 + $0x1e8] sm:$0xff]
      %v4068 = vld [vmem:[#allocation3 + $0x1f0] sm:$0xff]
      %v4069 = vld [vmem:[#allocation3 + $0x1f8] sm:$0xff]
      %v4070 = vld [vmem:[#allocation3 + $0x200] sm:$0xff]
      %v4071 = vld [vmem:[#allocation3 + $0x208] sm:$0xff]
      %v4072 = vld [vmem:[#allocation3 + $0x210] sm:$0xff]
      %v4073 = vld [vmem:[#allocation3 + $0x218] sm:$0xff]
      %v4074 = vld [vmem:[#allocation3 + $0x220] sm:$0xff]
      %v4075 = vld [vmem:[#allocation3 + $0x228] sm:$0xff]
      %v4076 = vld [vmem:[#allocation3 + $0x230] sm:$0xff]
      %v4077 = vld [vmem:[#allocation3 + $0x238] sm:$0xff]
      %v4078 = vld [vmem:[#allocation3 + $0x240] sm:$0xff]
      %v4079 = vld [vmem:[#allocation3 + $0x248] sm:$0xff]
      %v4080 = vld [vmem:[#allocation3 + $0x250] sm:$0xff]
      %v4081 = vld [vmem:[#allocation3 + $0x258] sm:$0xff]
      %v4082 = vld [vmem:[#allocation3 + $0x260] sm:$0xff]
      %v4083 = vld [vmem:[#allocation3 + $0x268] sm:$0xff]
      %v4084 = vld [vmem:[#allocation3 + $0x270] sm:$0xff]
      %v4085 = vld [vmem:[#allocation3 + $0x278] sm:$0xff]
      %v4086 = vld [vmem:[#allocation3 + $0x280] sm:$0xff]
      %v4087 = vld [vmem:[#allocation3 + $0x288] sm:$0xff]
      %v4088 = vld [vmem:[#allocation3 + $0x290] sm:$0xff]
      %v4089 = vld [vmem:[#allocation3 + $0x298] sm:$0xff]
      %v4090 = vld [vmem:[#allocation3 + $0x2a0] sm:$0xff]
      %v4091 = vld [vmem:[#allocation3 + $0x2a8] sm:$0xff]
      %v4092 = vld [vmem:[#allocation3 + $0x2b0] sm:$0xff]
      %v4093 = vld [vmem:[#allocation3 + $0x2b8] sm:$0xff]
      %v4094 = vld [vmem:[#allocation3 + $0x2c0] sm:$0xff]
      %v4095 = vld [vmem:[#allocation3 + $0x2c8] sm:$0xff]
      %v4096 = vld [vmem:[#allocation3 + $0x2d0] sm:$0xff]
      %v4097 = vld [vmem:[#allocation3 + $0x2d8] sm:$0xff]
      %v4098 = vld [vmem:[#allocation3 + $0x2e0] sm:$0xff]
      %v4099 = vld [vmem:[#allocation3 + $0x2e8] sm:$0xff]
      %v4100 = vld [vmem:[#allocation3 + $0x2f0] sm:$0xff]
      %v4101 = vld [vmem:[#allocation3 + $0x2f8] sm:$0xff]
      %v4102 = vld [vmem:[#allocation3 + $0x300] sm:$0xff]
      %v4103 = vld [vmem:[#allocation3 + $0x308] sm:$0xff]
      %v4104 = vld [vmem:[#allocation3 + $0x310] sm:$0xff]
      %v4105 = vld [vmem:[#allocation3 + $0x318] sm:$0xff]
      %v4106 = vld [vmem:[#allocation3 + $0x320] sm:$0xff]
      %v4107 = vld [vmem:[#allocation3 + $0x328] sm:$0xff]
      %v4108 = vld [vmem:[#allocation3 + $0x330] sm:$0xff]
      %v4109 = vld [vmem:[#allocation3 + $0x338] sm:$0xff]
      %v4110 = vld [vmem:[#allocation3 + $0x340] sm:$0xff]
      %v4111 = vld [vmem:[#allocation3 + $0x348] sm:$0xff]
      %v4112 = vld [vmem:[#allocation3 + $0x350] sm:$0xff]
      %v4113 = vld [vmem:[#allocation3 + $0x358] sm:$0xff]
      %v4114 = vld [vmem:[#allocation3 + $0x360] sm:$0xff]
      %v4115 = vld [vmem:[#allocation3 + $0x368] sm:$0xff]
      %v4116 = vld [vmem:[#allocation3 + $0x370] sm:$0xff]
      %v4117 = vld [vmem:[#allocation3 + $0x378] sm:$0xff]
      %v4118 = vld [vmem:[#allocation3 + $0x380] sm:$0xff]
      %v4119 = vld [vmem:[#allocation3 + $0x388] sm:$0xff]
      %v4120 = vld [vmem:[#allocation3 + $0x390] sm:$0xff]
      %v4121 = vld [vmem:[#allocation3 + $0x398] sm:$0xff]
      %v4122 = vld [vmem:[#allocation3 + $0x3a0] sm:$0xff]
      %v4123 = vld [vmem:[#allocation3 + $0x3a8] sm:$0xff]
      %v4124 = vld [vmem:[#allocation3 + $0x3b0] sm:$0xff]
      %v4125 = vld [vmem:[#allocation3 + $0x3b8] sm:$0xff]
      %v4126 = vld [vmem:[#allocation3 + $0x3c0] sm:$0xff]
      %v4127 = vld [vmem:[#allocation3 + $0x3c8] sm:$0xff]
      %v4128 = vld [vmem:[#allocation3 + $0x3d0] sm:$0xff]
      %v4129 = vld [vmem:[#allocation3 + $0x3d8] sm:$0xff]
      %v4130 = vld [vmem:[#allocation3 + $0x3e0] sm:$0xff]
      %v4131 = vld [vmem:[#allocation3 + $0x3e8] sm:$0xff]
      %v4132 = vld [vmem:[#allocation3 + $0x3f0] sm:$0xff]
      %v4133 = vld [vmem:[#allocation3 + $0x3f8] sm:$0xff]
      %v4134 = vld [vmem:[#allocation3 + $0x400] sm:$0xff]
      %v4135 = vld [vmem:[#allocation3 + $0x408] sm:$0xff]
      %v4136 = vld [vmem:[#allocation3 + $0x410] sm:$0xff]
      %v4137 = vld [vmem:[#allocation3 + $0x418] sm:$0xff]
      %v4138 = vld [vmem:[#allocation3 + $0x420] sm:$0xff]
      %v4139 = vld [vmem:[#allocation3 + $0x428] sm:$0xff]
      %v4140 = vld [vmem:[#allocation3 + $0x430] sm:$0xff]
      %v4141 = vld [vmem:[#allocation3 + $0x438] sm:$0xff]
      %v4142 = vld [vmem:[#allocation3 + $0x440] sm:$0xff]
      %v4143 = vld [vmem:[#allocation3 + $0x448] sm:$0xff]
      %v4144 = vld [vmem:[#allocation3 + $0x450] sm:$0xff]
      %v4145 = vld [vmem:[#allocation3 + $0x458] sm:$0xff]
      %v4146 = vld [vmem:[#allocation3 + $0x460] sm:$0xff]
      %v4147 = vld [vmem:[#allocation3 + $0x468] sm:$0xff]
      %v4148 = vld [vmem:[#allocation3 + $0x470] sm:$0xff]
      %v4149 = vld [vmem:[#allocation3 + $0x478] sm:$0xff]
      %v4150 = vld [vmem:[#allocation3 + $0x480] sm:$0xff]
      %v4151 = vld [vmem:[#allocation3 + $0x488] sm:$0xff]
      %v4152 = vld [vmem:[#allocation3 + $0x490] sm:$0xff]
      %v4153 = vld [vmem:[#allocation3 + $0x498] sm:$0xff]
      %v4154 = vld [vmem:[#allocation3 + $0x4a0] sm:$0xff]
      %v4155 = vld [vmem:[#allocation3 + $0x4a8] sm:$0xff]
      %v4156 = vld [vmem:[#allocation3 + $0x4b0] sm:$0xff]
      %v4157 = vld [vmem:[#allocation3 + $0x4b8] sm:$0xff]
      %v4158 = vld [vmem:[#allocation3 + $0x4c0] sm:$0xff]
      %v4159 = vld [vmem:[#allocation3 + $0x4c8] sm:$0xff]
      %v4160 = vld [vmem:[#allocation3 + $0x4d0] sm:$0xff]
      %v4161 = vld [vmem:[#allocation3 + $0x4d8] sm:$0xff]
      %v4162 = vld [vmem:[#allocation3 + $0x4e0] sm:$0xff]
      %v4163 = vld [vmem:[#allocation3 + $0x4e8] sm:$0xff]
      %v4164 = vld [vmem:[#allocation3 + $0x4f0] sm:$0xff]
      %v4165 = vld [vmem:[#allocation3 + $0x4f8] sm:$0xff]
      %v4166 = vld [vmem:[%s5] sm:$0xff]
      %v4167 = vld [vmem:[%s5 + $0x8] sm:$0xff]
      %v4168 = vld [vmem:[%s5 + $0x10] sm:$0xff]
      %v4169 = vld [vmem:[%s5 + $0x18] sm:$0xff]
      %v4170 = vld [vmem:[%s5 + $0x20] sm:$0xff]
      %v4171 = vld [vmem:[%s5 + $0x28] sm:$0xff]
      %v4172 = vld [vmem:[%s5 + $0x30] sm:$0xff]
      %v4173 = vld [vmem:[%s5 + $0x38] sm:$0xff]
      %v4174 = vld [vmem:[%s5 + $0x40] sm:$0xff]
      %v4175 = vld [vmem:[%s5 + $0x48] sm:$0xff]
      %v4176 = vld [vmem:[%s5 + $0x50] sm:$0xff]
      %v4177 = vld [vmem:[%s5 + $0x58] sm:$0xff]
      %v4178 = vld [vmem:[%s5 + $0x60] sm:$0xff]
      %v4179 = vld [vmem:[%s5 + $0x68] sm:$0xff]
      %v4180 = vld [vmem:[%s5 + $0x70] sm:$0xff]
      %v4181 = vld [vmem:[%s5 + $0x78] sm:$0xff]
      %v4182 = vld [vmem:[%s5 + $0x80] sm:$0xff]
      %v4183 = vld [vmem:[%s5 + $0x88] sm:$0xff]
      %v4184 = vld [vmem:[%s5 + $0x90] sm:$0xff]
      %v4185 = vld [vmem:[%s5 + $0x98] sm:$0xff]
      %v4186 = vld [vmem:[%s5 + $0xa0] sm:$0xff]
      %v4187 = vld [vmem:[%s5 + $0xa8] sm:$0xff]
      %v4188 = vld [vmem:[%s5 + $0xb0] sm:$0xff]
      %v4189 = vld [vmem:[%s5 + $0xb8] sm:$0xff]
      %v4190 = vld [vmem:[%s5 + $0xc0] sm:$0xff]
      %v4191 = vld [vmem:[%s5 + $0xc8] sm:$0xff]
      %v4192 = vld [vmem:[%s5 + $0xd0] sm:$0xff]
      %v4193 = vld [vmem:[%s5 + $0xd8] sm:$0xff]
      %v4194 = vld [vmem:[%s5 + $0xe0] sm:$0xff]
      %v4195 = vld [vmem:[%s5 + $0xe8] sm:$0xff]
      %v4196 = vld [vmem:[%s5 + $0xf0] sm:$0xff]
      %v4197 = vld [vmem:[%s5 + $0xf8] sm:$0xff]
      %v4198 = vld [vmem:[%s5 + $0x100] sm:$0xff]
      %v4199 = vld [vmem:[%s5 + $0x108] sm:$0xff]
      %v4200 = vld [vmem:[%s5 + $0x110] sm:$0xff]
      %v4201 = vld [vmem:[%s5 + $0x118] sm:$0xff]
      %v4202 = vld [vmem:[%s5 + $0x120] sm:$0xff]
      %v4203 = vld [vmem:[%s5 + $0x128] sm:$0xff]
      %v4204 = vld [vmem:[%s5 + $0x130] sm:$0xff]
      %v4205 = vld [vmem:[%s5 + $0x138] sm:$0xff]
      %v4206 = vld [vmem:[%s5 + $0x140] sm:$0xff]
      %v4207 = vld [vmem:[%s5 + $0x148] sm:$0xff]
      %v4208 = vld [vmem:[%s5 + $0x150] sm:$0xff]
      %v4209 = vld [vmem:[%s5 + $0x158] sm:$0xff]
      %v4210 = vld [vmem:[%s5 + $0x160] sm:$0xff]
      %v4211 = vld [vmem:[%s5 + $0x168] sm:$0xff]
      %v4212 = vld [vmem:[%s5 + $0x170] sm:$0xff]
      %v4213 = vld [vmem:[%s5 + $0x178] sm:$0xff]
      %v4214 = vld [vmem:[%s5 + $0x180] sm:$0xff]
      %v4215 = vld [vmem:[%s5 + $0x188] sm:$0xff]
      %v4216 = vld [vmem:[%s5 + $0x190] sm:$0xff]
      %v4217 = vld [vmem:[%s5 + $0x198] sm:$0xff]
      %v4218 = vld [vmem:[%s5 + $0x1a0] sm:$0xff]
      %v4219 = vld [vmem:[%s5 + $0x1a8] sm:$0xff]
      %v4220 = vld [vmem:[%s5 + $0x1b0] sm:$0xff]
      %v4221 = vld [vmem:[%s5 + $0x1b8] sm:$0xff]
      %v4222 = vld [vmem:[%s5 + $0x1c0] sm:$0xff]
      %v4223 = vld [vmem:[%s5 + $0x1c8] sm:$0xff]
      %v4224 = vld [vmem:[%s5 + $0x1d0] sm:$0xff]
      %v4225 = vld [vmem:[%s5 + $0x1d8] sm:$0xff]
      %v4226 = vld [vmem:[%s5 + $0x1e0] sm:$0xff]
      %v4227 = vld [vmem:[%s5 + $0x1e8] sm:$0xff]
      %v4228 = vld [vmem:[%s5 + $0x1f0] sm:$0xff]
      %v4229 = vld [vmem:[%s5 + $0x1f8] sm:$0xff]
      %v4230 = vld [vmem:[%s5 + $0x200] sm:$0xff]
      %v4231 = vld [vmem:[%s5 + $0x208] sm:$0xff]
      %v4232 = vld [vmem:[%s5 + $0x210] sm:$0xff]
      %v4233 = vld [vmem:[%s5 + $0x218] sm:$0xff]
      %v4234 = vld [vmem:[%s5 + $0x220] sm:$0xff]
      %v4235 = vld [vmem:[%s5 + $0x228] sm:$0xff]
      %v4236 = vld [vmem:[%s5 + $0x230] sm:$0xff]
      %v4237 = vld [vmem:[%s5 + $0x238] sm:$0xff]
      %v4238 = vld [vmem:[%s6] sm:$0x1]
      %v4240 = vlaneseq
      %v4241 = vshrl.u32 %v4240, 7
      %v4242 = vsub.s32 0, %v4241
      %v4243 = vrot.slane %v4238, %v4242
      %v4246 = vsel %vm279, %v4010, 0
      %v4249 = vsel %vm279, %v4015, 0
      %v4252 = vsel %vm279, %v4020, 0
      %v4255 = vsel %vm279, %v4025, 0
      %v4258 = vsel %vm279, %v4030, 0
      %v4261 = vsel %vm279, %v4035, 0
      %v4264 = vsel %vm279, %v4040, 0
      %v4267 = vsel %vm279, %v4045, 0
      %v4270 = vsel %vm279, %v4050, 0
      %v4273 = vsel %vm279, %v4055, 0
      %v4276 = vsel %vm279, %v4060, 0
      %v4279 = vsel %vm279, %v4065, 0
      %v4282 = vsel %vm279, %v4070, 0
      %v4285 = vsel %vm279, %v4075, 0
      %v4288 = vsel %vm279, %v4080, 0
      %v4291 = vsel %vm279, %v4085, 0
      %v4294 = vsel %vm279, %v4090, 0
      %v4297 = vsel %vm279, %v4095, 0
      %v4300 = vsel %vm279, %v4100, 0
      %v4303 = vsel %vm279, %v4105, 0
      %v4306 = vsel %vm279, %v4110, 0
      %v4309 = vsel %vm279, %v4115, 0
      %v4312 = vsel %vm279, %v4120, 0
      %v4315 = vsel %vm279, %v4125, 0
      %v4318 = vsel %vm279, %v4130, 0
      %v4321 = vsel %vm279, %v4135, 0
      %v4324 = vsel %vm279, %v4140, 0
      %v4327 = vsel %vm279, %v4145, 0
      %v4330 = vsel %vm279, %v4150, 0
      %v4333 = vsel %vm279, %v4155, 0
      %v4336 = vsel %vm279, %v4160, 0
      %v4339 = vsel %vm279, %v4165, 0
      %4341 = vmatprep.subr.mxu0 0.0
      %4342 = vmatpush1.msra.mxu0 %v4166
      %4343 = vmatprep.subr.mxu0 0.0
      %4344 = vmatpush1.msra.mxu0 %v4167
      %4345 = vmatprep.subr.mxu0 0.0
      %4346 = vmatpush1.msra.mxu0 %v4168
      %4347 = vmatprep.subr.mxu0 0.0
      %4348 = vmatpush1.msra.mxu0 %v4169
      %4349 = vmatprep.subr.mxu0 0.0
      %4350 = vmatpush1.msra.mxu0 %v4170
      %4351 = vmatprep.subr.mxu0 0.0
      %4352 = vmatpush1.msra.mxu0 %v4171
      %4353 = vmatprep.subr.mxu0 0.0
      %4354 = vmatpush1.msra.mxu0 %v4172
      %4355 = vmatprep.subr.mxu0 0.0
      %4356 = vmatpush1.msra.mxu0 %v4173
      %4357 = vmatprep.subr.mxu0 0.0
      %4358 = vmatpush1.msra.mxu0 %v4174
      %4359 = vmatprep.subr.mxu0 0.0
      %4360 = vmatpush1.msra.mxu0 %v4175
      %4361 = vmatprep.subr.mxu0 0.0
      %4362 = vmatpush1.msra.mxu0 %v4176
      %4363 = vmatprep.subr.mxu0 0.0
      %4364 = vmatpush1.msra.mxu0 %v4177
      %4365 = vmatprep.subr.mxu0 0.0
      %4366 = vmatpush1.msra.mxu0 %v4178
      %4367 = vmatprep.subr.mxu0 0.0
      %4368 = vmatpush1.msra.mxu0 %v4179
      %4369 = vmatprep.subr.mxu0 0.0
      %4370 = vmatpush1.msra.mxu0 %v4180
      %4371 = vmatprep.subr.mxu0 0.0
      %4372 = vmatpush1.msra.mxu0 %v4181
      %4373 = vmatprep.subr.mxu0 0.0
      %4374 = vmatpush1.msra.mxu0 %v4182
      %4375 = vmatprep.subr.mxu0 0.0
      %4376 = vmatpush1.msra.mxu0 %v4183
      %4377 = vmatprep.subr.mxu0 0.0
      %4378 = vmatpush1.msra.mxu0 %v4184
      %4379 = vmatprep.subr.mxu0 0.0
      %4380 = vmatpush1.msra.mxu0 %v4185
      %4381 = vmatprep.subr.mxu0 0.0
      %4382 = vmatpush1.msra.mxu0 %v4186
      %4383 = vmatprep.subr.mxu0 0.0
      %4384 = vmatpush1.msra.mxu0 %v4187
      %4385 = vmatprep.subr.mxu0 0.0
      %4386 = vmatpush1.msra.mxu0 %v4188
      %4387 = vmatprep.subr.mxu0 0.0
      %4388 = vmatpush1.msra.mxu0 %v4189
      %4389 = vmatprep.subr.mxu0 0.0
      %4390 = vmatpush1.msra.mxu0 %v4190
      %4391 = vmatprep.subr.mxu0 0.0
      %4392 = vmatpush1.msra.mxu0 %v4191
      %4393 = vmatprep.subr.mxu0 0.0
      %4394 = vmatpush1.msra.mxu0 %v4192
      %4395 = vmatprep.subr.mxu0 0.0
      %4396 = vmatpush1.msra.mxu0 %v4193
      %4397 = vmatprep.subr.mxu0 0.0
      %4398 = vmatpush1.msra.mxu0 %v4194
      %4399 = vmatprep.subr.mxu0 0.0
      %4400 = vmatpush1.msra.mxu0 %v4195
      %4401 = vmatprep.subr.mxu0 0.0
      %4402 = vmatpush1.msra.mxu0 %v4196
      %4403 = vmatprep.subr.mxu0 0.0
      %4404 = vmatpush1.msra.mxu0 %v4197
      %4405 = vmatprep.mubr.f32.mxu0 %v4007
      %4406 = vmatmul.mubr.f32.gmra.mrb[0].mxu0 %v4006
      %v4407 = vpop.f32.mrb[0].mxu0
      %v4408 = vadd.f32 %v4243, %v4407
      %v4409 = vpop.f32.mrb[0].mxu0
      %4410 = vmatprep.mubr.f32.mxu0 %v4012
      %4411 = vmatmul.mubr.f32.gmra.mrb[0].mxu0 %v4011
      %v4412 = vpop.f32.mrb[0].mxu0
      %v4413 = vadd.f32 %v4243, %v4412
      %v4414 = vpop.f32.mrb[0].mxu0
      %4415 = vmatprep.mubr.f32.mxu0 %v4017
      %4416 = vmatmul.mubr.f32.gmra.mrb[0].mxu0 %v4016
      %v4417 = vpop.f32.mrb[0].mxu0
      %v4418 = vadd.f32 %v4243, %v4417
      %v4419 = vpop.f32.mrb[0].mxu0
      %4420 = vmatprep.mubr.f32.mxu0 %v4022
      %4421 = vmatmul.mubr.f32.gmra.mrb[0].mxu0 %v4021
      %v4422 = vpop.f32.mrb[0].mxu0
      %v4423 = vadd.f32 %v4243, %v4422
      %v4424 = vpop.f32.mrb[0].mxu0
      %4425 = vmatprep.mubr.f32.mxu0 %v4027
      %4426 = vmatmul.mubr.f32.gmra.mrb[0].mxu0 %v4026
      %v4427 = vpop.f32.mrb[0].mxu0
      %v4428 = vadd.f32 %v4243, %v4427
      %v4429 = vpop.f32.mrb[0].mxu0
      %4430 = vmatprep.mubr.f32.mxu0 %v4032
      %4431 = vmatmul.mubr.f32.gmra.mrb[0].mxu0 %v4031
      %v4432 = vpop.f32.mrb[0].mxu0
      %v4433 = vadd.f32 %v4243, %v4432
      %v4434 = vpop.f32.mrb[0].mxu0
      %4435 = vmatprep.mubr.f32.mxu0 %v4037
      %4436 = vmatmul.mubr.f32.gmra.mrb[0].mxu0 %v4036
      %v4437 = vpop.f32.mrb[0].mxu0
      %v4438 = vadd.f32 %v4243, %v4437
      %v4439 = vpop.f32.mrb[0].mxu0
      %4440 = vmatprep.mubr.f32.mxu0 %v4042
      %4441 = vmatmul.mubr.f32.gmra.mrb[0].mxu0 %v4041
      %v4442 = vpop.f32.mrb[0].mxu0
      %v4443 = vadd.f32 %v4243, %v4442
      %v4444 = vpop.f32.mrb[0].mxu0
      %4445 = vmatprep.mubr.f32.mxu0 %v4047
      %4446 = vmatmul.mubr.f32.gmra.mrb[0].mxu0 %v4046
      %v4447 = vpop.f32.mrb[0].mxu0
      %v4448 = vadd.f32 %v4243, %v4447
      %v4449 = vpop.f32.mrb[0].mxu0
      %4450 = vmatprep.mubr.f32.mxu0 %v4052
      %4451 = vmatmul.mubr.f32.gmra.mrb[0].mxu0 %v4051
      %v4452 = vpop.f32.mrb[0].mxu0
      %v4453 = vadd.f32 %v4243, %v4452
      %v4454 = vpop.f32.mrb[0].mxu0
      %4455 = vmatprep.mubr.f32.mxu0 %v4057
      %4456 = vmatmul.mubr.f32.gmra.mrb[0].mxu0 %v4056
      %v4457 = vpop.f32.mrb[0].mxu0
      %v4458 = vadd.f32 %v4243, %v4457
      %v4459 = vpop.f32.mrb[0].mxu0
      %4460 = vmatprep.mubr.f32.mxu0 %v4062
      %4461 = vmatmul.mubr.f32.gmra.mrb[0].mxu0 %v4061
      %v4462 = vpop.f32.mrb[0].mxu0
      %v4463 = vadd.f32 %v4243, %v4462
      %v4464 = vpop.f32.mrb[0].mxu0
      %4465 = vmatprep.mubr.f32.mxu0 %v4067
      %4466 = vmatmul.mubr.f32.gmra.mrb[0].mxu0 %v4066
      %v4467 = vpop.f32.mrb[0].mxu0
      %v4468 = vadd.f32 %v4243, %v4467
      %v4469 = vpop.f32.mrb[0].mxu0
      %4470 = vmatprep.mubr.f32.mxu0 %v4072
      %4471 = vmatmul.mubr.f32.gmra.mrb[0].mxu0 %v4071
      %v4472 = vpop.f32.mrb[0].mxu0
      %v4473 = vadd.f32 %v4243, %v4472
      %v4474 = vpop.f32.mrb[0].mxu0
      %4475 = vmatprep.mubr.f32.mxu0 %v4077
      %4476 = vmatmul.mubr.f32.gmra.mrb[0].mxu0 %v4076
      %v4477 = vpop.f32.mrb[0].mxu0
      %v4478 = vadd.f32 %v4243, %v4477
      %v4479 = vpop.f32.mrb[0].mxu0
      %4480 = vmatprep.mubr.f32.mxu0 %v4082
      %4481 = vmatmul.mubr.f32.gmra.mrb[0].mxu0 %v4081
      %v4482 = vpop.f32.mrb[0].mxu0
      %v4483 = vadd.f32 %v4243, %v4482
      %v4484 = vpop.f32.mrb[0].mxu0
      %4485 = vmatprep.mubr.f32.mxu0 %v4087
      %4486 = vmatmul.mubr.f32.gmra.mrb[0].mxu0 %v4086
      %v4487 = vpop.f32.mrb[0].mxu0
      %v4488 = vadd.f32 %v4243, %v4487
      %v4489 = vpop.f32.mrb[0].mxu0
      %4490 = vmatprep.mubr.f32.mxu0 %v4092
      %4491 = vmatmul.mubr.f32.gmra.mrb[0].mxu0 %v4091
      %v4492 = vpop.f32.mrb[0].mxu0
      %v4493 = vadd.f32 %v4243, %v4492
      %v4494 = vpop.f32.mrb[0].mxu0
      %4495 = vmatprep.mubr.f32.mxu0 %v4097
      %4496 = vmatmul.mubr.f32.gmra.mrb[0].mxu0 %v4096
      %v4497 = vpop.f32.mrb[0].mxu0
      %v4498 = vadd.f32 %v4243, %v4497
      %v4499 = vpop.f32.mrb[0].mxu0
      %4500 = vmatprep.mubr.f32.mxu0 %v4102
      %4501 = vmatmul.mubr.f32.gmra.mrb[0].mxu0 %v4101
      %v4502 = vpop.f32.mrb[0].mxu0
      %v4503 = vadd.f32 %v4243, %v4502
      %v4504 = vpop.f32.mrb[0].mxu0
      %4505 = vmatprep.mubr.f32.mxu0 %v4107
      %4506 = vmatmul.mubr.f32.gmra.mrb[0].mxu0 %v4106
      %v4507 = vpop.f32.mrb[0].mxu0
      %v4508 = vadd.f32 %v4243, %v4507
      %v4509 = vpop.f32.mrb[0].mxu0
      %4510 = vmatprep.mubr.f32.mxu0 %v4112
      %4511 = vmatmul.mubr.f32.gmra.mrb[0].mxu0 %v4111
      %v4512 = vpop.f32.mrb[0].mxu0
      %v4513 = vadd.f32 %v4243, %v4512
      %v4514 = vpop.f32.mrb[0].mxu0
      %4515 = vmatprep.mubr.f32.mxu0 %v4117
      %4516 = vmatmul.mubr.f32.gmra.mrb[0].mxu0 %v4116
      %v4517 = vpop.f32.mrb[0].mxu0
      %v4518 = vadd.f32 %v4243, %v4517
      %v4519 = vpop.f32.mrb[0].mxu0
      %4520 = vmatprep.mubr.f32.mxu0 %v4122
      %4521 = vmatmul.mubr.f32.gmra.mrb[0].mxu0 %v4121
      %v4522 = vpop.f32.mrb[0].mxu0
      %v4523 = vadd.f32 %v4243, %v4522
      %v4524 = vpop.f32.mrb[0].mxu0
      %4525 = vmatprep.mubr.f32.mxu0 %v4127
      %4526 = vmatmul.mubr.f32.gmra.mrb[0].mxu0 %v4126
      %v4527 = vpop.f32.mrb[0].mxu0
      %v4528 = vadd.f32 %v4243, %v4527
      %v4529 = vpop.f32.mrb[0].mxu0
      %4530 = vmatprep.mubr.f32.mxu0 %v4132
      %4531 = vmatmul.mubr.f32.gmra.mrb[0].mxu0 %v4131
      %v4532 = vpop.f32.mrb[0].mxu0
      %v4533 = vadd.f32 %v4243, %v4532
      %v4534 = vpop.f32.mrb[0].mxu0
      %4535 = vmatprep.mubr.f32.mxu0 %v4137
      %4536 = vmatmul.mubr.f32.gmra.mrb[0].mxu0 %v4136
      %v4537 = vpop.f32.mrb[0].mxu0
      %v4538 = vadd.f32 %v4243, %v4537
      %v4539 = vpop.f32.mrb[0].mxu0
      %4540 = vmatprep.mubr.f32.mxu0 %v4142
      %4541 = vmatmul.mubr.f32.gmra.mrb[0].mxu0 %v4141
      %v4542 = vpop.f32.mrb[0].mxu0
      %v4543 = vadd.f32 %v4243, %v4542
      %v4544 = vpop.f32.mrb[0].mxu0
      %4545 = vmatprep.mubr.f32.mxu0 %v4147
      %4546 = vmatmul.mubr.f32.gmra.mrb[0].mxu0 %v4146
      %v4547 = vpop.f32.mrb[0].mxu0
      %v4548 = vadd.f32 %v4243, %v4547
      %v4549 = vpop.f32.mrb[0].mxu0
      %4550 = vmatprep.mubr.f32.mxu0 %v4152
      %4551 = vmatmul.mubr.f32.gmra.mrb[0].mxu0 %v4151
      %v4552 = vpop.f32.mrb[0].mxu0
      %v4553 = vadd.f32 %v4243, %v4552
      %v4554 = vpop.f32.mrb[0].mxu0
      %4555 = vmatprep.mubr.f32.mxu0 %v4157
      %4556 = vmatmul.mubr.f32.gmra.mrb[0].mxu0 %v4156
      %v4557 = vpop.f32.mrb[0].mxu0
      %v4558 = vadd.f32 %v4243, %v4557
      %v4559 = vpop.f32.mrb[0].mxu0
      %4560 = vmatprep.mubr.f32.mxu0 %v4162
      %4561 = vmatmul.mubr.f32.gmra.mrb[0].mxu0 %v4161
      %v4562 = vpop.f32.mrb[0].mxu0
      %v4563 = vadd.f32 %v4243, %v4562
      %v4564 = vpop.f32.mrb[0].mxu0
      %4565 = vdwg.mxu0
      %4566 = vmatprep.subr.mxu0 0.0
      %4567 = vmatpush1.msra.mxu0 %v4198
      %4568 = vmatprep.subr.mxu0 0.0
      %4569 = vmatpush1.msra.mxu0 %v4199
      %4570 = vmatprep.subr.mxu0 0.0
      %4571 = vmatpush1.msra.mxu0 %v4200
      %4572 = vmatprep.subr.mxu0 0.0
      %4573 = vmatpush1.msra.mxu0 %v4201
      %4574 = vmatprep.subr.mxu0 0.0
      %4575 = vmatpush1.msra.mxu0 %v4202
      %4576 = vmatprep.subr.mxu0 0.0
      %4577 = vmatpush1.msra.mxu0 %v4203
      %4578 = vmatprep.subr.mxu0 0.0
      %4579 = vmatpush1.msra.mxu0 %v4204
      %4580 = vmatprep.subr.mxu0 0.0
      %4581 = vmatpush1.msra.mxu0 %v4205
      %4582 = vmatprep.subr.mxu0 0.0
      %4583 = vmatpush1.msra.mxu0 %v4206
      %4584 = vmatprep.subr.mxu0 0.0
      %4585 = vmatpush1.msra.mxu0 %v4207
      %4586 = vmatprep.subr.mxu0 0.0
      %4587 = vmatpush1.msra.mxu0 %v4208
      %4588 = vmatprep.subr.mxu0 0.0
      %4589 = vmatpush1.msra.mxu0 %v4209
      %4590 = vmatprep.subr.mxu0 0.0
      %4591 = vmatpush1.msra.mxu0 %v4210
      %4592 = vmatprep.subr.mxu0 0.0
      %4593 = vmatpush1.msra.mxu0 %v4211
      %4594 = vmatprep.subr.mxu0 0.0
      %4595 = vmatpush1.msra.mxu0 %v4212
      %4596 = vmatprep.subr.mxu0 0.0
      %4597 = vmatpush1.msra.mxu0 %v4213
      %4598 = vmatprep.subr.mxu0 0.0
      %4599 = vmatpush1.msra.mxu0 %v4214
      %4600 = vmatprep.subr.mxu0 0.0
      %4601 = vmatpush1.msra.mxu0 %v4215
      %4602 = vmatprep.subr.mxu0 0.0
      %4603 = vmatpush1.msra.mxu0 %v4216
      %4604 = vmatprep.subr.mxu0 0.0
      %4605 = vmatpush1.msra.mxu0 %v4217
      %4606 = vmatprep.subr.mxu0 0.0
      %4607 = vmatpush1.msra.mxu0 %v4218
      %4608 = vmatprep.subr.mxu0 0.0
      %4609 = vmatpush1.msra.mxu0 %v4219
      %4610 = vmatprep.subr.mxu0 0.0
      %4611 = vmatpush1.msra.mxu0 %v4220
      %4612 = vmatprep.subr.mxu0 0.0
      %4613 = vmatpush1.msra.mxu0 %v4221
      %4614 = vmatprep.subr.mxu0 0.0
      %4615 = vmatpush1.msra.mxu0 %v4222
      %4616 = vmatprep.subr.mxu0 0.0
      %4617 = vmatpush1.msra.mxu0 %v4223
      %4618 = vmatprep.subr.mxu0 0.0
      %4619 = vmatpush1.msra.mxu0 %v4224
      %4620 = vmatprep.subr.mxu0 0.0
      %4621 = vmatpush1.msra.mxu0 %v4225
      %4622 = vmatprep.subr.mxu0 0.0
      %4623 = vmatpush1.msra.mxu0 %v4226
      %4624 = vmatprep.subr.mxu0 0.0
      %4625 = vmatpush1.msra.mxu0 %v4227
      %4626 = vmatprep.subr.mxu0 0.0
      %4627 = vmatpush1.msra.mxu0 %v4228
      %4628 = vmatprep.subr.mxu0 0.0
      %4629 = vmatpush1.msra.mxu0 %v4229
      %4630 = vmatprep.mubr.f32.mxu0 %v4009
      %4631 = vmatmul.mubr.f32.gmra.mrb[0].mxu0 %v4008
      %v4632 = vpop.f32.mrb[0].mxu0
      %v4633 = vadd.f32 %v4408, %v4632
      %v4634 = vpop.f32.mrb[0].mxu0
      %4635 = vmatprep.mubr.f32.mxu0 %v4014
      %4636 = vmatmul.mubr.f32.gmra.mrb[0].mxu0 %v4013
      %v4637 = vpop.f32.mrb[0].mxu0
      %v4638 = vadd.f32 %v4413, %v4637
      %v4639 = vpop.f32.mrb[0].mxu0
      %4640 = vmatprep.mubr.f32.mxu0 %v4019
      %4641 = vmatmul.mubr.f32.gmra.mrb[0].mxu0 %v4018
      %v4642 = vpop.f32.mrb[0].mxu0
      %v4643 = vadd.f32 %v4418, %v4642
      %v4644 = vpop.f32.mrb[0].mxu0
      %4645 = vmatprep.mubr.f32.mxu0 %v4024
      %4646 = vmatmul.mubr.f32.gmra.mrb[0].mxu0 %v4023
      %v4647 = vpop.f32.mrb[0].mxu0
      %v4648 = vadd.f32 %v4423, %v4647
      %v4649 = vpop.f32.mrb[0].mxu0
      %4650 = vmatprep.mubr.f32.mxu0 %v4029
      %4651 = vmatmul.mubr.f32.gmra.mrb[0].mxu0 %v4028
      %v4652 = vpop.f32.mrb[0].mxu0
      %v4653 = vadd.f32 %v4428, %v4652
      %v4654 = vpop.f32.mrb[0].mxu0
      %4655 = vmatprep.mubr.f32.mxu0 %v4034
      %4656 = vmatmul.mubr.f32.gmra.mrb[0].mxu0 %v4033
      %v4657 = vpop.f32.mrb[0].mxu0
      %v4658 = vadd.f32 %v4433, %v4657
      %v4659 = vpop.f32.mrb[0].mxu0
      %4660 = vmatprep.mubr.f32.mxu0 %v4039
      %4661 = vmatmul.mubr.f32.gmra.mrb[0].mxu0 %v4038
      %v4662 = vpop.f32.mrb[0].mxu0
      %v4663 = vadd.f32 %v4438, %v4662
      %v4664 = vpop.f32.mrb[0].mxu0
      %4665 = vmatprep.mubr.f32.mxu0 %v4044
      %4666 = vmatmul.mubr.f32.gmra.mrb[0].mxu0 %v4043
      %v4667 = vpop.f32.mrb[0].mxu0
      %v4668 = vadd.f32 %v4443, %v4667
      %v4669 = vpop.f32.mrb[0].mxu0
      %4670 = vmatprep.mubr.f32.mxu0 %v4049
      %4671 = vmatmul.mubr.f32.gmra.mrb[0].mxu0 %v4048
      %v4672 = vpop.f32.mrb[0].mxu0
      %v4673 = vadd.f32 %v4448, %v4672
      %v4674 = vpop.f32.mrb[0].mxu0
      %4675 = vmatprep.mubr.f32.mxu0 %v4054
      %4676 = vmatmul.mubr.f32.gmra.mrb[0].mxu0 %v4053
      %v4677 = vpop.f32.mrb[0].mxu0
      %v4678 = vadd.f32 %v4453, %v4677
      %v4679 = vpop.f32.mrb[0].mxu0
      %4680 = vmatprep.mubr.f32.mxu0 %v4059
      %4681 = vmatmul.mubr.f32.gmra.mrb[0].mxu0 %v4058
      %v4682 = vpop.f32.mrb[0].mxu0
      %v4683 = vadd.f32 %v4458, %v4682
      %v4684 = vpop.f32.mrb[0].mxu0
      %4685 = vmatprep.mubr.f32.mxu0 %v4064
      %4686 = vmatmul.mubr.f32.gmra.mrb[0].mxu0 %v4063
      %v4687 = vpop.f32.mrb[0].mxu0
      %v4688 = vadd.f32 %v4463, %v4687
      %v4689 = vpop.f32.mrb[0].mxu0
      %4690 = vmatprep.mubr.f32.mxu0 %v4069
      %4691 = vmatmul.mubr.f32.gmra.mrb[0].mxu0 %v4068
      %v4692 = vpop.f32.mrb[0].mxu0
      %v4693 = vadd.f32 %v4468, %v4692
      %v4694 = vpop.f32.mrb[0].mxu0
      %4695 = vmatprep.mubr.f32.mxu0 %v4074
      %4696 = vmatmul.mubr.f32.gmra.mrb[0].mxu0 %v4073
      %v4697 = vpop.f32.mrb[0].mxu0
      %v4698 = vadd.f32 %v4473, %v4697
      %v4699 = vpop.f32.mrb[0].mxu0
      %4700 = vmatprep.mubr.f32.mxu0 %v4079
      %4701 = vmatmul.mubr.f32.gmra.mrb[0].mxu0 %v4078
      %v4702 = vpop.f32.mrb[0].mxu0
      %v4703 = vadd.f32 %v4478, %v4702
      %v4704 = vpop.f32.mrb[0].mxu0
      %4705 = vmatprep.mubr.f32.mxu0 %v4084
      %4706 = vmatmul.mubr.f32.gmra.mrb[0].mxu0 %v4083
      %v4707 = vpop.f32.mrb[0].mxu0
      %v4708 = vadd.f32 %v4483, %v4707
      %v4709 = vpop.f32.mrb[0].mxu0
      %4710 = vmatprep.mubr.f32.mxu0 %v4089
      %4711 = vmatmul.mubr.f32.gmra.mrb[0].mxu0 %v4088
      %v4712 = vpop.f32.mrb[0].mxu0
      %v4713 = vadd.f32 %v4488, %v4712
      %v4714 = vpop.f32.mrb[0].mxu0
      %4715 = vmatprep.mubr.f32.mxu0 %v4094
      %4716 = vmatmul.mubr.f32.gmra.mrb[0].mxu0 %v4093
      %v4717 = vpop.f32.mrb[0].mxu0
      %v4718 = vadd.f32 %v4493, %v4717
      %v4719 = vpop.f32.mrb[0].mxu0
      %4720 = vmatprep.mubr.f32.mxu0 %v4099
      %4721 = vmatmul.mubr.f32.gmra.mrb[0].mxu0 %v4098
      %v4722 = vpop.f32.mrb[0].mxu0
      %v4723 = vadd.f32 %v4498, %v4722
      %v4724 = vpop.f32.mrb[0].mxu0
      %4725 = vmatprep.mubr.f32.mxu0 %v4104
      %4726 = vmatmul.mubr.f32.gmra.mrb[0].mxu0 %v4103
      %v4727 = vpop.f32.mrb[0].mxu0
      %v4728 = vadd.f32 %v4503, %v4727
      %v4729 = vpop.f32.mrb[0].mxu0
      %4730 = vmatprep.mubr.f32.mxu0 %v4109
      %4731 = vmatmul.mubr.f32.gmra.mrb[0].mxu0 %v4108
      %v4732 = vpop.f32.mrb[0].mxu0
      %v4733 = vadd.f32 %v4508, %v4732
      %v4734 = vpop.f32.mrb[0].mxu0
      %4735 = vmatprep.mubr.f32.mxu0 %v4114
      %4736 = vmatmul.mubr.f32.gmra.mrb[0].mxu0 %v4113
      %v4737 = vpop.f32.mrb[0].mxu0
      %v4738 = vadd.f32 %v4513, %v4737
      %v4739 = vpop.f32.mrb[0].mxu0
      %4740 = vmatprep.mubr.f32.mxu0 %v4119
      %4741 = vmatmul.mubr.f32.gmra.mrb[0].mxu0 %v4118
      %v4742 = vpop.f32.mrb[0].mxu0
      %v4743 = vadd.f32 %v4518, %v4742
      %v4744 = vpop.f32.mrb[0].mxu0
      %4745 = vmatprep.mubr.f32.mxu0 %v4124
      %4746 = vmatmul.mubr.f32.gmra.mrb[0].mxu0 %v4123
      %v4747 = vpop.f32.mrb[0].mxu0
      %v4748 = vadd.f32 %v4523, %v4747
      %v4749 = vpop.f32.mrb[0].mxu0
      %4750 = vmatprep.mubr.f32.mxu0 %v4129
      %4751 = vmatmul.mubr.f32.gmra.mrb[0].mxu0 %v4128
      %v4752 = vpop.f32.mrb[0].mxu0
      %v4753 = vadd.f32 %v4528, %v4752
      %v4754 = vpop.f32.mrb[0].mxu0
      %4755 = vmatprep.mubr.f32.mxu0 %v4134
      %4756 = vmatmul.mubr.f32.gmra.mrb[0].mxu0 %v4133
      %v4757 = vpop.f32.mrb[0].mxu0
      %v4758 = vadd.f32 %v4533, %v4757
      %v4759 = vpop.f32.mrb[0].mxu0
      %4760 = vmatprep.mubr.f32.mxu0 %v4139
      %4761 = vmatmul.mubr.f32.gmra.mrb[0].mxu0 %v4138
      %v4762 = vpop.f32.mrb[0].mxu0
      %v4763 = vadd.f32 %v4538, %v4762
      %v4764 = vpop.f32.mrb[0].mxu0
      %4765 = vmatprep.mubr.f32.mxu0 %v4144
      %4766 = vmatmul.mubr.f32.gmra.mrb[0].mxu0 %v4143
      %v4767 = vpop.f32.mrb[0].mxu0
      %v4768 = vadd.f32 %v4543, %v4767
      %v4769 = vpop.f32.mrb[0].mxu0
      %4770 = vmatprep.mubr.f32.mxu0 %v4149
      %4771 = vmatmul.mubr.f32.gmra.mrb[0].mxu0 %v4148
      %v4772 = vpop.f32.mrb[0].mxu0
      %v4773 = vadd.f32 %v4548, %v4772
      %v4774 = vpop.f32.mrb[0].mxu0
      %4775 = vmatprep.mubr.f32.mxu0 %v4154
      %4776 = vmatmul.mubr.f32.gmra.mrb[0].mxu0 %v4153
      %v4777 = vpop.f32.mrb[0].mxu0
      %v4778 = vadd.f32 %v4553, %v4777
      %v4779 = vpop.f32.mrb[0].mxu0
      %4780 = vmatprep.mubr.f32.mxu0 %v4159
      %4781 = vmatmul.mubr.f32.gmra.mrb[0].mxu0 %v4158
      %v4782 = vpop.f32.mrb[0].mxu0
      %v4783 = vadd.f32 %v4558, %v4782
      %v4784 = vpop.f32.mrb[0].mxu0
      %4785 = vmatprep.mubr.f32.mxu0 %v4164
      %4786 = vmatmul.mubr.f32.gmra.mrb[0].mxu0 %v4163
      %v4787 = vpop.f32.mrb[0].mxu0
      %v4788 = vadd.f32 %v4563, %v4787
      %v4789 = vpop.f32.mrb[0].mxu0
      %4790 = vdwg.mxu0
      %4791 = vmatprep.subr.mxu0 0.0
      %4792 = vmatpush1.msra.mxu0 %v4230
      %4793 = vmatprep.subr.mxu0 0.0
      %4794 = vmatpush1.msra.mxu0 %v4231
      %4795 = vmatprep.subr.mxu0 0.0
      %4796 = vmatpush1.msra.mxu0 %v4232
      %4797 = vmatprep.subr.mxu0 0.0
      %4798 = vmatpush1.msra.mxu0 %v4233
      %4799 = vmatprep.subr.mxu0 0.0
      %4800 = vmatpush1.msra.mxu0 %v4234
      %4801 = vmatprep.subr.mxu0 0.0
      %4802 = vmatpush1.msra.mxu0 %v4235
      %4803 = vmatprep.subr.mxu0 0.0
      %4804 = vmatpush1.msra.mxu0 %v4236
      %4805 = vmatprep.subr.mxu0 0.0
      %4806 = vmatpush1.msra.mxu0 %v4237
      %4807 = vmatprep.subr.mxu0 0.0
      %4808 = vmatpush1.msra.mxu0 0.0
      %4809 = vmatprep.subr.mxu0 0.0
      %4810 = vmatpush1.msra.mxu0 0.0
      %4811 = vmatprep.subr.mxu0 0.0
      %4812 = vmatpush1.msra.mxu0 0.0
      %4813 = vmatprep.subr.mxu0 0.0
      %4814 = vmatpush1.msra.mxu0 0.0
      %4815 = vmatprep.subr.mxu0 0.0
      %4816 = vmatpush1.msra.mxu0 0.0
      %4817 = vmatprep.subr.mxu0 0.0
      %4818 = vmatpush1.msra.mxu0 0.0
      %4819 = vmatprep.subr.mxu0 0.0
      %4820 = vmatpush1.msra.mxu0 0.0
      %4821 = vmatprep.subr.mxu0 0.0
      %4822 = vmatpush1.msra.mxu0 0.0
      %4823 = vmatprep.subr.mxu0 0.0
      %4824 = vmatpush1.msra.mxu0 0.0
      %4825 = vmatprep.subr.mxu0 0.0
      %4826 = vmatpush1.msra.mxu0 0.0
      %4827 = vmatprep.subr.mxu0 0.0
      %4828 = vmatpush1.msra.mxu0 0.0
      %4829 = vmatprep.subr.mxu0 0.0
      %4830 = vmatpush1.msra.mxu0 0.0
      %4831 = vmatprep.subr.mxu0 0.0
      %4832 = vmatpush1.msra.mxu0 0.0
      %4833 = vmatprep.subr.mxu0 0.0
      %4834 = vmatpush1.msra.mxu0 0.0
      %4835 = vmatprep.subr.mxu0 0.0
      %4836 = vmatpush1.msra.mxu0 0.0
      %4837 = vmatprep.subr.mxu0 0.0
      %4838 = vmatpush1.msra.mxu0 0.0
      %4839 = vmatprep.subr.mxu0 0.0
      %4840 = vmatpush1.msra.mxu0 0.0
      %4841 = vmatprep.subr.mxu0 0.0
      %4842 = vmatpush1.msra.mxu0 0.0
      %4843 = vmatprep.subr.mxu0 0.0
      %4844 = vmatpush1.msra.mxu0 0.0
      %4845 = vmatprep.subr.mxu0 0.0
      %4846 = vmatpush1.msra.mxu0 0.0
      %4847 = vmatprep.subr.mxu0 0.0
      %4848 = vmatpush1.msra.mxu0 0.0
      %4849 = vmatprep.subr.mxu0 0.0
      %4850 = vmatpush1.msra.mxu0 0.0
      %4851 = vmatprep.subr.mxu0 0.0
      %4852 = vmatpush1.msra.mxu0 0.0
      %4853 = vmatprep.subr.mxu0 0.0
      %4854 = vmatpush1.msra.mxu0 0.0
      %4855 = vmatprep.mubr.f32.mxu0 0.0
      %4856 = vmatmul.mubr.f32.gmra.mrb[0].mxu0 %v4246
      %v4857 = vpop.f32.mrb[0].mxu0
      %v4858 = vadd.f32 %v4633, %v4857
      %v4859 = vpop.f32.mrb[0].mxu0
      %4860 = vmatprep.mubr.f32.mxu0 0.0
      %4861 = vmatmul.mubr.f32.gmra.mrb[0].mxu0 %v4249
      %v4862 = vpop.f32.mrb[0].mxu0
      %v4863 = vadd.f32 %v4638, %v4862
      %v4864 = vpop.f32.mrb[0].mxu0
      %4865 = vmatprep.mubr.f32.mxu0 0.0
      %4866 = vmatmul.mubr.f32.gmra.mrb[0].mxu0 %v4252
      %v4867 = vpop.f32.mrb[0].mxu0
      %v4868 = vadd.f32 %v4643, %v4867
      %v4869 = vpop.f32.mrb[0].mxu0
      %4870 = vmatprep.mubr.f32.mxu0 0.0
      %4871 = vmatmul.mubr.f32.gmra.mrb[0].mxu0 %v4255
      %v4872 = vpop.f32.mrb[0].mxu0
      %v4873 = vadd.f32 %v4648, %v4872
      %v4874 = vpop.f32.mrb[0].mxu0
      %4875 = vmatprep.mubr.f32.mxu0 0.0
      %4876 = vmatmul.mubr.f32.gmra.mrb[0].mxu0 %v4258
      %v4877 = vpop.f32.mrb[0].mxu0
      %v4878 = vadd.f32 %v4653, %v4877
      %v4879 = vpop.f32.mrb[0].mxu0
      %4880 = vmatprep.mubr.f32.mxu0 0.0
      %4881 = vmatmul.mubr.f32.gmra.mrb[0].mxu0 %v4261
      %v4882 = vpop.f32.mrb[0].mxu0
      %v4883 = vadd.f32 %v4658, %v4882
      %v4884 = vpop.f32.mrb[0].mxu0
      %4885 = vmatprep.mubr.f32.mxu0 0.0
      %4886 = vmatmul.mubr.f32.gmra.mrb[0].mxu0 %v4264
      %v4887 = vpop.f32.mrb[0].mxu0
      %v4888 = vadd.f32 %v4663, %v4887
      %v4889 = vpop.f32.mrb[0].mxu0
      %4890 = vmatprep.mubr.f32.mxu0 0.0
      %4891 = vmatmul.mubr.f32.gmra.mrb[0].mxu0 %v4267
      %v4892 = vpop.f32.mrb[0].mxu0
      %v4893 = vadd.f32 %v4668, %v4892
      %v4894 = vpop.f32.mrb[0].mxu0
      %4895 = vmatprep.mubr.f32.mxu0 0.0
      %4896 = vmatmul.mubr.f32.gmra.mrb[0].mxu0 %v4270
      %v4897 = vpop.f32.mrb[0].mxu0
      %v4898 = vadd.f32 %v4673, %v4897
      %v4899 = vpop.f32.mrb[0].mxu0
      %4900 = vmatprep.mubr.f32.mxu0 0.0
      %4901 = vmatmul.mubr.f32.gmra.mrb[0].mxu0 %v4273
      %v4902 = vpop.f32.mrb[0].mxu0
      %v4903 = vadd.f32 %v4678, %v4902
      %v4904 = vpop.f32.mrb[0].mxu0
      %4905 = vmatprep.mubr.f32.mxu0 0.0
      %4906 = vmatmul.mubr.f32.gmra.mrb[0].mxu0 %v4276
      %v4907 = vpop.f32.mrb[0].mxu0
      %v4908 = vadd.f32 %v4683, %v4907
      %v4909 = vpop.f32.mrb[0].mxu0
      %4910 = vmatprep.mubr.f32.mxu0 0.0
      %4911 = vmatmul.mubr.f32.gmra.mrb[0].mxu0 %v4279
      %v4912 = vpop.f32.mrb[0].mxu0
      %v4913 = vadd.f32 %v4688, %v4912
      %v4914 = vpop.f32.mrb[0].mxu0
      %4915 = vmatprep.mubr.f32.mxu0 0.0
      %4916 = vmatmul.mubr.f32.gmra.mrb[0].mxu0 %v4282
      %v4917 = vpop.f32.mrb[0].mxu0
      %v4918 = vadd.f32 %v4693, %v4917
      %v4919 = vpop.f32.mrb[0].mxu0
      %4920 = vmatprep.mubr.f32.mxu0 0.0
      %4921 = vmatmul.mubr.f32.gmra.mrb[0].mxu0 %v4285
      %v4922 = vpop.f32.mrb[0].mxu0
      %v4923 = vadd.f32 %v4698, %v4922
      %v4924 = vpop.f32.mrb[0].mxu0
      %4925 = vmatprep.mubr.f32.mxu0 0.0
      %4926 = vmatmul.mubr.f32.gmra.mrb[0].mxu0 %v4288
      %v4927 = vpop.f32.mrb[0].mxu0
      %v4928 = vadd.f32 %v4703, %v4927
      %v4929 = vpop.f32.mrb[0].mxu0
      %4930 = vmatprep.mubr.f32.mxu0 0.0
      %4931 = vmatmul.mubr.f32.gmra.mrb[0].mxu0 %v4291
      %v4932 = vpop.f32.mrb[0].mxu0
      %v4933 = vadd.f32 %v4708, %v4932
      %v4934 = vpop.f32.mrb[0].mxu0
      %4935 = vmatprep.mubr.f32.mxu0 0.0
      %4936 = vmatmul.mubr.f32.gmra.mrb[0].mxu0 %v4294
      %v4937 = vpop.f32.mrb[0].mxu0
      %v4938 = vadd.f32 %v4713, %v4937
      %v4939 = vpop.f32.mrb[0].mxu0
      %4940 = vmatprep.mubr.f32.mxu0 0.0
      %4941 = vmatmul.mubr.f32.gmra.mrb[0].mxu0 %v4297
      %v4942 = vpop.f32.mrb[0].mxu0
      %v4943 = vadd.f32 %v4718, %v4942
      %v4944 = vpop.f32.mrb[0].mxu0
      %4945 = vmatprep.mubr.f32.mxu0 0.0
      %4946 = vmatmul.mubr.f32.gmra.mrb[0].mxu0 %v4300
      %v4947 = vpop.f32.mrb[0].mxu0
      %v4948 = vadd.f32 %v4723, %v4947
      %v4949 = vpop.f32.mrb[0].mxu0
      %4950 = vmatprep.mubr.f32.mxu0 0.0
      %4951 = vmatmul.mubr.f32.gmra.mrb[0].mxu0 %v4303
      %v4952 = vpop.f32.mrb[0].mxu0
      %v4953 = vadd.f32 %v4728, %v4952
      %v4954 = vpop.f32.mrb[0].mxu0
      %4955 = vmatprep.mubr.f32.mxu0 0.0
      %4956 = vmatmul.mubr.f32.gmra.mrb[0].mxu0 %v4306
      %v4957 = vpop.f32.mrb[0].mxu0
      %v4958 = vadd.f32 %v4733, %v4957
      %v4959 = vpop.f32.mrb[0].mxu0
      %4960 = vmatprep.mubr.f32.mxu0 0.0
      %4961 = vmatmul.mubr.f32.gmra.mrb[0].mxu0 %v4309
      %v4962 = vpop.f32.mrb[0].mxu0
      %v4963 = vadd.f32 %v4738, %v4962
      %v4964 = vpop.f32.mrb[0].mxu0
      %4965 = vmatprep.mubr.f32.mxu0 0.0
      %4966 = vmatmul.mubr.f32.gmra.mrb[0].mxu0 %v4312
      %v4967 = vpop.f32.mrb[0].mxu0
      %v4968 = vadd.f32 %v4743, %v4967
      %v4969 = vpop.f32.mrb[0].mxu0
      %4970 = vmatprep.mubr.f32.mxu0 0.0
      %4971 = vmatmul.mubr.f32.gmra.mrb[0].mxu0 %v4315
      %v4972 = vpop.f32.mrb[0].mxu0
      %v4973 = vadd.f32 %v4748, %v4972
      %v4974 = vpop.f32.mrb[0].mxu0
      %4975 = vmatprep.mubr.f32.mxu0 0.0
      %4976 = vmatmul.mubr.f32.gmra.mrb[0].mxu0 %v4318
      %v4977 = vpop.f32.mrb[0].mxu0
      %v4978 = vadd.f32 %v4753, %v4977
      %v4979 = vpop.f32.mrb[0].mxu0
      %4980 = vmatprep.mubr.f32.mxu0 0.0
      %4981 = vmatmul.mubr.f32.gmra.mrb[0].mxu0 %v4321
      %v4982 = vpop.f32.mrb[0].mxu0
      %v4983 = vadd.f32 %v4758, %v4982
      %v4984 = vpop.f32.mrb[0].mxu0
      %4985 = vmatprep.mubr.f32.mxu0 0.0
      %4986 = vmatmul.mubr.f32.gmra.mrb[0].mxu0 %v4324
      %v4987 = vpop.f32.mrb[0].mxu0
      %v4988 = vadd.f32 %v4763, %v4987
      %v4989 = vpop.f32.mrb[0].mxu0
      %4990 = vmatprep.mubr.f32.mxu0 0.0
      %4991 = vmatmul.mubr.f32.gmra.mrb[0].mxu0 %v4327
      %v4992 = vpop.f32.mrb[0].mxu0
      %v4993 = vadd.f32 %v4768, %v4992
      %v4994 = vpop.f32.mrb[0].mxu0
      %4995 = vmatprep.mubr.f32.mxu0 0.0
      %4996 = vmatmul.mubr.f32.gmra.mrb[0].mxu0 %v4330
      %v4997 = vpop.f32.mrb[0].mxu0
      %v4998 = vadd.f32 %v4773, %v4997
      %v4999 = vpop.f32.mrb[0].mxu0
      %5000 = vmatprep.mubr.f32.mxu0 0.0
      %5001 = vmatmul.mubr.f32.gmra.mrb[0].mxu0 %v4333
      %v5002 = vpop.f32.mrb[0].mxu0
      %v5003 = vadd.f32 %v4778, %v5002
      %v5004 = vpop.f32.mrb[0].mxu0
      %5005 = vmatprep.mubr.f32.mxu0 0.0
      %5006 = vmatmul.mubr.f32.gmra.mrb[0].mxu0 %v4336
      %v5007 = vpop.f32.mrb[0].mxu0
      %v5008 = vadd.f32 %v4783, %v5007
      %v5009 = vpop.f32.mrb[0].mxu0
      %5010 = vmatprep.mubr.f32.mxu0 0.0
      %5011 = vmatmul.mubr.f32.gmra.mrb[0].mxu0 %v4339
      %v5012 = vpop.f32.mrb[0].mxu0
      %v5013 = vadd.f32 %v4788, %v5012
      %v5014 = vpop.f32.mrb[0].mxu0
      %5015 = vdwg.mxu0
      %vm5016 = vcmask 23552
      %5017 = vst.msk [vmem:[%s278] sm:$0xff] %vm5016, %v4858
      %5018 = vst.msk [vmem:[%s278 + $0x8] sm:$0xff] %vm5016, %v4863
      %5019 = vst.msk [vmem:[%s278 + $0x10] sm:$0xff] %vm5016, %v4868
      %5020 = vst.msk [vmem:[%s278 + $0x18] sm:$0xff] %vm5016, %v4873
      %5021 = vst.msk [vmem:[%s278 + $0x20] sm:$0xff] %vm5016, %v4878
      %5022 = vst.msk [vmem:[%s278 + $0x28] sm:$0xff] %vm5016, %v4883
      %5023 = vst.msk [vmem:[%s278 + $0x30] sm:$0xff] %vm5016, %v4888
      %5024 = vst.msk [vmem:[%s278 + $0x38] sm:$0xff] %vm5016, %v4893
      %5025 = vst.msk [vmem:[%s278 + $0x40] sm:$0xff] %vm5016, %v4898
      %5026 = vst.msk [vmem:[%s278 + $0x48] sm:$0xff] %vm5016, %v4903
      %5027 = vst.msk [vmem:[%s278 + $0x50] sm:$0xff] %vm5016, %v4908
      %5028 = vst.msk [vmem:[%s278 + $0x58] sm:$0xff] %vm5016, %v4913
      %5029 = vst.msk [vmem:[%s278 + $0x60] sm:$0xff] %vm5016, %v4918
      %5030 = vst.msk [vmem:[%s278 + $0x68] sm:$0xff] %vm5016, %v4923
      %5031 = vst.msk [vmem:[%s278 + $0x70] sm:$0xff] %vm5016, %v4928
      %5032 = vst.msk [vmem:[%s278 + $0x78] sm:$0xff] %vm5016, %v4933
      %5033 = vst.msk [vmem:[%s278 + $0x80] sm:$0xff] %vm5016, %v4938
      %5034 = vst.msk [vmem:[%s278 + $0x88] sm:$0xff] %vm5016, %v4943
      %5035 = vst.msk [vmem:[%s278 + $0x90] sm:$0xff] %vm5016, %v4948
      %5036 = vst.msk [vmem:[%s278 + $0x98] sm:$0xff] %vm5016, %v4953
      %5037 = vst.msk [vmem:[%s278 + $0xa0] sm:$0xff] %vm5016, %v4958
      %5038 = vst.msk [vmem:[%s278 + $0xa8] sm:$0xff] %vm5016, %v4963
      %5039 = vst.msk [vmem:[%s278 + $0xb0] sm:$0xff] %vm5016, %v4968
      %5040 = vst.msk [vmem:[%s278 + $0xb8] sm:$0xff] %vm5016, %v4973
      %5041 = vst.msk [vmem:[%s278 + $0xc0] sm:$0xff] %vm5016, %v4978
      %5042 = vst.msk [vmem:[%s278 + $0xc8] sm:$0xff] %vm5016, %v4983
      %5043 = vst.msk [vmem:[%s278 + $0xd0] sm:$0xff] %vm5016, %v4988
      %5044 = vst.msk [vmem:[%s278 + $0xd8] sm:$0xff] %vm5016, %v4993
      %5045 = vst.msk [vmem:[%s278 + $0xe0] sm:$0xff] %vm5016, %v4998
      %5046 = vst.msk [vmem:[%s278 + $0xe8] sm:$0xff] %vm5016, %v5003
      %5047 = vst.msk [vmem:[%s278 + $0xf0] sm:$0xff] %vm5016, %v5008
      %5048 = vst.msk [vmem:[%s278 + $0xf8] sm:$0xff] %vm5016, %v5013
      %p5049 = scmp.lt.s32.totalorder %s18, 1
      %s5050 = scalar_select %p5049, %s18, 1
      %s5051 = smul.addr %s5050, 32
      %s5052 = smul.addr %s5051, 8
      %s5053 = scalar_lea.vmem %s7, %s5052
      // Predicated region
      $region49: #{tpu_custom_call.1} parent=47 // pred_check
        %p5054 = pneg %p188
      $region50: #{tpu_custom_call.1} parent=47 // pred_check_branch
        %5056 = sbr.rel (%p5054) target = $region52
      $region51: #{tpu_custom_call.1} parent=47 // pred_region
        _
      $region52: #{tpu_custom_call.1} parent=47 // pred_fallthru
        _
    $region48: #{tpu_custom_call.1} parent=5 // pred_fallthru
      _
    %p5057 = scmp.le.s32.totalorder 2, %s13
    // Predicated region
    $region53: #{tpu_custom_call.1} parent=5 // pred_check
      %p5058 = pneg %p5057
    $region54: #{tpu_custom_call.1} parent=5 // pred_check_branch
      %5060 = sbr.rel (%p5058) target = $region56
    $region55: #{tpu_custom_call.1} parent=5 // pred_region
      %s5061 = ssub.s32 %s13, 2
      // Predicated region
      $region57: #{tpu_custom_call.1} parent=55 // pred_check
        %p5062 = pneg %p194
      $region58: #{tpu_custom_call.1} parent=55 // pred_check_branch
        %5064 = sbr.rel (%p5062) target = $region60
      $region59: #{tpu_custom_call.1} parent=55 // pred_region
        %p5065 = scmp.lt.s32.totalorder %s19, 1
        %s5066 = scalar_select %p5065, %s19, 1
        %s5067 = smul.addr %s5066, 32
        %s5068 = smul.addr %s5067, 8
        %s5069 = scalar_lea.vmem %s7, %s5068
      $region60: #{tpu_custom_call.1} parent=55 // pred_fallthru
        _
    $region56: #{tpu_custom_call.1} parent=5 // pred_fallthru
      _
  $region6: #{tpu_custom_call.1} parent=0 // loop_footer
    %s17 = sadd.s32 1, %s13
  $region7: #{tpu_custom_call.1} parent=0 // loop_footer_branch
    %12 = sbr.rel target = $region3
  $region8: #{tpu_custom_call.1} parent=0 // loop_exit
    _

</llo_original>
